<compile_context>
chip_gen: v5e
topology: v5e:2x2
jax: 0.10.0
libtpu: 0.0.40
codegen_flags: <defaults>
</compile_context>

<pallas_src>
import math
from functools import partial

import jax
import jax.numpy as jnp
from jax.experimental import pallas as pl
from jax.experimental.pallas import tpu as pltpu

EPS = 1e-5  # nn.LayerNorm default


def _layer_norm(v, w, b):
    mu = jnp.mean(v, axis=-1, keepdims=True)
    var = jnp.mean(jnp.square(v - mu), axis=-1, keepdims=True)
    return (v - mu) * jax.lax.rsqrt(var + EPS) * w + b


def _mm(a, w, bias=None):
    # f32-accumulating matmul; callers pre-cast `a` to the weight dtype once.
    out = jnp.dot(a, w, preferred_element_type=jnp.float32)
    return out if bias is None else out + bias


def _erf(x):
    # Abramowitz & Stegun 7.1.26 (|abs err| < 1.5e-7): only exp (EUP) + VPU math,
    # so it always lowers in Mosaic (no dependence on a native erf lowering).
    a1, a2, a3, a4, a5 = (0.254829592, -0.284496736, 1.421413741,
                          -1.453152027, 1.061405429)
    p = 0.3275911
    ax = jnp.abs(x)
    t = 1.0 / (1.0 + p * ax)
    poly = ((((a5 * t + a4) * t + a3) * t + a2) * t + a1) * t
    y = 1.0 - poly * jnp.exp(-(ax * ax))
    return jnp.where(x < 0.0, -y, y)


def _attention_block_kernel(x_ref, ln1w_ref, ln1b_ref,
                            wq_ref, wk_ref, wv_ref, bq_ref, bk_ref, bv_ref,
                            wo_ref, bo_ref, ln2w_ref, ln2b_ref,
                            w1_ref, b1_ref, w2_ref, b2_ref,
                            o_ref, *, num_heads):
    Nb, L, E = x_ref.shape
    M = Nb * L
    D = E // num_heads
    wdtype = wq_ref.dtype

    # (Nb, L, E) block -> (M, E) token matrix: free leading-dim merge, lane-dense.
    x2d = x_ref[...].astype(jnp.float32).reshape(M, E)

    # ---- LayerNorm 1 (f32 elementwise)
    h1 = _layer_norm(x2d, ln1w_ref[...], ln1b_ref[...])
    h1c = h1.astype(wdtype)                       # single hoisted cast for Q/K/V

    # ---- full-width Q/K/V projections (E-wide MXU matmuls); Wq,bq pre-scaled 1/sqrt(D)
    qf = _mm(h1c, wq_ref[...], bq_ref[...])       # (M, E) f32
    kf = _mm(h1c, wk_ref[...], bk_ref[...])
    vf = _mm(h1c, wv_ref[...], bv_ref[...])

    # ---- head split: static lane slices + leading-dim reshapes only
    def split_heads(t2d):
        heads = [t2d[:, h * D:(h + 1) * D].reshape(Nb, 1, L, D)
                 for h in range(num_heads)]
        return jnp.concatenate(heads, axis=1).reshape(Nb * num_heads, L, D)

    q = split_heads(qf)
    k = split_heads(kf)
    v = split_heads(vf)

    # ---- scaled dot-product attention, batched over (Nb * num_heads)
    s = jnp.einsum("bqd,bkd->bqk", q, k, preferred_element_type=jnp.float32)
    s = s - jnp.max(s, axis=-1, keepdims=True)
    p = jnp.exp(s)
    denom = jnp.sum(p, axis=-1, keepdims=True)           # (Nb*nh, L, 1)
    o = jnp.einsum("bqk,bkd->bqd", p, v, preferred_element_type=jnp.float32)
    o = o * pl.reciprocal(denom, approx=False)            # exact reciprocal

    # ---- head merge back to (M, E): last-dim concat + free leading-dim reshape
    o4 = o.reshape(Nb, num_heads, L, D)
    o2d = jnp.concatenate([o4[:, h] for h in range(num_heads)],
                          axis=-1).reshape(M, E)

    # ---- single full-width output projection + residual 1
    attn = _mm(o2d.astype(wdtype), wo_ref[...], bo_ref[...])
    x1 = x2d + attn

    # ---- LayerNorm 2 + MLP (Linear -> exact GELU -> Linear); dropout = identity
    # TODO(synk): training-mode dropout (p=0.1) is not implemented; eval semantics only.
    h2 = _layer_norm(x1, ln2w_ref[...], ln2b_ref[...])
    m = _mm(h2.astype(wdtype), w1_ref[...], b1_ref[...])
    m = 0.5 * m * (1.0 + _erf(m * (1.0 / math.sqrt(2.0))))
    m = _mm(m.astype(wdtype), w2_ref[...], b2_ref[...])
    out2d = x1 + m                                         # (M, E)

    # lane-dense, contiguous store
    o_ref[...] = out2d.reshape(Nb, L, E).astype(o_ref.dtype)


def prepare_params(params, num_heads, dtype=jnp.float32):
    """One-time re-layout of PyTorch-convention params into kernel-ready arrays:
    matmul weights pre-transposed to (in, out); Wq/bq pre-scaled by 1/sqrt(D).
    Use dtype=jnp.bfloat16 on v6e/v7x to halve weight HBM/VMEM traffic (the
    kernel still accumulates in f32); LayerNorm params and biases stay f32."""
    E = params["ln1_w"].shape[0]
    assert E % num_heads == 0
    D = E // num_heads
    scale = 1.0 / math.sqrt(D)
    r2 = lambda v: v.reshape(1, -1).astype(jnp.float32)
    w = lambda a: a.astype(dtype)

    wqkv = params["in_proj_w"]          # (3E, E) torch (out, in)
    bqkv = params["in_proj_b"]          # (3E,)
    wq = wqkv[0 * E:1 * E].T * scale    # (E, E) in->out layout
    wk = wqkv[1 * E:2 * E].T
    wv = wqkv[2 * E:3 * E].T
    bq = r2(bqkv[0 * E:1 * E]) * scale
    bk = r2(bqkv[1 * E:2 * E])
    bv = r2(bqkv[2 * E:3 * E])
    wo = params["out_proj_w"].T         # (E, E)

    return dict(
        ln1_w=r2(params["ln1_w"]), ln1_b=r2(params["ln1_b"]),
        wq=w(wq), wk=w(wk), wv=w(wv), bq=bq, bk=bk, bv=bv,
        wo=w(wo), bo=r2(params["out_proj_b"]),
        ln2_w=r2(params["ln2_w"]), ln2_b=r2(params["ln2_b"]),
        w1=w(params["w1"].T), b1=r2(params["b1"]),
        w2=w(params["w2"].T), b2=r2(params["b2"]),
    )


def _vmem_capacity_bytes():
    try:
        return int(pltpu.get_tpu_info().vmem_capacity_bytes)
    except Exception:           # query unavailable -> assume the smallest (v7x) VMEM
        return 64 << 20


def _pick_batch_block(N, L, E, itemsize, vmem_cap_bytes):
    """Largest batch block Nb dividing N under a generation-aware VMEM budget
    (block second-minor dim is the full L, so no 8-divisibility constraint on Nb);
    keep >=2 grid steps when possible so v7x's two TensorCores both get work."""
    small_vmem = vmem_cap_bytes <= (64 << 20)
    max_block_bytes = (4 << 20) if small_vmem else (12 << 20)
    target_rows = 256 if small_vmem else 512
    best = 1
    for d in range(1, N + 1):
        if N % d:
            continue
        if d * L * E * itemsize > max_block_bytes:
            break
        best = d
        if d * L >= target_rows:
            break
    if best == N and N > 1:     # grid of 1 leaves a v7x core idle; cost elsewhere ~0.35us
        for d in range(N // 2, 0, -1):
            if N % d == 0:
                best = d
                break
    return best


# Exceptions that indicate the Buffered(1) weight specs were rejected by this
# runtime/compiler.  The fallback rebuilds the *identical* kernel with default
# buffering, so a genuine error would simply re-raise from the fallback build.
_FALLBACK_ERRORS = tuple(
    t for t in (getattr(pltpu, "LoweringException", None),
                getattr(getattr(jax, "errors", None), "JaxRuntimeError", None),
                NotImplementedError, ValueError)
    if isinstance(t, type))


def attention_block(x_lne, kparams, num_heads, *, batch_block=None,
                    single_buffer_weights=None):
    """x_lne: (L, N, E) in PyTorch nn.MultiheadAttention (seq, batch, embed) convention.
    kparams: output of prepare_params()."""
    L, N, E = x_lne.shape
    assert E % num_heads == 0
    vmem_cap = _vmem_capacity_bytes()
    Nb = batch_block or _pick_batch_block(N, L, E, x_lne.dtype.itemsize, vmem_cap)
    assert N % Nb == 0
    grid = (N // Nb,)

    # One relayout each way in the wrapper (HBM transpose) buys lane-dense blocks
    # and removes the in-kernel gather/scatter + scratch entirely.
    x_nle = jnp.transpose(x_lne, (1, 0, 2))                 # (N, L, E)

    weight_args = (
        kparams["ln1_w"], kparams["ln1_b"],
        kparams["wq"], kparams["wk"], kparams["wv"],
        kparams["bq"], kparams["bk"], kparams["bv"],
        kparams["wo"], kparams["bo"],
        kparams["ln2_w"], kparams["ln2_b"],
        kparams["w1"], kparams["b1"], kparams["w2"], kparams["b2"],
    )

    x_spec = pl.BlockSpec((Nb, L, E), lambda n: (n, 0, 0))
    out_spec = pl.BlockSpec((Nb, L, E), lambda n: (n, 0, 0))

    # VMEM request sized from the real footprint, clamped below physical capacity
    # (v7x: 64 MiB) with ~8 MiB headroom.
    wbytes = sum(int(a.size) * a.dtype.itemsize for a in weight_args)
    blk = Nb * L * E * x_lne.dtype.itemsize
    H = kparams["w1"].shape[1]
    act = 8 * Nb * L * max(E, H) * 4 + 2 * Nb * num_heads * L * L * 4
    est = 2 * wbytes + 4 * blk + act
    vmem_limit = int(max(16 << 20,
                         min(vmem_cap - (8 << 20), max(48 << 20, 2 * est))))

    def build(single_buffer):
        def wspec(a):
            shape = a.shape
            kw = {"pipeline_mode": pl.Buffered(1)} if single_buffer else {}
            return pl.BlockSpec(shape, lambda n: (0,) * len(shape), **kw)

        in_specs = [x_spec] + [wspec(a) for a in weight_args]
        return pl.pallas_call(
            partial(_attention_block_kernel, num_heads=num_heads),
            out_shape=jax.ShapeDtypeStruct((N, L, E), x_lne.dtype),
            grid_spec=pltpu.PrefetchScalarGridSpec(
                num_scalar_prefetch=0,
                grid=grid,
                in_specs=in_specs,
                out_specs=out_spec,
            ),
            compiler_params=pltpu.CompilerParams(
                dimension_semantics=("parallel",),
                vmem_limit_bytes=vmem_limit,
            ),
        )

    args = (x_nle,) + weight_args
    if single_buffer_weights is None:
        try:
            out_nle = build(True)(*args)
        except _FALLBACK_ERRORS:
            out_nle = build(False)(*args)
    else:
        out_nle = build(single_buffer_weights)(*args)

    return jnp.transpose(out_nle, (1, 0, 2))                # back to (L, N, E)


def attention_block_ref(x, p, num_heads):
    """Pure-JAX reference (same math as the PyTorch module in eval mode)."""
    L, N, E = x.shape
    D = E // num_heads

    def ln(v, w, b):
        mu = jnp.mean(v, -1, keepdims=True)
        var = jnp.mean(jnp.square(v - mu), -1, keepdims=True)
        return (v - mu) * jax.lax.rsqrt(var + EPS) * w + b

    h = ln(x, p["ln1_w"], p["ln1_b"])
    qkv = h @ p["in_proj_w"].T + p["in_proj_b"]            # (L, N, 3E)
    q, k, v = jnp.split(qkv, 3, axis=-1)
    q = q.reshape(L, N, num_heads, D).transpose(1, 2, 0, 3) / math.sqrt(D)
    k = k.reshape(L, N, num_heads, D).transpose(1, 2, 0, 3)
    v = v.reshape(L, N, num_heads, D).transpose(1, 2, 0, 3)
    s = jnp.einsum("bhqd,bhkd->bhqk", q, k)
    pr = jax.nn.softmax(s, axis=-1)
    a = jnp.einsum("bhqk,bhkd->bhqd", pr, v)               # (N, H, L, D)
    a = a.transpose(2, 0, 1, 3).reshape(L, N, E)
    a = a @ p["out_proj_w"].T + p["out_proj_b"]
    x1 = x + a
    h2 = ln(x1, p["ln2_w"], p["ln2_b"])
    m = h2 @ p["w1"].T + p["b1"]
    m = jax.nn.gelu(m, approximate=False)
    m = m @ p["w2"].T + p["b2"]
    return x1 + m


def init_params(key, embed_dim, hidden_dim):
    ks = jax.random.split(key, 8)
    s = 0.05
    return dict(
        ln1_w=jnp.ones((embed_dim,), jnp.float32),
        ln1_b=jnp.zeros((embed_dim,), jnp.float32),
        in_proj_w=s * jax.random.normal(ks[0], (3 * embed_dim, embed_dim), jnp.float32),
        in_proj_b=s * jax.random.normal(ks[1], (3 * embed_dim,), jnp.float32),
        out_proj_w=s * jax.random.normal(ks[2], (embed_dim, embed_dim), jnp.float32),
        out_proj_b=s * jax.random.normal(ks[3], (embed_dim,), jnp.float32),
        ln2_w=jnp.ones((embed_dim,), jnp.float32),
        ln2_b=jnp.zeros((embed_dim,), jnp.float32),
        w1=s * jax.random.normal(ks[4], (hidden_dim, embed_dim), jnp.float32),
        b1=s * jax.random.normal(ks[5], (hidden_dim,), jnp.float32),
        w2=s * jax.random.normal(ks[6], (embed_dim, hidden_dim), jnp.float32),
        b2=s * jax.random.normal(ks[7], (embed_dim,), jnp.float32),
    )


if __name__ == "__main__":
    # Full-f32 matmul precision for tight parity of the toy test against the
    # pure-JAX reference; leave at default (and use bf16 weights) in production.
    jax.config.update("jax_default_matmul_precision", "highest")

    embed_dim, hidden_dim, num_heads = 32, 64, 4
    seq_len, batch = 8, 2

    key = jax.random.PRNGKey(0)
    kx, kp = jax.random.split(key)
    x = jax.random.normal(kx, (seq_len, batch, embed_dim), jnp.float32)   # (L, N, E)
    params = init_params(kp, embed_dim, hidden_dim)

    # One-time weight re-layout; use dtype=jnp.bfloat16 for production ViT sizes
    # on v6e/v7x to halve weight traffic (f32 here for exact toy parity).
    kparams = prepare_params(params, num_heads, dtype=jnp.float32)

    out = jax.block_until_ready(attention_block(x, kparams, num_heads))
    ref = jax.block_until_ready(attention_block_ref(x, params, num_heads))

    assert out.shape == (seq_len, batch, embed_dim)
    err = float(jnp.max(jnp.abs(out - ref)))
    assert jnp.allclose(out, ref, rtol=2e-3, atol=2e-3), err

    print("KERNEL_OK")
</pallas_src>

<mosaic_0001>
module attributes {stable_mosaic.version = 11 : i64} {
  func.func @_attention_block_kernel(%arg0: i32, %arg1: memref<1x8x32xf32, #tpu.memory_space<vmem>>, %arg2: memref<1x32xf32, #tpu.memory_space<vmem>>, %arg3: memref<1x32xf32, #tpu.memory_space<vmem>>, %arg4: memref<32x32xf32, #tpu.memory_space<vmem>>, %arg5: memref<32x32xf32, #tpu.memory_space<vmem>>, %arg6: memref<32x32xf32, #tpu.memory_space<vmem>>, %arg7: memref<1x32xf32, #tpu.memory_space<vmem>>, %arg8: memref<1x32xf32, #tpu.memory_space<vmem>>, %arg9: memref<1x32xf32, #tpu.memory_space<vmem>>, %arg10: memref<32x32xf32, #tpu.memory_space<vmem>>, %arg11: memref<1x32xf32, #tpu.memory_space<vmem>>, %arg12: memref<1x32xf32, #tpu.memory_space<vmem>>, %arg13: memref<1x32xf32, #tpu.memory_space<vmem>>, %arg14: memref<32x64xf32, #tpu.memory_space<vmem>>, %arg15: memref<1x64xf32, #tpu.memory_space<vmem>>, %arg16: memref<64x32xf32, #tpu.memory_space<vmem>>, %arg17: memref<1x32xf32, #tpu.memory_space<vmem>>, %arg18: memref<1x8x32xf32, #tpu.memory_space<vmem>>) attributes {dimension_semantics = [#tpu.dimension_semantics<parallel>], iteration_bounds = array<i64: 2>, scalar_prefetch = 0 : i64, scratch_operands = 0 : i64, tpu.core_type = #tpu.core_type<tc>, window_params = [{transform_indices = @transform_0, window_bounds = array<i64: 1, 8, 32>}, {pipeline_mode = #tpu.pipeline_mode<synchronous>, transform_indices = @transform_1, window_bounds = array<i64: 1, 32>}, {pipeline_mode = #tpu.pipeline_mode<synchronous>, transform_indices = @transform_2, window_bounds = array<i64: 1, 32>}, {pipeline_mode = #tpu.pipeline_mode<synchronous>, transform_indices = @transform_3, window_bounds = array<i64: 32, 32>}, {pipeline_mode = #tpu.pipeline_mode<synchronous>, transform_indices = @transform_4, window_bounds = array<i64: 32, 32>}, {pipeline_mode = #tpu.pipeline_mode<synchronous>, transform_indices = @transform_5, window_bounds = array<i64: 32, 32>}, {pipeline_mode = #tpu.pipeline_mode<synchronous>, transform_indices = @transform_6, window_bounds = array<i64: 1, 32>}, {pipeline_mode = #tpu.pipeline_mode<synchronous>, transform_indices = @transform_7, window_bounds = array<i64: 1, 32>}, {pipeline_mode = #tpu.pipeline_mode<synchronous>, transform_indices = @transform_8, window_bounds = array<i64: 1, 32>}, {pipeline_mode = #tpu.pipeline_mode<synchronous>, transform_indices = @transform_9, window_bounds = array<i64: 32, 32>}, {pipeline_mode = #tpu.pipeline_mode<synchronous>, transform_indices = @transform_10, window_bounds = array<i64: 1, 32>}, {pipeline_mode = #tpu.pipeline_mode<synchronous>, transform_indices = @transform_11, window_bounds = array<i64: 1, 32>}, {pipeline_mode = #tpu.pipeline_mode<synchronous>, transform_indices = @transform_12, window_bounds = array<i64: 1, 32>}, {pipeline_mode = #tpu.pipeline_mode<synchronous>, transform_indices = @transform_13, window_bounds = array<i64: 32, 64>}, {pipeline_mode = #tpu.pipeline_mode<synchronous>, transform_indices = @transform_14, window_bounds = array<i64: 1, 64>}, {pipeline_mode = #tpu.pipeline_mode<synchronous>, transform_indices = @transform_15, window_bounds = array<i64: 64, 32>}, {pipeline_mode = #tpu.pipeline_mode<synchronous>, transform_indices = @transform_16, window_bounds = array<i64: 1, 32>}, {transform_indices = @transform_17, window_bounds = array<i64: 1, 8, 32>}]} {
    %c0 = arith.constant 0 : index
    %c0_0 = arith.constant 0 : index
    %c0_1 = arith.constant 0 : index
    %0 = vector.load %arg1[%c0, %c0_0, %c0_1] : memref<1x8x32xf32, #tpu.memory_space<vmem>>, vector<1x8x32xf32>
    %1 = vector.shape_cast %0 : vector<1x8x32xf32> to vector<8x32xf32>
    %c0_2 = arith.constant 0 : index
    %c0_3 = arith.constant 0 : index
    %2 = vector.load %arg2[%c0_2, %c0_3] : memref<1x32xf32, #tpu.memory_space<vmem>>, vector<1x32xf32>
    %c0_4 = arith.constant 0 : index
    %c0_5 = arith.constant 0 : index
    %3 = vector.load %arg3[%c0_4, %c0_5] : memref<1x32xf32, #tpu.memory_space<vmem>>, vector<1x32xf32>
    %cst = arith.constant dense<0.000000e+00> : vector<8xf32>
    %4 = vector.multi_reduction <add>, %1, %cst [1] : vector<8x32xf32> to vector<8xf32>
    %5 = vector.shape_cast %4 : vector<8xf32> to vector<8x1xf32>
    %cst_6 = arith.constant 3.200000e+01 : f32
    %6 = vector.broadcast %cst_6 : f32 to vector<8x1xf32>
    %7 = arith.divf %5, %6 : vector<8x1xf32>
    %8 = vector.broadcast %7 : vector<8x1xf32> to vector<8x32xf32>
    %9 = arith.subf %1, %8 : vector<8x32xf32>
    %10 = arith.mulf %9, %9 : vector<8x32xf32>
    %cst_7 = arith.constant dense<0.000000e+00> : vector<8xf32>
    %11 = vector.multi_reduction <add>, %10, %cst_7 [1] : vector<8x32xf32> to vector<8xf32>
    %12 = vector.shape_cast %11 : vector<8xf32> to vector<8x1xf32>
    %cst_8 = arith.constant 3.200000e+01 : f32
    %13 = vector.broadcast %cst_8 : f32 to vector<8x1xf32>
    %14 = arith.divf %12, %13 : vector<8x1xf32>
    %15 = vector.broadcast %7 : vector<8x1xf32> to vector<8x32xf32>
    %16 = arith.subf %1, %15 : vector<8x32xf32>
    %cst_9 = arith.constant 9.99999974E-6 : f32
    %17 = vector.broadcast %cst_9 : f32 to vector<8x1xf32>
    %18 = arith.addf %14, %17 : vector<8x1xf32>
    %19 = math.rsqrt %18 : vector<8x1xf32>
    %20 = vector.broadcast %19 : vector<8x1xf32> to vector<8x32xf32>
    %21 = arith.mulf %16, %20 : vector<8x32xf32>
    %22 = vector.broadcast %2 : vector<1x32xf32> to vector<8x32xf32>
    %23 = arith.mulf %21, %22 : vector<8x32xf32>
    %24 = vector.broadcast %3 : vector<1x32xf32> to vector<8x32xf32>
    %25 = arith.addf %23, %24 : vector<8x32xf32>
    %c0_10 = arith.constant 0 : index
    %c0_11 = arith.constant 0 : index
    %26 = vector.load %arg4[%c0_10, %c0_11] : memref<32x32xf32, #tpu.memory_space<vmem>>, vector<32x32xf32>
    %c0_12 = arith.constant 0 : index
    %c0_13 = arith.constant 0 : index
    %27 = vector.load %arg7[%c0_12, %c0_13] : memref<1x32xf32, #tpu.memory_space<vmem>>, vector<1x32xf32>
    %cst_14 = arith.constant dense<0.000000e+00> : vector<8x32xf32>
    %28 = tpu.matmul %25, %26, %cst_14 {dimension_numbers = #tpu.dot_dimension_numbers<[1], [0], [0], [1], [0, 0, 1, 1], [], []>, precision = #tpu.contract_precision<fp32>} : vector<8x32xf32>, vector<32x32xf32>, vector<8x32xf32> -> vector<8x32xf32>
    %29 = vector.broadcast %27 : vector<1x32xf32> to vector<8x32xf32>
    %30 = arith.addf %28, %29 : vector<8x32xf32>
    %c0_15 = arith.constant 0 : index
    %c0_16 = arith.constant 0 : index
    %31 = vector.load %arg5[%c0_15, %c0_16] : memref<32x32xf32, #tpu.memory_space<vmem>>, vector<32x32xf32>
    %c0_17 = arith.constant 0 : index
    %c0_18 = arith.constant 0 : index
    %32 = vector.load %arg8[%c0_17, %c0_18] : memref<1x32xf32, #tpu.memory_space<vmem>>, vector<1x32xf32>
    %cst_19 = arith.constant dense<0.000000e+00> : vector<8x32xf32>
    %33 = tpu.matmul %25, %31, %cst_19 {dimension_numbers = #tpu.dot_dimension_numbers<[1], [0], [0], [1], [0, 0, 1, 1], [], []>, precision = #tpu.contract_precision<fp32>} : vector<8x32xf32>, vector<32x32xf32>, vector<8x32xf32> -> vector<8x32xf32>
    %34 = vector.broadcast %32 : vector<1x32xf32> to vector<8x32xf32>
    %35 = arith.addf %33, %34 : vector<8x32xf32>
    %c0_20 = arith.constant 0 : index
    %c0_21 = arith.constant 0 : index
    %36 = vector.load %arg6[%c0_20, %c0_21] : memref<32x32xf32, #tpu.memory_space<vmem>>, vector<32x32xf32>
    %c0_22 = arith.constant 0 : index
    %c0_23 = arith.constant 0 : index
    %37 = vector.load %arg9[%c0_22, %c0_23] : memref<1x32xf32, #tpu.memory_space<vmem>>, vector<1x32xf32>
    %cst_24 = arith.constant dense<0.000000e+00> : vector<8x32xf32>
    %38 = tpu.matmul %25, %36, %cst_24 {dimension_numbers = #tpu.dot_dimension_numbers<[1], [0], [0], [1], [0, 0, 1, 1], [], []>, precision = #tpu.contract_precision<fp32>} : vector<8x32xf32>, vector<32x32xf32>, vector<8x32xf32> -> vector<8x32xf32>
    %39 = vector.broadcast %37 : vector<1x32xf32> to vector<8x32xf32>
    %40 = arith.addf %38, %39 : vector<8x32xf32>
    %41 = vector.extract_strided_slice %30 {offsets = [0, 0], sizes = [8, 8], strides = [1, 1]} : vector<8x32xf32> to vector<8x8xf32>
    %42 = vector.shape_cast %41 : vector<8x8xf32> to vector<1x1x8x8xf32>
    %43 = vector.extract_strided_slice %30 {offsets = [0, 8], sizes = [8, 8], strides = [1, 1]} : vector<8x32xf32> to vector<8x8xf32>
    %44 = vector.shape_cast %43 : vector<8x8xf32> to vector<1x1x8x8xf32>
    %45 = vector.extract_strided_slice %30 {offsets = [0, 16], sizes = [8, 8], strides = [1, 1]} : vector<8x32xf32> to vector<8x8xf32>
    %46 = vector.shape_cast %45 : vector<8x8xf32> to vector<1x1x8x8xf32>
    %47 = vector.extract_strided_slice %30 {offsets = [0, 24], sizes = [8, 8], strides = [1, 1]} : vector<8x32xf32> to vector<8x8xf32>
    %48 = vector.shape_cast %47 : vector<8x8xf32> to vector<1x1x8x8xf32>
    %49 = tpu.concatenate %42, %44, %46, %48 in 1 : vector<1x1x8x8xf32>, vector<1x1x8x8xf32>, vector<1x1x8x8xf32>, vector<1x1x8x8xf32> -> vector<1x4x8x8xf32>
    %50 = vector.shape_cast %49 : vector<1x4x8x8xf32> to vector<4x8x8xf32>
    %51 = vector.extract_strided_slice %35 {offsets = [0, 0], sizes = [8, 8], strides = [1, 1]} : vector<8x32xf32> to vector<8x8xf32>
    %52 = vector.shape_cast %51 : vector<8x8xf32> to vector<1x1x8x8xf32>
    %53 = vector.extract_strided_slice %35 {offsets = [0, 8], sizes = [8, 8], strides = [1, 1]} : vector<8x32xf32> to vector<8x8xf32>
    %54 = vector.shape_cast %53 : vector<8x8xf32> to vector<1x1x8x8xf32>
    %55 = vector.extract_strided_slice %35 {offsets = [0, 16], sizes = [8, 8], strides = [1, 1]} : vector<8x32xf32> to vector<8x8xf32>
    %56 = vector.shape_cast %55 : vector<8x8xf32> to vector<1x1x8x8xf32>
    %57 = vector.extract_strided_slice %35 {offsets = [0, 24], sizes = [8, 8], strides = [1, 1]} : vector<8x32xf32> to vector<8x8xf32>
    %58 = vector.shape_cast %57 : vector<8x8xf32> to vector<1x1x8x8xf32>
    %59 = tpu.concatenate %52, %54, %56, %58 in 1 : vector<1x1x8x8xf32>, vector<1x1x8x8xf32>, vector<1x1x8x8xf32>, vector<1x1x8x8xf32> -> vector<1x4x8x8xf32>
    %60 = vector.shape_cast %59 : vector<1x4x8x8xf32> to vector<4x8x8xf32>
    %61 = vector.extract_strided_slice %40 {offsets = [0, 0], sizes = [8, 8], strides = [1, 1]} : vector<8x32xf32> to vector<8x8xf32>
    %62 = vector.shape_cast %61 : vector<8x8xf32> to vector<1x1x8x8xf32>
    %63 = vector.extract_strided_slice %40 {offsets = [0, 8], sizes = [8, 8], strides = [1, 1]} : vector<8x32xf32> to vector<8x8xf32>
    %64 = vector.shape_cast %63 : vector<8x8xf32> to vector<1x1x8x8xf32>
    %65 = vector.extract_strided_slice %40 {offsets = [0, 16], sizes = [8, 8], strides = [1, 1]} : vector<8x32xf32> to vector<8x8xf32>
    %66 = vector.shape_cast %65 : vector<8x8xf32> to vector<1x1x8x8xf32>
    %67 = vector.extract_strided_slice %40 {offsets = [0, 24], sizes = [8, 8], strides = [1, 1]} : vector<8x32xf32> to vector<8x8xf32>
    %68 = vector.shape_cast %67 : vector<8x8xf32> to vector<1x1x8x8xf32>
    %69 = tpu.concatenate %62, %64, %66, %68 in 1 : vector<1x1x8x8xf32>, vector<1x1x8x8xf32>, vector<1x1x8x8xf32>, vector<1x1x8x8xf32> -> vector<1x4x8x8xf32>
    %70 = vector.shape_cast %69 : vector<1x4x8x8xf32> to vector<4x8x8xf32>
    "tpu.trace_start"() <{level = 10 : i32, message = "bqd,bkd->bqk"}> : () -> ()
    %cst_25 = arith.constant dense<0.000000e+00> : vector<4x8x8xf32>
    %71 = tpu.matmul %50, %60, %cst_25 {dimension_numbers = #tpu.dot_dimension_numbers<[2], [2], [1], [1], [0, 0, 0, 1, 1, 1], [0], [0]>, precision = #tpu.contract_precision<fp32>} : vector<4x8x8xf32>, vector<4x8x8xf32>, vector<4x8x8xf32> -> vector<4x8x8xf32>
    "tpu.trace_stop"() : () -> ()
    %cst_26 = arith.constant dense<0xFF800000> : vector<4x8xf32>
    %72 = vector.multi_reduction <maximumf>, %71, %cst_26 [2] : vector<4x8x8xf32> to vector<4x8xf32>
    %73 = vector.shape_cast %72 : vector<4x8xf32> to vector<4x8x1xf32>
    %74 = vector.broadcast %73 : vector<4x8x1xf32> to vector<4x8x8xf32>
    %75 = arith.subf %71, %74 : vector<4x8x8xf32>
    %76 = math.exp %75 : vector<4x8x8xf32>
    %cst_27 = arith.constant dense<0.000000e+00> : vector<4x8xf32>
    %77 = vector.multi_reduction <add>, %76, %cst_27 [2] : vector<4x8x8xf32> to vector<4x8xf32>
    %78 = vector.shape_cast %77 : vector<4x8xf32> to vector<4x8x1xf32>
    "tpu.trace_start"() <{level = 10 : i32, message = "bqk,bkd->bqd"}> : () -> ()
    %cst_28 = arith.constant dense<0.000000e+00> : vector<4x8x8xf32>
    %79 = tpu.matmul %76, %70, %cst_28 {dimension_numbers = #tpu.dot_dimension_numbers<[2], [1], [1], [2], [0, 0, 0, 1, 1, 2], [0], [0]>, precision = #tpu.contract_precision<fp32>} : vector<4x8x8xf32>, vector<4x8x8xf32>, vector<4x8x8xf32> -> vector<4x8x8xf32>
    "tpu.trace_stop"() : () -> ()
    %80 = tpu.reciprocal %78 : vector<4x8x1xf32> -> vector<4x8x1xf32>
    %81 = vector.broadcast %80 : vector<4x8x1xf32> to vector<4x8x8xf32>
    %82 = arith.mulf %79, %81 : vector<4x8x8xf32>
    %83 = vector.shape_cast %82 : vector<4x8x8xf32> to vector<1x4x8x8xf32>
    %84 = vector.extract_strided_slice %83 {offsets = [0, 0, 0, 0], sizes = [1, 1, 8, 8], strides = [1, 1, 1, 1]} : vector<1x4x8x8xf32> to vector<1x1x8x8xf32>
    %85 = vector.shape_cast %84 : vector<1x1x8x8xf32> to vector<1x8x8xf32>
    %86 = vector.extract_strided_slice %83 {offsets = [0, 1, 0, 0], sizes = [1, 1, 8, 8], strides = [1, 1, 1, 1]} : vector<1x4x8x8xf32> to vector<1x1x8x8xf32>
    %87 = vector.shape_cast %86 : vector<1x1x8x8xf32> to vector<1x8x8xf32>
    %88 = vector.extract_strided_slice %83 {offsets = [0, 2, 0, 0], sizes = [1, 1, 8, 8], strides = [1, 1, 1, 1]} : vector<1x4x8x8xf32> to vector<1x1x8x8xf32>
    %89 = vector.shape_cast %88 : vector<1x1x8x8xf32> to vector<1x8x8xf32>
    %90 = vector.extract_strided_slice %83 {offsets = [0, 3, 0, 0], sizes = [1, 1, 8, 8], strides = [1, 1, 1, 1]} : vector<1x4x8x8xf32> to vector<1x1x8x8xf32>
    %91 = vector.shape_cast %90 : vector<1x1x8x8xf32> to vector<1x8x8xf32>
    %92 = tpu.concatenate %85, %87, %89, %91 in 2 : vector<1x8x8xf32>, vector<1x8x8xf32>, vector<1x8x8xf32>, vector<1x8x8xf32> -> vector<1x8x32xf32>
    %93 = vector.shape_cast %92 : vector<1x8x32xf32> to vector<8x32xf32>
    %c0_29 = arith.constant 0 : index
    %c0_30 = arith.constant 0 : index
    %94 = vector.load %arg10[%c0_29, %c0_30] : memref<32x32xf32, #tpu.memory_space<vmem>>, vector<32x32xf32>
    %c0_31 = arith.constant 0 : index
    %c0_32 = arith.constant 0 : index
    %95 = vector.load %arg11[%c0_31, %c0_32] : memref<1x32xf32, #tpu.memory_space<vmem>>, vector<1x32xf32>
    %cst_33 = arith.constant dense<0.000000e+00> : vector<8x32xf32>
    %96 = tpu.matmul %93, %94, %cst_33 {dimension_numbers = #tpu.dot_dimension_numbers<[1], [0], [0], [1], [0, 0, 1, 1], [], []>, precision = #tpu.contract_precision<fp32>} : vector<8x32xf32>, vector<32x32xf32>, vector<8x32xf32> -> vector<8x32xf32>
    %97 = vector.broadcast %95 : vector<1x32xf32> to vector<8x32xf32>
    %98 = arith.addf %96, %97 : vector<8x32xf32>
    %99 = arith.addf %1, %98 : vector<8x32xf32>
    %c0_34 = arith.constant 0 : index
    %c0_35 = arith.constant 0 : index
    %100 = vector.load %arg12[%c0_34, %c0_35] : memref<1x32xf32, #tpu.memory_space<vmem>>, vector<1x32xf32>
    %c0_36 = arith.constant 0 : index
    %c0_37 = arith.constant 0 : index
    %101 = vector.load %arg13[%c0_36, %c0_37] : memref<1x32xf32, #tpu.memory_space<vmem>>, vector<1x32xf32>
    %cst_38 = arith.constant dense<0.000000e+00> : vector<8xf32>
    %102 = vector.multi_reduction <add>, %99, %cst_38 [1] : vector<8x32xf32> to vector<8xf32>
    %103 = vector.shape_cast %102 : vector<8xf32> to vector<8x1xf32>
    %cst_39 = arith.constant 3.200000e+01 : f32
    %104 = vector.broadcast %cst_39 : f32 to vector<8x1xf32>
    %105 = arith.divf %103, %104 : vector<8x1xf32>
    %106 = vector.broadcast %105 : vector<8x1xf32> to vector<8x32xf32>
    %107 = arith.subf %99, %106 : vector<8x32xf32>
    %108 = arith.mulf %107, %107 : vector<8x32xf32>
    %cst_40 = arith.constant dense<0.000000e+00> : vector<8xf32>
    %109 = vector.multi_reduction <add>, %108, %cst_40 [1] : vector<8x32xf32> to vector<8xf32>
    %110 = vector.shape_cast %109 : vector<8xf32> to vector<8x1xf32>
    %cst_41 = arith.constant 3.200000e+01 : f32
    %111 = vector.broadcast %cst_41 : f32 to vector<8x1xf32>
    %112 = arith.divf %110, %111 : vector<8x1xf32>
    %113 = vector.broadcast %105 : vector<8x1xf32> to vector<8x32xf32>
    %114 = arith.subf %99, %113 : vector<8x32xf32>
    %cst_42 = arith.constant 9.99999974E-6 : f32
    %115 = vector.broadcast %cst_42 : f32 to vector<8x1xf32>
    %116 = arith.addf %112, %115 : vector<8x1xf32>
    %117 = math.rsqrt %116 : vector<8x1xf32>
    %118 = vector.broadcast %117 : vector<8x1xf32> to vector<8x32xf32>
    %119 = arith.mulf %114, %118 : vector<8x32xf32>
    %120 = vector.broadcast %100 : vector<1x32xf32> to vector<8x32xf32>
    %121 = arith.mulf %119, %120 : vector<8x32xf32>
    %122 = vector.broadcast %101 : vector<1x32xf32> to vector<8x32xf32>
    %123 = arith.addf %121, %122 : vector<8x32xf32>
    %c0_43 = arith.constant 0 : index
    %c0_44 = arith.constant 0 : index
    %124 = vector.load %arg14[%c0_43, %c0_44] : memref<32x64xf32, #tpu.memory_space<vmem>>, vector<32x64xf32>
    %c0_45 = arith.constant 0 : index
    %c0_46 = arith.constant 0 : index
    %125 = vector.load %arg15[%c0_45, %c0_46] : memref<1x64xf32, #tpu.memory_space<vmem>>, vector<1x64xf32>
    %cst_47 = arith.constant dense<0.000000e+00> : vector<8x64xf32>
    %126 = tpu.matmul %123, %124, %cst_47 {dimension_numbers = #tpu.dot_dimension_numbers<[1], [0], [0], [1], [0, 0, 1, 1], [], []>, precision = #tpu.contract_precision<fp32>} : vector<8x32xf32>, vector<32x64xf32>, vector<8x64xf32> -> vector<8x64xf32>
    %127 = vector.broadcast %125 : vector<1x64xf32> to vector<8x64xf32>
    %128 = arith.addf %126, %127 : vector<8x64xf32>
    %cst_48 = arith.constant 5.000000e-01 : f32
    %129 = vector.broadcast %cst_48 : f32 to vector<8x64xf32>
    %130 = arith.mulf %129, %128 : vector<8x64xf32>
    %cst_49 = arith.constant 0.707106769 : f32
    %131 = vector.broadcast %cst_49 : f32 to vector<8x64xf32>
    %132 = arith.mulf %128, %131 : vector<8x64xf32>
    %133 = math.absf %132 : vector<8x64xf32>
    %cst_50 = arith.constant 0.327591091 : f32
    %134 = vector.broadcast %cst_50 : f32 to vector<8x64xf32>
    %135 = arith.mulf %134, %133 : vector<8x64xf32>
    %cst_51 = arith.constant 1.000000e+00 : f32
    %136 = vector.broadcast %cst_51 : f32 to vector<8x64xf32>
    %137 = arith.addf %136, %135 : vector<8x64xf32>
    %cst_52 = arith.constant 1.000000e+00 : f32
    %138 = vector.broadcast %cst_52 : f32 to vector<8x64xf32>
    %139 = arith.divf %138, %137 : vector<8x64xf32>
    %cst_53 = arith.constant 1.06140542 : f32
    %140 = vector.broadcast %cst_53 : f32 to vector<8x64xf32>
    %141 = arith.mulf %140, %139 : vector<8x64xf32>
    %cst_54 = arith.constant -1.45315206 : f32
    %142 = vector.broadcast %cst_54 : f32 to vector<8x64xf32>
    %143 = arith.addf %141, %142 : vector<8x64xf32>
    %144 = arith.mulf %143, %139 : vector<8x64xf32>
    %cst_55 = arith.constant 1.42141378 : f32
    %145 = vector.broadcast %cst_55 : f32 to vector<8x64xf32>
    %146 = arith.addf %144, %145 : vector<8x64xf32>
    %147 = arith.mulf %146, %139 : vector<8x64xf32>
    %cst_56 = arith.constant -0.284496725 : f32
    %148 = vector.broadcast %cst_56 : f32 to vector<8x64xf32>
    %149 = arith.addf %147, %148 : vector<8x64xf32>
    %150 = arith.mulf %149, %139 : vector<8x64xf32>
    %cst_57 = arith.constant 0.254829586 : f32
    %151 = vector.broadcast %cst_57 : f32 to vector<8x64xf32>
    %152 = arith.addf %150, %151 : vector<8x64xf32>
    %153 = arith.mulf %152, %139 : vector<8x64xf32>
    %154 = arith.mulf %133, %133 : vector<8x64xf32>
    %cst_58 = arith.constant 0.000000e+00 : f32
    %155 = vector.broadcast %cst_58 : f32 to vector<8x64xf32>
    %156 = arith.subf %155, %154 : vector<8x64xf32>
    %157 = math.exp %156 : vector<8x64xf32>
    %158 = arith.mulf %153, %157 : vector<8x64xf32>
    %cst_59 = arith.constant 1.000000e+00 : f32
    %159 = vector.broadcast %cst_59 : f32 to vector<8x64xf32>
    %160 = arith.subf %159, %158 : vector<8x64xf32>
    %cst_60 = arith.constant 0.000000e+00 : f32
    %161 = vector.broadcast %cst_60 : f32 to vector<8x64xf32>
    %162 = arith.cmpf olt, %132, %161 : vector<8x64xf32>
    %cst_61 = arith.constant 0.000000e+00 : f32
    %163 = vector.broadcast %cst_61 : f32 to vector<8x64xf32>
    %164 = arith.subf %163, %160 : vector<8x64xf32>
    %165 = arith.select %162, %164, %160 : vector<8x64xi1>, vector<8x64xf32>
    %cst_62 = arith.constant 1.000000e+00 : f32
    %166 = vector.broadcast %cst_62 : f32 to vector<8x64xf32>
    %167 = arith.addf %166, %165 : vector<8x64xf32>
    %168 = arith.mulf %130, %167 : vector<8x64xf32>
    %c0_63 = arith.constant 0 : index
    %c0_64 = arith.constant 0 : index
    %169 = vector.load %arg16[%c0_63, %c0_64] : memref<64x32xf32, #tpu.memory_space<vmem>>, vector<64x32xf32>
    %c0_65 = arith.constant 0 : index
    %c0_66 = arith.constant 0 : index
    %170 = vector.load %arg17[%c0_65, %c0_66] : memref<1x32xf32, #tpu.memory_space<vmem>>, vector<1x32xf32>
    %cst_67 = arith.constant dense<0.000000e+00> : vector<8x32xf32>
    %171 = tpu.matmul %168, %169, %cst_67 {dimension_numbers = #tpu.dot_dimension_numbers<[1], [0], [0], [1], [0, 0, 1, 1], [], []>, precision = #tpu.contract_precision<fp32>} : vector<8x64xf32>, vector<64x32xf32>, vector<8x32xf32> -> vector<8x32xf32>
    %172 = vector.broadcast %170 : vector<1x32xf32> to vector<8x32xf32>
    %173 = arith.addf %171, %172 : vector<8x32xf32>
    %174 = arith.addf %99, %173 : vector<8x32xf32>
    %175 = vector.shape_cast %174 : vector<8x32xf32> to vector<1x8x32xf32>
    %c0_68 = arith.constant 0 : index
    %c0_69 = arith.constant 0 : index
    %c0_70 = arith.constant 0 : index
    %176 = vector.load %arg18[%c0_68, %c0_69, %c0_70] : memref<1x8x32xf32, #tpu.memory_space<vmem>>, vector<1x8x32xf32>
    tpu.vector_store %arg18[%c0_68, %c0_69, %c0_70], %175 {strides = array<i32>} : memref<1x8x32xf32, #tpu.memory_space<vmem>>, vector<1x8x32xf32>,
    return
  }
  func.func @transform_0(%arg0: i32) -> (i32, i32, i32) {
    %c0_i32 = arith.constant 0 : i32
    %c0_i32_0 = arith.constant 0 : i32
    %c0_i32_1 = arith.constant 0 : i32
    return %arg0, %c0_i32, %c0_i32_0 : i32, i32, i32
  }
  func.func @transform_1(%arg0: i32) -> (i32, i32) {
    %c0_i32 = arith.constant 0 : i32
    %c0_i32_0 = arith.constant 0 : i32
    %c0_i32_1 = arith.constant 0 : i32
    return %c0_i32, %c0_i32_0 : i32, i32
  }
  func.func @transform_2(%arg0: i32) -> (i32, i32) {
    %c0_i32 = arith.constant 0 : i32
    %c0_i32_0 = arith.constant 0 : i32
    %c0_i32_1 = arith.constant 0 : i32
    return %c0_i32, %c0_i32_0 : i32, i32
  }
  func.func @transform_3(%arg0: i32) -> (i32, i32) {
    %c0_i32 = arith.constant 0 : i32
    %c0_i32_0 = arith.constant 0 : i32
    %c0_i32_1 = arith.constant 0 : i32
    return %c0_i32, %c0_i32_0 : i32, i32
  }
  func.func @transform_4(%arg0: i32) -> (i32, i32) {
    %c0_i32 = arith.constant 0 : i32
    %c0_i32_0 = arith.constant 0 : i32
    %c0_i32_1 = arith.constant 0 : i32
    return %c0_i32, %c0_i32_0 : i32, i32
  }
  func.func @transform_5(%arg0: i32) -> (i32, i32) {
    %c0_i32 = arith.constant 0 : i32
    %c0_i32_0 = arith.constant 0 : i32
    %c0_i32_1 = arith.constant 0 : i32
    return %c0_i32, %c0_i32_0 : i32, i32
  }
  func.func @transform_6(%arg0: i32) -> (i32, i32) {
    %c0_i32 = arith.constant 0 : i32
    %c0_i32_0 = arith.constant 0 : i32
    %c0_i32_1 = arith.constant 0 : i32
    return %c0_i32, %c0_i32_0 : i32, i32
  }
  func.func @transform_7(%arg0: i32) -> (i32, i32) {
    %c0_i32 = arith.constant 0 : i32
    %c0_i32_0 = arith.constant 0 : i32
    %c0_i32_1 = arith.constant 0 : i32
    return %c0_i32, %c0_i32_0 : i32, i32
  }
  func.func @transform_8(%arg0: i32) -> (i32, i32) {
    %c0_i32 = arith.constant 0 : i32
    %c0_i32_0 = arith.constant 0 : i32
    %c0_i32_1 = arith.constant 0 : i32
    return %c0_i32, %c0_i32_0 : i32, i32
  }
  func.func @transform_9(%arg0: i32) -> (i32, i32) {
    %c0_i32 = arith.constant 0 : i32
    %c0_i32_0 = arith.constant 0 : i32
    %c0_i32_1 = arith.constant 0 : i32
    return %c0_i32, %c0_i32_0 : i32, i32
  }
  func.func @transform_10(%arg0: i32) -> (i32, i32) {
    %c0_i32 = arith.constant 0 : i32
    %c0_i32_0 = arith.constant 0 : i32
    %c0_i32_1 = arith.constant 0 : i32
    return %c0_i32, %c0_i32_0 : i32, i32
  }
  func.func @transform_11(%arg0: i32) -> (i32, i32) {
    %c0_i32 = arith.constant 0 : i32
    %c0_i32_0 = arith.constant 0 : i32
    %c0_i32_1 = arith.constant 0 : i32
    return %c0_i32, %c0_i32_0 : i32, i32
  }
  func.func @transform_12(%arg0: i32) -> (i32, i32) {
    %c0_i32 = arith.constant 0 : i32
    %c0_i32_0 = arith.constant 0 : i32
    %c0_i32_1 = arith.constant 0 : i32
    return %c0_i32, %c0_i32_0 : i32, i32
  }
  func.func @transform_13(%arg0: i32) -> (i32, i32) {
    %c0_i32 = arith.constant 0 : i32
    %c0_i32_0 = arith.constant 0 : i32
    %c0_i32_1 = arith.constant 0 : i32
    return %c0_i32, %c0_i32_0 : i32, i32
  }
  func.func @transform_14(%arg0: i32) -> (i32, i32) {
    %c0_i32 = arith.constant 0 : i32
    %c0_i32_0 = arith.constant 0 : i32
    %c0_i32_1 = arith.constant 0 : i32
    return %c0_i32, %c0_i32_0 : i32, i32
  }
  func.func @transform_15(%arg0: i32) -> (i32, i32) {
    %c0_i32 = arith.constant 0 : i32
    %c0_i32_0 = arith.constant 0 : i32
    %c0_i32_1 = arith.constant 0 : i32
    return %c0_i32, %c0_i32_0 : i32, i32
  }
  func.func @transform_16(%arg0: i32) -> (i32, i32) {
    %c0_i32 = arith.constant 0 : i32
    %c0_i32_0 = arith.constant 0 : i32
    %c0_i32_1 = arith.constant 0 : i32
    return %c0_i32, %c0_i32_0 : i32, i32
  }
  func.func @transform_17(%arg0: i32) -> (i32, i32, i32) {
    %c0_i32 = arith.constant 0 : i32
    %c0_i32_0 = arith.constant 0 : i32
    %c0_i32_1 = arith.constant 0 : i32
    return %arg0, %c0_i32, %c0_i32_0 : i32, i32, i32
  }
}

</mosaic_0001>

<llo_original>
// kernel: tpu_custom_call.1
$region0: #{tpu_custom_call.1}
  #allocation0 [shape = 'u32[]', space=smem, size = 0x4, offset = 0x4, fixed_abs, tag = 'smem constant byte address 0x4 - core index']
  #allocation1 [shape = 'u32[72,128]{1,0:T(1,128)}', space=vmem, size = 0x9000, scoped, tag = 'internal scratch']
  %s0 = inlined_call_operand.hbm [shape: f32[2,8,32], index: 0, kind: input, shape index: {}]
  %s1 = inlined_call_operand.hbm [shape: f32[1,32], index: 1, kind: input, shape index: {}]
  %s2 = inlined_call_operand.vmem [shape: f32[1,32], index: 2, kind: input, shape index: {}]
  %s3 = inlined_call_operand.vmem [shape: f32[32,32], index: 3, kind: input, shape index: {}]
  %s4 = inlined_call_operand.vmem [shape: f32[32,32], index: 4, kind: input, shape index: {}]
  %s5 = inlined_call_operand.vmem [shape: f32[32,32], index: 5, kind: input, shape index: {}]
  %s6 = inlined_call_operand.vmem [shape: f32[1,32], index: 6, kind: input, shape index: {}]
  %s7 = inlined_call_operand.vmem [shape: f32[1,32], index: 7, kind: input, shape index: {}]
  %s8 = inlined_call_operand.vmem [shape: f32[1,32], index: 8, kind: input, shape index: {}]
  %s9 = inlined_call_operand.hbm [shape: f32[32,32], index: 9, kind: input, shape index: {}]
  %s10 = inlined_call_operand.vmem [shape: f32[1,32], index: 10, kind: input, shape index: {}]
  %s11 = inlined_call_operand.vmem [shape: f32[1,32], index: 11, kind: input, shape index: {}]
  %s12 = inlined_call_operand.vmem [shape: f32[1,32], index: 12, kind: input, shape index: {}]
  %s13 = inlined_call_operand.hbm [shape: f32[32,64], index: 13, kind: input, shape index: {}]
  %s14 = inlined_call_operand.vmem [shape: f32[1,64], index: 14, kind: input, shape index: {}]
  %s15 = inlined_call_operand.vmem [shape: f32[64,32], index: 15, kind: input, shape index: {}]
  %s16 = inlined_call_operand.vmem [shape: f32[1,32], index: 16, kind: input, shape index: {}]
  %s17 = inlined_call_operand.hbm [shape: f32[2,8,32], index: 17, kind: output, shape index: {}]
  %s18 = sld [smem:[#allocation0]]
  $region117: #{tpu_custom_call.1} parent=0
    _
  %s20 = ssub.s32 1, %s18
  %s21 = scalar_select 0, %s20, %s18
  $region1: #{tpu_custom_call.1} parent=0
    #allocation2 [shape = 'u8[8192]{0}', space=vmem, size = 0x2000, scoped, tag = 'input window, operand 0']
    #allocation3 [shape = 's32[2]{0}', space=sflag, size = 0x8, scoped, tag = 'scoped memory for tpu_custom_call.1']
    #allocation4 [shape = 's32[2]{0}', space=sflag, size = 0x8, scoped, tag = 'scoped memory for tpu_custom_call.1']
    #allocation5 [shape = 'u8[512]{0}', space=vmem, size = 0x400, scoped, tag = 'input window, operand 1, single buffered']
    #allocation6 [shape = 's32[1]{0}', space=sflag, size = 0x4, scoped, tag = 'scoped memory for tpu_custom_call.1']
    #allocation7 [shape = 'u8[16384]{0}', space=vmem, size = 0x4000, scoped, tag = 'input window, operand 9, single buffered']
    #allocation8 [shape = 'u8[16384]{0}', space=vmem, size = 0x4000, scoped, tag = 'input window, operand 13, single buffered']
    #allocation9 [shape = 's32[1]{0}', space=sflag, size = 0x4, scoped, tag = 'scoped memory for tpu_custom_call.1']
    #allocation10 [shape = 'u8[8192]{0}', space=vmem, size = 0x2000, scoped, tag = 'output window, operand 0']
    %22 = vsyncpa [#allocation3], 0
    %s23 = scalar_lea.sflag [#allocation3], 1
    %24 = vsyncpa %s23, 0
    %25 = vsyncpa [#allocation6], 0
    %26 = vsyncpa [#allocation9], 0
    %27 = vsyncpa [#allocation4], 0
    %s28 = scalar_lea.sflag [#allocation4], 1
    %29 = vsyncpa %s28, 0
    loop: start=0, step=1, limit=4
    $region2: #{tpu_custom_call.1} parent=1 // loop_pre_header
      _
    $region3: #{tpu_custom_call.1} parent=1 // loop_header
      %s31 = sphi 0, %s35
      %p32 = scmp.ge.s32.totalorder %s31, 4
      %s41 = sphi 0, %s43
      %s44 = sphi 0, %s41
      %s45 = sphi 0, %s44
      %s61 = sphi 0, %s45
      %s65 = sphi 0, %s65
      %s67 = sphi 0, %s65
      %s68 = sphi 0, %s67
      %s82 = sphi 0, %s68
      %s86 = sphi 0, %s86
      %s88 = sphi 0, %s86
      %s89 = sphi 0, %s88
      %s103 = sphi 0, %s89
      %s107 = sphi 0, %s107
      %s109 = sphi 0, %s107
      %s110 = sphi 0, %s109
      %s124 = sphi 0, %s110
      %s128 = sphi 0, %s128
      %s130 = sphi 0, %s128
      %s131 = sphi 0, %s130
      %s145 = sphi 0, %s131
      %s149 = sphi 0, %s149
      %s151 = sphi 0, %s149
      %s152 = sphi 0, %s151
      %s166 = sphi 0, %s152
      %s170 = sphi 0, %s170
      %s172 = sphi 0, %s170
      %s173 = sphi 0, %s172
      %s187 = sphi 0, %s173
      %s191 = sphi 0, %s191
      %s193 = sphi 0, %s191
      %s194 = sphi 0, %s193
      %s208 = sphi 0, %s194
      %s212 = sphi 0, %s212
      %s214 = sphi 0, %s212
      %s215 = sphi 0, %s214
      %s229 = sphi 0, %s215
      %s233 = sphi 0, %s233
      %s235 = sphi 0, %s233
      %s236 = sphi 0, %s235
      %s250 = sphi 0, %s236
      %s254 = sphi 0, %s254
      %s256 = sphi 0, %s254
      %s257 = sphi 0, %s256
      %s271 = sphi 0, %s257
      %s275 = sphi 0, %s275
      %s277 = sphi 0, %s275
      %s278 = sphi 0, %s277
      %s292 = sphi 0, %s278
      %s296 = sphi 0, %s296
      %s298 = sphi 0, %s296
      %s299 = sphi 0, %s298
      %s313 = sphi 0, %s299
      %s317 = sphi 0, %s317
      %s319 = sphi 0, %s317
      %s320 = sphi 0, %s319
      %s334 = sphi 0, %s320
      %s338 = sphi 0, %s338
      %s340 = sphi 0, %s338
      %s341 = sphi 0, %s340
      %s355 = sphi 0, %s341
      %s359 = sphi 0, %s359
      %s361 = sphi 0, %s359
      %s362 = sphi 0, %s361
      %s376 = sphi 0, %s362
      %s380 = sphi 0, %s380
      %s382 = sphi 0, %s380
      %s383 = sphi 0, %s382
      %s397 = sphi 0, %s383
      %s403 = sphi 0, %s405
      %s406 = sphi 0, %s403
      %s407 = sphi 0, %s406
      %s423 = sphi 0, %s407
    $region4: #{tpu_custom_call.1} parent=1 // loop_header_branch
      %34 = sbr.rel (%p32) target = $region8
    $region5: #{tpu_custom_call.1} parent=1 // loop_body
      %s36 = ssub.s32 %s31, 1
      %s37 = ssub.s32 %s31, 2
      %s38 = sadd.s32 %s31, 1
      %s39 = ssub.s32 %s31, %s38
      %p40 = scmp.eq.s32.totalorder %s39, 0
      %s42 = sadd.s32 %s41, 1
      %s43 = scalar_select %p40, %s41, %s42
      %p46 = pneg %p40
      %p47 = scmp.eq.s32.totalorder %s31, 1
      %p48 = por %p46, %p47
      %p49 = scmp.ne.s32.totalorder %s41, %s44
      %p50 = scmp.eq.s32.totalorder %s31, 0
      %p51 = por %p49, %p50
      %p52 = scmp.ne.s32.totalorder %s41, %s44
      %p53 = scmp.eq.s32.totalorder %s36, 1
      %p54 = por %p52, %p53
      %p55 = scmp.ne.s32.totalorder %s44, %s45
      %p56 = scmp.eq.s32.totalorder %s36, 0
      %p57 = por %p55, %p56
      %p58 = scmp.ne.s32.totalorder %s44, %s45
      %p59 = scmp.eq.s32.totalorder %s37, 1
      %p60 = por %p58, %p59
      %p62 = scmp.ne.s32.totalorder %s45, %s61
      %p63 = scmp.eq.s32.totalorder %s37, 0
      %p64 = por %p62, %p63
      %s66 = sadd.s32 %s65, 1
      %p69 = scmp.eq.s32.totalorder %s31, 1
      %p70 = scmp.ne.s32.totalorder %s65, %s67
      %p71 = scmp.eq.s32.totalorder %s31, 0
      %p72 = por %p70, %p71
      %p73 = scmp.ne.s32.totalorder %s65, %s67
      %p74 = scmp.eq.s32.totalorder %s36, 1
      %p75 = por %p73, %p74
      %p76 = scmp.ne.s32.totalorder %s67, %s68
      %p77 = scmp.eq.s32.totalorder %s36, 0
      %p78 = por %p76, %p77
      %p79 = scmp.ne.s32.totalorder %s67, %s68
      %p80 = scmp.eq.s32.totalorder %s37, 1
      %p81 = por %p79, %p80
      %p83 = scmp.ne.s32.totalorder %s68, %s82
      %p84 = scmp.eq.s32.totalorder %s37, 0
      %p85 = por %p83, %p84
      %s87 = sadd.s32 %s86, 1
      %p90 = scmp.eq.s32.totalorder %s31, 1
      %p91 = scmp.ne.s32.totalorder %s86, %s88
      %p92 = scmp.eq.s32.totalorder %s31, 0
      %p93 = por %p91, %p92
      %p94 = scmp.ne.s32.totalorder %s86, %s88
      %p95 = scmp.eq.s32.totalorder %s36, 1
      %p96 = por %p94, %p95
      %p97 = scmp.ne.s32.totalorder %s88, %s89
      %p98 = scmp.eq.s32.totalorder %s36, 0
      %p99 = por %p97, %p98
      %p100 = scmp.ne.s32.totalorder %s88, %s89
      %p101 = scmp.eq.s32.totalorder %s37, 1
      %p102 = por %p100, %p101
      %p104 = scmp.ne.s32.totalorder %s89, %s103
      %p105 = scmp.eq.s32.totalorder %s37, 0
      %p106 = por %p104, %p105
      %s108 = sadd.s32 %s107, 1
      %p111 = scmp.eq.s32.totalorder %s31, 1
      %p112 = scmp.ne.s32.totalorder %s107, %s109
      %p113 = scmp.eq.s32.totalorder %s31, 0
      %p114 = por %p112, %p113
      %p115 = scmp.ne.s32.totalorder %s107, %s109
      %p116 = scmp.eq.s32.totalorder %s36, 1
      %p117 = por %p115, %p116
      %p118 = scmp.ne.s32.totalorder %s109, %s110
      %p119 = scmp.eq.s32.totalorder %s36, 0
      %p120 = por %p118, %p119
      %p121 = scmp.ne.s32.totalorder %s109, %s110
      %p122 = scmp.eq.s32.totalorder %s37, 1
      %p123 = por %p121, %p122
      %p125 = scmp.ne.s32.totalorder %s110, %s124
      %p126 = scmp.eq.s32.totalorder %s37, 0
      %p127 = por %p125, %p126
      %s129 = sadd.s32 %s128, 1
      %p132 = scmp.eq.s32.totalorder %s31, 1
      %p133 = scmp.ne.s32.totalorder %s128, %s130
      %p134 = scmp.eq.s32.totalorder %s31, 0
      %p135 = por %p133, %p134
      %p136 = scmp.ne.s32.totalorder %s128, %s130
      %p137 = scmp.eq.s32.totalorder %s36, 1
      %p138 = por %p136, %p137
      %p139 = scmp.ne.s32.totalorder %s130, %s131
      %p140 = scmp.eq.s32.totalorder %s36, 0
      %p141 = por %p139, %p140
      %p142 = scmp.ne.s32.totalorder %s130, %s131
      %p143 = scmp.eq.s32.totalorder %s37, 1
      %p144 = por %p142, %p143
      %p146 = scmp.ne.s32.totalorder %s131, %s145
      %p147 = scmp.eq.s32.totalorder %s37, 0
      %p148 = por %p146, %p147
      %s150 = sadd.s32 %s149, 1
      %p153 = scmp.eq.s32.totalorder %s31, 1
      %p154 = scmp.ne.s32.totalorder %s149, %s151
      %p155 = scmp.eq.s32.totalorder %s31, 0
      %p156 = por %p154, %p155
      %p157 = scmp.ne.s32.totalorder %s149, %s151
      %p158 = scmp.eq.s32.totalorder %s36, 1
      %p159 = por %p157, %p158
      %p160 = scmp.ne.s32.totalorder %s151, %s152
      %p161 = scmp.eq.s32.totalorder %s36, 0
      %p162 = por %p160, %p161
      %p163 = scmp.ne.s32.totalorder %s151, %s152
      %p164 = scmp.eq.s32.totalorder %s37, 1
      %p165 = por %p163, %p164
      %p167 = scmp.ne.s32.totalorder %s152, %s166
      %p168 = scmp.eq.s32.totalorder %s37, 0
      %p169 = por %p167, %p168
      %s171 = sadd.s32 %s170, 1
      %p174 = scmp.eq.s32.totalorder %s31, 1
      %p175 = scmp.ne.s32.totalorder %s170, %s172
      %p176 = scmp.eq.s32.totalorder %s31, 0
      %p177 = por %p175, %p176
      %p178 = scmp.ne.s32.totalorder %s170, %s172
      %p179 = scmp.eq.s32.totalorder %s36, 1
      %p180 = por %p178, %p179
      %p181 = scmp.ne.s32.totalorder %s172, %s173
      %p182 = scmp.eq.s32.totalorder %s36, 0
      %p183 = por %p181, %p182
      %p184 = scmp.ne.s32.totalorder %s172, %s173
      %p185 = scmp.eq.s32.totalorder %s37, 1
      %p186 = por %p184, %p185
      %p188 = scmp.ne.s32.totalorder %s173, %s187
      %p189 = scmp.eq.s32.totalorder %s37, 0
      %p190 = por %p188, %p189
      %s192 = sadd.s32 %s191, 1
      %p195 = scmp.eq.s32.totalorder %s31, 1
      %p196 = scmp.ne.s32.totalorder %s191, %s193
      %p197 = scmp.eq.s32.totalorder %s31, 0
      %p198 = por %p196, %p197
      %p199 = scmp.ne.s32.totalorder %s191, %s193
      %p200 = scmp.eq.s32.totalorder %s36, 1
      %p201 = por %p199, %p200
      %p202 = scmp.ne.s32.totalorder %s193, %s194
      %p203 = scmp.eq.s32.totalorder %s36, 0
      %p204 = por %p202, %p203
      %p205 = scmp.ne.s32.totalorder %s193, %s194
      %p206 = scmp.eq.s32.totalorder %s37, 1
      %p207 = por %p205, %p206
      %p209 = scmp.ne.s32.totalorder %s194, %s208
      %p210 = scmp.eq.s32.totalorder %s37, 0
      %p211 = por %p209, %p210
      %s213 = sadd.s32 %s212, 1
      %p216 = scmp.eq.s32.totalorder %s31, 1
      %p217 = scmp.ne.s32.totalorder %s212, %s214
      %p218 = scmp.eq.s32.totalorder %s31, 0
      %p219 = por %p217, %p218
      %p220 = scmp.ne.s32.totalorder %s212, %s214
      %p221 = scmp.eq.s32.totalorder %s36, 1
      %p222 = por %p220, %p221
      %p223 = scmp.ne.s32.totalorder %s214, %s215
      %p224 = scmp.eq.s32.totalorder %s36, 0
      %p225 = por %p223, %p224
      %p226 = scmp.ne.s32.totalorder %s214, %s215
      %p227 = scmp.eq.s32.totalorder %s37, 1
      %p228 = por %p226, %p227
      %p230 = scmp.ne.s32.totalorder %s215, %s229
      %p231 = scmp.eq.s32.totalorder %s37, 0
      %p232 = por %p230, %p231
      %s234 = sadd.s32 %s233, 1
      %p237 = scmp.eq.s32.totalorder %s31, 1
      %p238 = scmp.ne.s32.totalorder %s233, %s235
      %p239 = scmp.eq.s32.totalorder %s31, 0
      %p240 = por %p238, %p239
      %p241 = scmp.ne.s32.totalorder %s233, %s235
      %p242 = scmp.eq.s32.totalorder %s36, 1
      %p243 = por %p241, %p242
      %p244 = scmp.ne.s32.totalorder %s235, %s236
      %p245 = scmp.eq.s32.totalorder %s36, 0
      %p246 = por %p244, %p245
      %p247 = scmp.ne.s32.totalorder %s235, %s236
      %p248 = scmp.eq.s32.totalorder %s37, 1
      %p249 = por %p247, %p248
      %p251 = scmp.ne.s32.totalorder %s236, %s250
      %p252 = scmp.eq.s32.totalorder %s37, 0
      %p253 = por %p251, %p252
      %s255 = sadd.s32 %s254, 1
      %p258 = scmp.eq.s32.totalorder %s31, 1
      %p259 = scmp.ne.s32.totalorder %s254, %s256
      %p260 = scmp.eq.s32.totalorder %s31, 0
      %p261 = por %p259, %p260
      %p262 = scmp.ne.s32.totalorder %s254, %s256
      %p263 = scmp.eq.s32.totalorder %s36, 1
      %p264 = por %p262, %p263
      %p265 = scmp.ne.s32.totalorder %s256, %s257
      %p266 = scmp.eq.s32.totalorder %s36, 0
      %p267 = por %p265, %p266
      %p268 = scmp.ne.s32.totalorder %s256, %s257
      %p269 = scmp.eq.s32.totalorder %s37, 1
      %p270 = por %p268, %p269
      %p272 = scmp.ne.s32.totalorder %s257, %s271
      %p273 = scmp.eq.s32.totalorder %s37, 0
      %p274 = por %p272, %p273
      %s276 = sadd.s32 %s275, 1
      %p279 = scmp.eq.s32.totalorder %s31, 1
      %p280 = scmp.ne.s32.totalorder %s275, %s277
      %p281 = scmp.eq.s32.totalorder %s31, 0
      %p282 = por %p280, %p281
      %p283 = scmp.ne.s32.totalorder %s275, %s277
      %p284 = scmp.eq.s32.totalorder %s36, 1
      %p285 = por %p283, %p284
      %p286 = scmp.ne.s32.totalorder %s277, %s278
      %p287 = scmp.eq.s32.totalorder %s36, 0
      %p288 = por %p286, %p287
      %p289 = scmp.ne.s32.totalorder %s277, %s278
      %p290 = scmp.eq.s32.totalorder %s37, 1
      %p291 = por %p289, %p290
      %p293 = scmp.ne.s32.totalorder %s278, %s292
      %p294 = scmp.eq.s32.totalorder %s37, 0
      %p295 = por %p293, %p294
      %s297 = sadd.s32 %s296, 1
      %p300 = scmp.eq.s32.totalorder %s31, 1
      %p301 = scmp.ne.s32.totalorder %s296, %s298
      %p302 = scmp.eq.s32.totalorder %s31, 0
      %p303 = por %p301, %p302
      %p304 = scmp.ne.s32.totalorder %s296, %s298
      %p305 = scmp.eq.s32.totalorder %s36, 1
      %p306 = por %p304, %p305
      %p307 = scmp.ne.s32.totalorder %s298, %s299
      %p308 = scmp.eq.s32.totalorder %s36, 0
      %p309 = por %p307, %p308
      %p310 = scmp.ne.s32.totalorder %s298, %s299
      %p311 = scmp.eq.s32.totalorder %s37, 1
      %p312 = por %p310, %p311
      %p314 = scmp.ne.s32.totalorder %s299, %s313
      %p315 = scmp.eq.s32.totalorder %s37, 0
      %p316 = por %p314, %p315
      %s318 = sadd.s32 %s317, 1
      %p321 = scmp.eq.s32.totalorder %s31, 1
      %p322 = scmp.ne.s32.totalorder %s317, %s319
      %p323 = scmp.eq.s32.totalorder %s31, 0
      %p324 = por %p322, %p323
      %p325 = scmp.ne.s32.totalorder %s317, %s319
      %p326 = scmp.eq.s32.totalorder %s36, 1
      %p327 = por %p325, %p326
      %p328 = scmp.ne.s32.totalorder %s319, %s320
      %p329 = scmp.eq.s32.totalorder %s36, 0
      %p330 = por %p328, %p329
      %p331 = scmp.ne.s32.totalorder %s319, %s320
      %p332 = scmp.eq.s32.totalorder %s37, 1
      %p333 = por %p331, %p332
      %p335 = scmp.ne.s32.totalorder %s320, %s334
      %p336 = scmp.eq.s32.totalorder %s37, 0
      %p337 = por %p335, %p336
      %s339 = sadd.s32 %s338, 1
      %p342 = scmp.eq.s32.totalorder %s31, 1
      %p343 = scmp.ne.s32.totalorder %s338, %s340
      %p344 = scmp.eq.s32.totalorder %s31, 0
      %p345 = por %p343, %p344
      %p346 = scmp.ne.s32.totalorder %s338, %s340
      %p347 = scmp.eq.s32.totalorder %s36, 1
      %p348 = por %p346, %p347
      %p349 = scmp.ne.s32.totalorder %s340, %s341
      %p350 = scmp.eq.s32.totalorder %s36, 0
      %p351 = por %p349, %p350
      %p352 = scmp.ne.s32.totalorder %s340, %s341
      %p353 = scmp.eq.s32.totalorder %s37, 1
      %p354 = por %p352, %p353
      %p356 = scmp.ne.s32.totalorder %s341, %s355
      %p357 = scmp.eq.s32.totalorder %s37, 0
      %p358 = por %p356, %p357
      %s360 = sadd.s32 %s359, 1
      %p363 = scmp.eq.s32.totalorder %s31, 1
      %p364 = scmp.ne.s32.totalorder %s359, %s361
      %p365 = scmp.eq.s32.totalorder %s31, 0
      %p366 = por %p364, %p365
      %p367 = scmp.ne.s32.totalorder %s359, %s361
      %p368 = scmp.eq.s32.totalorder %s36, 1
      %p369 = por %p367, %p368
      %p370 = scmp.ne.s32.totalorder %s361, %s362
      %p371 = scmp.eq.s32.totalorder %s36, 0
      %p372 = por %p370, %p371
      %p373 = scmp.ne.s32.totalorder %s361, %s362
      %p374 = scmp.eq.s32.totalorder %s37, 1
      %p375 = por %p373, %p374
      %p377 = scmp.ne.s32.totalorder %s362, %s376
      %p378 = scmp.eq.s32.totalorder %s37, 0
      %p379 = por %p377, %p378
      %s381 = sadd.s32 %s380, 1
      %p384 = scmp.eq.s32.totalorder %s31, 1
      %p385 = scmp.ne.s32.totalorder %s380, %s382
      %p386 = scmp.eq.s32.totalorder %s31, 0
      %p387 = por %p385, %p386
      %p388 = scmp.ne.s32.totalorder %s380, %s382
      %p389 = scmp.eq.s32.totalorder %s36, 1
      %p390 = por %p388, %p389
      %p391 = scmp.ne.s32.totalorder %s382, %s383
      %p392 = scmp.eq.s32.totalorder %s36, 0
      %p393 = por %p391, %p392
      %p394 = scmp.ne.s32.totalorder %s382, %s383
      %p395 = scmp.eq.s32.totalorder %s37, 1
      %p396 = por %p394, %p395
      %p398 = scmp.ne.s32.totalorder %s383, %s397
      %p399 = scmp.eq.s32.totalorder %s37, 0
      %p400 = por %p398, %p399
      %s401 = ssub.s32 %s31, %s38
      %p402 = scmp.eq.s32.totalorder %s401, 0
      %s404 = sadd.s32 %s403, 1
      %s405 = scalar_select %p402, %s403, %s404
      %p408 = pneg %p402
      %p409 = scmp.eq.s32.totalorder %s31, 1
      %p410 = por %p408, %p409
      %p411 = scmp.ne.s32.totalorder %s403, %s406
      %p412 = scmp.eq.s32.totalorder %s31, 0
      %p413 = por %p411, %p412
      %p414 = scmp.ne.s32.totalorder %s403, %s406
      %p415 = scmp.eq.s32.totalorder %s36, 1
      %p416 = por %p414, %p415
      %p417 = scmp.ne.s32.totalorder %s406, %s407
      %p418 = scmp.eq.s32.totalorder %s36, 0
      %p419 = por %p417, %p418
      %p420 = scmp.ne.s32.totalorder %s406, %s407
      %p421 = scmp.eq.s32.totalorder %s37, 1
      %p422 = por %p420, %p421
      %p424 = scmp.ne.s32.totalorder %s407, %s423
      %p425 = scmp.eq.s32.totalorder %s37, 0
      %p426 = por %p424, %p425
      %p427 = scmp.le.s32.totalorder 1, %s31
      %p428 = scmp.lt.s32.totalorder %s31, 3
      %p429 = pnand %p427, %p428
      %p430 = pneg %p429
      // Predicated region
      $region9: #{tpu_custom_call.1} parent=5 // pred_check
        _
      $region10: #{tpu_custom_call.1} parent=5 // pred_check_branch
        %432 = sbr.rel (%p429) target = $region12
      $region11: #{tpu_custom_call.1} parent=5 // pred_region
        %s433 = ssub.s32 %s31, 1
        // Predicated region
        $region13: #{tpu_custom_call.1} parent=11 // pred_check
          %p434 = pneg %p78
        $region14: #{tpu_custom_call.1} parent=11 // pred_check_branch
          %436 = sbr.rel (%p434) target = $region16
        $region15: #{tpu_custom_call.1} parent=11 // pred_region
          %438 = vsyncadd [#allocation6], 0
          %s440 = sshll.u32 %s1, 4
          %s441 = int_to_ptr.hbm [resolvable:$true] %s440
          %s442 = sshll.u32 [#allocation5], 4
          %s443 = int_to_ptr.vmem [resolvable:$true] %s442
          %445 = dma.hbm_to_vmem [thread:$0]  %s441, 16, %s443, [#allocation6]
        $region16: #{tpu_custom_call.1} parent=11 // pred_fallthru
          _
        // Predicated region
        $region17: #{tpu_custom_call.1} parent=11 // pred_check
          %p446 = pneg %p99
        $region18: #{tpu_custom_call.1} parent=11 // pred_check_branch
          %448 = sbr.rel (%p446) target = $region20
        $region19: #{tpu_custom_call.1} parent=11 // pred_region
          _
        $region20: #{tpu_custom_call.1} parent=11 // pred_fallthru
          _
        // Predicated region
        $region21: #{tpu_custom_call.1} parent=11 // pred_check
          %p449 = pneg %p120
        $region22: #{tpu_custom_call.1} parent=11 // pred_check_branch
          %451 = sbr.rel (%p449) target = $region24
        $region23: #{tpu_custom_call.1} parent=11 // pred_region
          _
        $region24: #{tpu_custom_call.1} parent=11 // pred_fallthru
          _
        // Predicated region
        $region25: #{tpu_custom_call.1} parent=11 // pred_check
          %p452 = pneg %p141
        $region26: #{tpu_custom_call.1} parent=11 // pred_check_branch
          %454 = sbr.rel (%p452) target = $region28
        $region27: #{tpu_custom_call.1} parent=11 // pred_region
          _
        $region28: #{tpu_custom_call.1} parent=11 // pred_fallthru
          _
        // Predicated region
        $region29: #{tpu_custom_call.1} parent=11 // pred_check
          %p455 = pneg %p162
        $region30: #{tpu_custom_call.1} parent=11 // pred_check_branch
          %457 = sbr.rel (%p455) target = $region32
        $region31: #{tpu_custom_call.1} parent=11 // pred_region
          _
        $region32: #{tpu_custom_call.1} parent=11 // pred_fallthru
          _
        // Predicated region
        $region33: #{tpu_custom_call.1} parent=11 // pred_check
          %p458 = pneg %p183
        $region34: #{tpu_custom_call.1} parent=11 // pred_check_branch
          %460 = sbr.rel (%p458) target = $region36
        $region35: #{tpu_custom_call.1} parent=11 // pred_region
          _
        $region36: #{tpu_custom_call.1} parent=11 // pred_fallthru
          _
        // Predicated region
        $region37: #{tpu_custom_call.1} parent=11 // pred_check
          %p461 = pneg %p204
        $region38: #{tpu_custom_call.1} parent=11 // pred_check_branch
          %463 = sbr.rel (%p461) target = $region40
        $region39: #{tpu_custom_call.1} parent=11 // pred_region
          _
        $region40: #{tpu_custom_call.1} parent=11 // pred_fallthru
          _
        // Predicated region
        $region41: #{tpu_custom_call.1} parent=11 // pred_check
          %p464 = pneg %p225
        $region42: #{tpu_custom_call.1} parent=11 // pred_check_branch
          %466 = sbr.rel (%p464) target = $region44
        $region43: #{tpu_custom_call.1} parent=11 // pred_region
          _
        $region44: #{tpu_custom_call.1} parent=11 // pred_fallthru
          _
        // Predicated region
        $region45: #{tpu_custom_call.1} parent=11 // pred_check
          %p467 = pneg %p246
        $region46: #{tpu_custom_call.1} parent=11 // pred_check_branch
          %469 = sbr.rel (%p467) target = $region48
        $region47: #{tpu_custom_call.1} parent=11 // pred_region
          %471 = vsyncadd [#allocation6], 0
          %s472 = sshll.u32 %s9, 4
          %s473 = int_to_ptr.hbm [resolvable:$true] %s472
          %s474 = sshll.u32 [#allocation7], 4
          %s475 = int_to_ptr.vmem [resolvable:$true] %s474
          %480 = dma.hbm_to_vmem [thread:$0]  %s473, 512, %s475, [#allocation6], 128, 128, 8
        $region48: #{tpu_custom_call.1} parent=11 // pred_fallthru
          _
        // Predicated region
        $region49: #{tpu_custom_call.1} parent=11 // pred_check
          %p481 = pneg %p267
        $region50: #{tpu_custom_call.1} parent=11 // pred_check_branch
          %483 = sbr.rel (%p481) target = $region52
        $region51: #{tpu_custom_call.1} parent=11 // pred_region
          _
        $region52: #{tpu_custom_call.1} parent=11 // pred_fallthru
          _
        // Predicated region
        $region53: #{tpu_custom_call.1} parent=11 // pred_check
          %p484 = pneg %p288
        $region54: #{tpu_custom_call.1} parent=11 // pred_check_branch
          %486 = sbr.rel (%p484) target = $region56
        $region55: #{tpu_custom_call.1} parent=11 // pred_region
          _
        $region56: #{tpu_custom_call.1} parent=11 // pred_fallthru
          _
        // Predicated region
        $region57: #{tpu_custom_call.1} parent=11 // pred_check
          %p487 = pneg %p309
        $region58: #{tpu_custom_call.1} parent=11 // pred_check_branch
          %489 = sbr.rel (%p487) target = $region60
        $region59: #{tpu_custom_call.1} parent=11 // pred_region
          _
        $region60: #{tpu_custom_call.1} parent=11 // pred_fallthru
          _
        // Predicated region
        $region61: #{tpu_custom_call.1} parent=11 // pred_check
          %p490 = pneg %p330
        $region62: #{tpu_custom_call.1} parent=11 // pred_check_branch
          %492 = sbr.rel (%p490) target = $region64
        $region63: #{tpu_custom_call.1} parent=11 // pred_region
          %494 = vsyncadd [#allocation9], 0
          %s495 = sshll.u32 %s13, 4
          %s496 = int_to_ptr.hbm [resolvable:$true] %s495
          %s497 = sshll.u32 [#allocation8], 4
          %s498 = int_to_ptr.vmem [resolvable:$true] %s497
          %503 = dma.hbm_to_vmem [thread:$0]  %s496, 512, %s498, [#allocation9], 128, 128, 8
        $region64: #{tpu_custom_call.1} parent=11 // pred_fallthru
          _
        // Predicated region
        $region65: #{tpu_custom_call.1} parent=11 // pred_check
          %p504 = pneg %p351
        $region66: #{tpu_custom_call.1} parent=11 // pred_check_branch
          %506 = sbr.rel (%p504) target = $region68
        $region67: #{tpu_custom_call.1} parent=11 // pred_region
          _
        $region68: #{tpu_custom_call.1} parent=11 // pred_fallthru
          _
        // Predicated region
        $region69: #{tpu_custom_call.1} parent=11 // pred_check
          %p507 = pneg %p372
        $region70: #{tpu_custom_call.1} parent=11 // pred_check_branch
          %509 = sbr.rel (%p507) target = $region72
        $region71: #{tpu_custom_call.1} parent=11 // pred_region
          _
        $region72: #{tpu_custom_call.1} parent=11 // pred_fallthru
          _
        // Predicated region
        $region73: #{tpu_custom_call.1} parent=11 // pred_check
          %p510 = pneg %p393
        $region74: #{tpu_custom_call.1} parent=11 // pred_check_branch
          %512 = sbr.rel (%p510) target = $region76
        $region75: #{tpu_custom_call.1} parent=11 // pred_region
          _
        $region76: #{tpu_custom_call.1} parent=11 // pred_fallthru
          _
      $region12: #{tpu_custom_call.1} parent=5 // pred_fallthru
        _
      %p513 = scmp.lt.s32.totalorder %s31, 2
      // Predicated region
      $region77: #{tpu_custom_call.1} parent=5 // pred_check
        %p514 = pneg %p513
      $region78: #{tpu_custom_call.1} parent=5 // pred_check_branch
        %516 = sbr.rel (%p514) target = $region80
      $region79: #{tpu_custom_call.1} parent=5 // pred_region
        // Predicated region
        $region81: #{tpu_custom_call.1} parent=79 // pred_check
          %p517 = pneg %p51
        $region82: #{tpu_custom_call.1} parent=79 // pred_check_branch
          %519 = sbr.rel (%p517) target = $region84
        $region83: #{tpu_custom_call.1} parent=79 // pred_region
          %s520 = sand.u32 %s41, 1
          %s521 = scalar_lea.sflag [#allocation3], %s520
          %s522 = sand.u32 %s41, 1
          %s523 = smul.addr %s522, 8
          %s524 = scalar_lea.vmem [#allocation2], %s523
          %526 = vsyncadd %s521, 0
          %s527 = smul.addr %s31, 8
          %s528 = scalar_lea.hbm %s0, %s527
          %s530 = sshll.u32 %s528, 4
          %s531 = int_to_ptr.hbm [resolvable:$true] %s530
          %s532 = sshll.u32 %s524, 4
          %s533 = int_to_ptr.vmem [resolvable:$true] %s532
          %535 = dma.hbm_to_vmem [thread:$0]  %s531, 128, %s533, %s521
        $region84: #{tpu_custom_call.1} parent=79 // pred_fallthru
          _
      $region80: #{tpu_custom_call.1} parent=5 // pred_fallthru
        _
      %p536 = scmp.le.s32.totalorder 1, %s31
      %p537 = scmp.lt.s32.totalorder %s31, 3
      %p538 = pnand %p536, %p537
      %p539 = pneg %p538
      // Predicated region
      $region85: #{tpu_custom_call.1} parent=5 // pred_check
        _
      $region86: #{tpu_custom_call.1} parent=5 // pred_check_branch
        %541 = sbr.rel (%p538) target = $region88
      $region87: #{tpu_custom_call.1} parent=5 // pred_region
        %s542 = ssub.s32 %s31, 1
        %s543 = sand.u32 %s44, 1
        %s544 = scalar_lea.sflag [#allocation3], %s543
        %s545 = sand.u32 %s44, 1
        %s546 = smul.addr %s545, 8
        %s547 = scalar_lea.vmem [#allocation2], %s546
        // Predicated region
        $region89: #{tpu_custom_call.1} parent=87 // pred_check
          %p548 = pneg %p57
        $region90: #{tpu_custom_call.1} parent=87 // pred_check_branch
          %550 = sbr.rel (%p548) target = $region92
        $region91: #{tpu_custom_call.1} parent=87 // pred_region
          %552 = dma.done %s544, 128
        $region92: #{tpu_custom_call.1} parent=87 // pred_fallthru
          _
        // Predicated region
        $region93: #{tpu_custom_call.1} parent=87 // pred_check
          %p553 = pneg %p78
        $region94: #{tpu_custom_call.1} parent=87 // pred_check_branch
          %555 = sbr.rel (%p553) target = $region96
        $region95: #{tpu_custom_call.1} parent=87 // pred_region
          %557 = dma.done [#allocation6], 16
        $region96: #{tpu_custom_call.1} parent=87 // pred_fallthru
          _
        // Predicated region
        $region97: #{tpu_custom_call.1} parent=87 // pred_check
          %p558 = pneg %p246
        $region98: #{tpu_custom_call.1} parent=87 // pred_check_branch
          %560 = sbr.rel (%p558) target = $region100
        $region99: #{tpu_custom_call.1} parent=87 // pred_region
          %562 = dma.done [#allocation6], 512
        $region100: #{tpu_custom_call.1} parent=87 // pred_fallthru
          _
        // Predicated region
        $region101: #{tpu_custom_call.1} parent=87 // pred_check
          %p563 = pneg %p330
        $region102: #{tpu_custom_call.1} parent=87 // pred_check_branch
          %565 = sbr.rel (%p563) target = $region104
        $region103: #{tpu_custom_call.1} parent=87 // pred_region
          %567 = dma.done [#allocation9], 512
        $region104: #{tpu_custom_call.1} parent=87 // pred_fallthru
          _
        %s568 = sand.u32 %s44, 1
        %s569 = scalar_lea.sflag [#allocation3], %s568
        %s570 = sand.u32 %s44, 1
        %s571 = smul.addr %s570, 8
        %s572 = scalar_lea.vmem [#allocation2], %s571
        %p573 = pneg %p57
        %p574 = pneg %p54
        %p575 = pneg %p78
        %p576 = pneg %p75
        %p577 = pneg %p99
        %p578 = pneg %p96
        %p579 = pneg %p120
        %p580 = pneg %p117
        %p581 = pneg %p141
        %p582 = pneg %p138
        %p583 = pneg %p162
        %p584 = pneg %p159
        %p585 = pneg %p183
        %p586 = pneg %p180
        %p587 = pneg %p204
        %p588 = pneg %p201
        %p589 = pneg %p225
        %p590 = pneg %p222
        %p591 = pneg %p246
        %p592 = pneg %p243
        %p593 = pneg %p267
        %p594 = pneg %p264
        %p595 = pneg %p288
        %p596 = pneg %p285
        %p597 = pneg %p309
        %p598 = pneg %p306
        %p599 = pneg %p330
        %p600 = pneg %p327
        %p601 = pneg %p351
        %p602 = pneg %p348
        %p603 = pneg %p372
        %p604 = pneg %p369
        %p605 = pneg %p393
        %p606 = pneg %p390
        %p607 = pneg %p419
        %p608 = pneg %p416
        %s609 = sand.u32 %s406, 1
        %s610 = scalar_lea.sflag [#allocation4], %s609
        %s611 = sand.u32 %s406, 1
        %s612 = smul.addr %s611, 8
        %s613 = scalar_lea.vmem [#allocation10], %s612
        %v614 = vld [vmem:[%s547] sm:$0xff]
        %v615 = vld [vmem:[#allocation5] sm:$0x1]
        %v616 = vld [vmem:[%s2] sm:$0x1]
        %vm617 = vcmask 261120
        %v618 = vsel %vm617, %v614, 0.0
        %619 = vadd.xlane.f32.xlu0 %v618
        %v620 = vpop.xlane.xlu0 %619
        %v621 = vrcp.pop 32.0
        %v622 = vmul.f32 32.0, %v621
        %v623 = vsub.f32 1.0, %v622
        %v624 = vmul.f32 %v621, %v623
        %v625 = vadd.f32 %v621, %v624
        %vm626 = vweird.f32 %v621
        %v627 = vsel %vm626, %v621, %v625
        %v628 = vmul.f32 %v620, %v627
        %v629 = vsub.f32 %v614, %v628
        %v630 = vmul.f32 %v629, %v629
        %v631 = vsel %vm617, %v630, 0.0
        %632 = vadd.xlane.f32.xlu0 %v631
        %v633 = vpop.xlane.xlu0 %632
        %v634 = vmul.f32 %v633, %v627
        %v635 = vadd.f32 %v634, 1e-05
        %v636 = vrsqrt.pop %v635
        %v637 = vmul.f32 %v636, %v635
        %v638 = vmul.f32 %v637, %v636
        %v639 = vmul.f32 0.5, %v638
        %v640 = vsub.f32 1.5, %v639
        %v641 = vmul.f32 %v636, %v640
        %vm642 = vweird.f32 %v635
        %vm643 = vweird.f32 %v636
        %vm644 = vmor %vm642, %vm643
        %v645 = vsel %vm644, %v636, %v641
        %v646 = vmul.f32 %v629, %v645
        %v648 = vperm.slane %v615, 0
        %v650 = vmul.f32 %v646, %v648
        %v652 = vperm.slane %v616, 0
        %v654 = vadd.f32 %v650, %v652
        %v655 = vld [vmem:[%s3] sm:$0xff]
        %v656 = vld [vmem:[%s3 + $0x8] sm:$0xff]
        %v657 = vld [vmem:[%s3 + $0x10] sm:$0xff]
        %v658 = vld [vmem:[%s3 + $0x18] sm:$0xff]
        %v659 = vld [vmem:[%s6] sm:$0x1]
        %v661 = vperm.slane %v659, 0
        %v664 = vsel %vm617, %v654, 0
        %666 = vmatpush.msra.mxu0 0.0
        %667 = vmatpush.msra.mxu0 0.0
        %668 = vmatpush.msra.mxu0 0.0
        %669 = vmatpush.msra.mxu0 0.0
        %670 = vmatpush.msra.mxu0 0.0
        %671 = vmatpush.msra.mxu0 0.0
        %672 = vmatpush.msra.mxu0 0.0
        %673 = vmatpush.msra.mxu0 0.0
        %674 = vmatpush.msra.mxu0 0.0
        %675 = vmatpush.msra.mxu0 0.0
        %676 = vmatpush.msra.mxu0 0.0
        %677 = vmatpush.msra.mxu0 0.0
        %v678 = vand.u32 %v658, 4294901760
        %679 = vmatpush.msra.mxu0 %v678
        %v680 = vand.u32 %v657, 4294901760
        %681 = vmatpush.msra.mxu0 %v680
        %v682 = vand.u32 %v656, 4294901760
        %683 = vmatpush.msra.mxu0 %v682
        %v684 = vand.u32 %v655, 4294901760
        %685 = vmatpush.msra.mxu0 %v684
        %v686 = vand.u32 %v664, 4294901760
        %v687 = vsub.f32 %v664, %v686
        %v688 = vand.u32 %v687, 4294901760
        %v689 = vsub.f32 %v687, %v688
        %v690 = vand.u32 %v689, 4294901760
        %691 = vmatmul.f32.gmra.mxu0 %v690
        %v692 = vpop.f32.mrf.mxu0
        %v693 = vadd.f32 %v661, %v692
        %694 = vdwg.mxu0
        %695 = vmatpush.msra.mxu0 0.0
        %696 = vmatpush.msra.mxu0 0.0
        %697 = vmatpush.msra.mxu0 0.0
        %698 = vmatpush.msra.mxu0 0.0
        %699 = vmatpush.msra.mxu0 0.0
        %700 = vmatpush.msra.mxu0 0.0
        %701 = vmatpush.msra.mxu0 0.0
        %702 = vmatpush.msra.mxu0 0.0
        %703 = vmatpush.msra.mxu0 0.0
        %704 = vmatpush.msra.mxu0 0.0
        %705 = vmatpush.msra.mxu0 0.0
        %706 = vmatpush.msra.mxu0 0.0
        %v707 = vand.u32 %v658, 4294901760
        %v708 = vsub.f32 %v658, %v707
        %v709 = vand.u32 %v708, 4294901760
        %v710 = vsub.f32 %v708, %v709
        %v711 = vand.u32 %v710, 4294901760
        %712 = vmatpush.msra.mxu0 %v711
        %v713 = vand.u32 %v657, 4294901760
        %v714 = vsub.f32 %v657, %v713
        %v715 = vand.u32 %v714, 4294901760
        %v716 = vsub.f32 %v714, %v715
        %v717 = vand.u32 %v716, 4294901760
        %718 = vmatpush.msra.mxu0 %v717
        %v719 = vand.u32 %v656, 4294901760
        %v720 = vsub.f32 %v656, %v719
        %v721 = vand.u32 %v720, 4294901760
        %v722 = vsub.f32 %v720, %v721
        %v723 = vand.u32 %v722, 4294901760
        %724 = vmatpush.msra.mxu0 %v723
        %v725 = vand.u32 %v655, 4294901760
        %v726 = vsub.f32 %v655, %v725
        %v727 = vand.u32 %v726, 4294901760
        %v728 = vsub.f32 %v726, %v727
        %v729 = vand.u32 %v728, 4294901760
        %730 = vmatpush.msra.mxu0 %v729
        %v731 = vand.u32 %v664, 4294901760
        %732 = vmatmul.f32.gmra.mxu0 %v731
        %v733 = vpop.f32.mrf.mxu0
        %v734 = vadd.f32 %v693, %v733
        %735 = vdwg.mxu0
        %736 = vmatpush.msra.mxu0 0.0
        %737 = vmatpush.msra.mxu0 0.0
        %738 = vmatpush.msra.mxu0 0.0
        %739 = vmatpush.msra.mxu0 0.0
        %740 = vmatpush.msra.mxu0 0.0
        %741 = vmatpush.msra.mxu0 0.0
        %742 = vmatpush.msra.mxu0 0.0
        %743 = vmatpush.msra.mxu0 0.0
        %744 = vmatpush.msra.mxu0 0.0
        %745 = vmatpush.msra.mxu0 0.0
        %746 = vmatpush.msra.mxu0 0.0
        %747 = vmatpush.msra.mxu0 0.0
        %v748 = vand.u32 %v658, 4294901760
        %v749 = vsub.f32 %v658, %v748
        %750 = vmatpush.msra.mxu0 %v749
        %v751 = vand.u32 %v657, 4294901760
        %v752 = vsub.f32 %v657, %v751
        %753 = vmatpush.msra.mxu0 %v752
        %v754 = vand.u32 %v656, 4294901760
        %v755 = vsub.f32 %v656, %v754
        %756 = vmatpush.msra.mxu0 %v755
        %v757 = vand.u32 %v655, 4294901760
        %v758 = vsub.f32 %v655, %v757
        %759 = vmatpush.msra.mxu0 %v758
        %v760 = vand.u32 %v664, 4294901760
        %v761 = vsub.f32 %v664, %v760
        %762 = vmatmul.f32.gmra.mxu0 %v761
        %v763 = vpop.f32.mrf.mxu0
        %v764 = vadd.f32 %v734, %v763
        %765 = vdwg.mxu0
        %766 = vmatpush.msra.mxu0 0.0
        %767 = vmatpush.msra.mxu0 0.0
        %768 = vmatpush.msra.mxu0 0.0
        %769 = vmatpush.msra.mxu0 0.0
        %770 = vmatpush.msra.mxu0 0.0
        %771 = vmatpush.msra.mxu0 0.0
        %772 = vmatpush.msra.mxu0 0.0
        %773 = vmatpush.msra.mxu0 0.0
        %774 = vmatpush.msra.mxu0 0.0
        %775 = vmatpush.msra.mxu0 0.0
        %776 = vmatpush.msra.mxu0 0.0
        %777 = vmatpush.msra.mxu0 0.0
        %v778 = vand.u32 %v658, 4294901760
        %779 = vmatpush.msra.mxu0 %v778
        %v780 = vand.u32 %v657, 4294901760
        %781 = vmatpush.msra.mxu0 %v780
        %v782 = vand.u32 %v656, 4294901760
        %783 = vmatpush.msra.mxu0 %v782
        %v784 = vand.u32 %v655, 4294901760
        %785 = vmatpush.msra.mxu0 %v784
        %v786 = vand.u32 %v664, 4294901760
        %v787 = vsub.f32 %v664, %v786
        %v788 = vand.u32 %v787, 4294901760
        %789 = vmatmul.f32.gmra.mxu0 %v788
        %v790 = vpop.f32.mrf.mxu0
        %v791 = vadd.f32 %v764, %v790
        %792 = vdwg.mxu0
        %793 = vmatpush.msra.mxu0 0.0
        %794 = vmatpush.msra.mxu0 0.0
        %795 = vmatpush.msra.mxu0 0.0
        %796 = vmatpush.msra.mxu0 0.0
        %797 = vmatpush.msra.mxu0 0.0
        %798 = vmatpush.msra.mxu0 0.0
        %799 = vmatpush.msra.mxu0 0.0
        %800 = vmatpush.msra.mxu0 0.0
        %801 = vmatpush.msra.mxu0 0.0
        %802 = vmatpush.msra.mxu0 0.0
        %803 = vmatpush.msra.mxu0 0.0
        %804 = vmatpush.msra.mxu0 0.0
        %v805 = vand.u32 %v658, 4294901760
        %v806 = vsub.f32 %v658, %v805
        %v807 = vand.u32 %v806, 4294901760
        %808 = vmatpush.msra.mxu0 %v807
        %v809 = vand.u32 %v657, 4294901760
        %v810 = vsub.f32 %v657, %v809
        %v811 = vand.u32 %v810, 4294901760
        %812 = vmatpush.msra.mxu0 %v811
        %v813 = vand.u32 %v656, 4294901760
        %v814 = vsub.f32 %v656, %v813
        %v815 = vand.u32 %v814, 4294901760
        %816 = vmatpush.msra.mxu0 %v815
        %v817 = vand.u32 %v655, 4294901760
        %v818 = vsub.f32 %v655, %v817
        %v819 = vand.u32 %v818, 4294901760
        %820 = vmatpush.msra.mxu0 %v819
        %v821 = vand.u32 %v664, 4294901760
        %822 = vmatmul.f32.gmra.mxu0 %v821
        %v823 = vpop.f32.mrf.mxu0
        %v824 = vadd.f32 %v791, %v823
        %825 = vdwg.mxu0
        %826 = vmatpush.msra.mxu0 0.0
        %827 = vmatpush.msra.mxu0 0.0
        %828 = vmatpush.msra.mxu0 0.0
        %829 = vmatpush.msra.mxu0 0.0
        %830 = vmatpush.msra.mxu0 0.0
        %831 = vmatpush.msra.mxu0 0.0
        %832 = vmatpush.msra.mxu0 0.0
        %833 = vmatpush.msra.mxu0 0.0
        %834 = vmatpush.msra.mxu0 0.0
        %835 = vmatpush.msra.mxu0 0.0
        %836 = vmatpush.msra.mxu0 0.0
        %837 = vmatpush.msra.mxu0 0.0
        %v838 = vand.u32 %v658, 4294901760
        %839 = vmatpush.msra.mxu0 %v838
        %v840 = vand.u32 %v657, 4294901760
        %841 = vmatpush.msra.mxu0 %v840
        %v842 = vand.u32 %v656, 4294901760
        %843 = vmatpush.msra.mxu0 %v842
        %v844 = vand.u32 %v655, 4294901760
        %845 = vmatpush.msra.mxu0 %v844
        %v846 = vand.u32 %v664, 4294901760
        %847 = vmatmul.f32.gmra.mxu0 %v846
        %v848 = vpop.f32.mrf.mxu0
        %v849 = vadd.f32 %v824, %v848
        %850 = vdwg.mxu0
        %v851 = vld [vmem:[%s4] sm:$0xff]
        %v852 = vld [vmem:[%s4 + $0x8] sm:$0xff]
        %v853 = vld [vmem:[%s4 + $0x10] sm:$0xff]
        %v854 = vld [vmem:[%s4 + $0x18] sm:$0xff]
        %v855 = vld [vmem:[%s7] sm:$0x1]
        %v857 = vperm.slane %v855, 0
        %859 = vmatpush.msra.mxu0 0.0
        %860 = vmatpush.msra.mxu0 0.0
        %861 = vmatpush.msra.mxu0 0.0
        %862 = vmatpush.msra.mxu0 0.0
        %863 = vmatpush.msra.mxu0 0.0
        %864 = vmatpush.msra.mxu0 0.0
        %865 = vmatpush.msra.mxu0 0.0
        %866 = vmatpush.msra.mxu0 0.0
        %867 = vmatpush.msra.mxu0 0.0
        %868 = vmatpush.msra.mxu0 0.0
        %869 = vmatpush.msra.mxu0 0.0
        %870 = vmatpush.msra.mxu0 0.0
        %v871 = vand.u32 %v854, 4294901760
        %872 = vmatpush.msra.mxu0 %v871
        %v873 = vand.u32 %v853, 4294901760
        %874 = vmatpush.msra.mxu0 %v873
        %v875 = vand.u32 %v852, 4294901760
        %876 = vmatpush.msra.mxu0 %v875
        %v877 = vand.u32 %v851, 4294901760
        %878 = vmatpush.msra.mxu0 %v877
        %v879 = vand.u32 %v664, 4294901760
        %v880 = vsub.f32 %v664, %v879
        %v881 = vand.u32 %v880, 4294901760
        %v882 = vsub.f32 %v880, %v881
        %v883 = vand.u32 %v882, 4294901760
        %884 = vmatmul.f32.gmra.mxu0 %v883
        %v885 = vpop.f32.mrf.mxu0
        %v886 = vadd.f32 %v857, %v885
        %887 = vdwg.mxu0
        %888 = vmatpush.msra.mxu0 0.0
        %889 = vmatpush.msra.mxu0 0.0
        %890 = vmatpush.msra.mxu0 0.0
        %891 = vmatpush.msra.mxu0 0.0
        %892 = vmatpush.msra.mxu0 0.0
        %893 = vmatpush.msra.mxu0 0.0
        %894 = vmatpush.msra.mxu0 0.0
        %895 = vmatpush.msra.mxu0 0.0
        %896 = vmatpush.msra.mxu0 0.0
        %897 = vmatpush.msra.mxu0 0.0
        %898 = vmatpush.msra.mxu0 0.0
        %899 = vmatpush.msra.mxu0 0.0
        %v900 = vand.u32 %v854, 4294901760
        %v901 = vsub.f32 %v854, %v900
        %v902 = vand.u32 %v901, 4294901760
        %v903 = vsub.f32 %v901, %v902
        %v904 = vand.u32 %v903, 4294901760
        %905 = vmatpush.msra.mxu0 %v904
        %v906 = vand.u32 %v853, 4294901760
        %v907 = vsub.f32 %v853, %v906
        %v908 = vand.u32 %v907, 4294901760
        %v909 = vsub.f32 %v907, %v908
        %v910 = vand.u32 %v909, 4294901760
        %911 = vmatpush.msra.mxu0 %v910
        %v912 = vand.u32 %v852, 4294901760
        %v913 = vsub.f32 %v852, %v912
        %v914 = vand.u32 %v913, 4294901760
        %v915 = vsub.f32 %v913, %v914
        %v916 = vand.u32 %v915, 4294901760
        %917 = vmatpush.msra.mxu0 %v916
        %v918 = vand.u32 %v851, 4294901760
        %v919 = vsub.f32 %v851, %v918
        %v920 = vand.u32 %v919, 4294901760
        %v921 = vsub.f32 %v919, %v920
        %v922 = vand.u32 %v921, 4294901760
        %923 = vmatpush.msra.mxu0 %v922
        %v924 = vand.u32 %v664, 4294901760
        %925 = vmatmul.f32.gmra.mxu0 %v924
        %v926 = vpop.f32.mrf.mxu0
        %v927 = vadd.f32 %v886, %v926
        %928 = vdwg.mxu0
        %929 = vmatpush.msra.mxu0 0.0
        %930 = vmatpush.msra.mxu0 0.0
        %931 = vmatpush.msra.mxu0 0.0
        %932 = vmatpush.msra.mxu0 0.0
        %933 = vmatpush.msra.mxu0 0.0
        %934 = vmatpush.msra.mxu0 0.0
        %935 = vmatpush.msra.mxu0 0.0
        %936 = vmatpush.msra.mxu0 0.0
        %937 = vmatpush.msra.mxu0 0.0
        %938 = vmatpush.msra.mxu0 0.0
        %939 = vmatpush.msra.mxu0 0.0
        %940 = vmatpush.msra.mxu0 0.0
        %v941 = vand.u32 %v854, 4294901760
        %v942 = vsub.f32 %v854, %v941
        %943 = vmatpush.msra.mxu0 %v942
        %v944 = vand.u32 %v853, 4294901760
        %v945 = vsub.f32 %v853, %v944
        %946 = vmatpush.msra.mxu0 %v945
        %v947 = vand.u32 %v852, 4294901760
        %v948 = vsub.f32 %v852, %v947
        %949 = vmatpush.msra.mxu0 %v948
        %v950 = vand.u32 %v851, 4294901760
        %v951 = vsub.f32 %v851, %v950
        %952 = vmatpush.msra.mxu0 %v951
        %v953 = vand.u32 %v664, 4294901760
        %v954 = vsub.f32 %v664, %v953
        %955 = vmatmul.f32.gmra.mxu0 %v954
        %v956 = vpop.f32.mrf.mxu0
        %v957 = vadd.f32 %v927, %v956
        %958 = vdwg.mxu0
        %959 = vmatpush.msra.mxu0 0.0
        %960 = vmatpush.msra.mxu0 0.0
        %961 = vmatpush.msra.mxu0 0.0
        %962 = vmatpush.msra.mxu0 0.0
        %963 = vmatpush.msra.mxu0 0.0
        %964 = vmatpush.msra.mxu0 0.0
        %965 = vmatpush.msra.mxu0 0.0
        %966 = vmatpush.msra.mxu0 0.0
        %967 = vmatpush.msra.mxu0 0.0
        %968 = vmatpush.msra.mxu0 0.0
        %969 = vmatpush.msra.mxu0 0.0
        %970 = vmatpush.msra.mxu0 0.0
        %v971 = vand.u32 %v854, 4294901760
        %972 = vmatpush.msra.mxu0 %v971
        %v973 = vand.u32 %v853, 4294901760
        %974 = vmatpush.msra.mxu0 %v973
        %v975 = vand.u32 %v852, 4294901760
        %976 = vmatpush.msra.mxu0 %v975
        %v977 = vand.u32 %v851, 4294901760
        %978 = vmatpush.msra.mxu0 %v977
        %v979 = vand.u32 %v664, 4294901760
        %v980 = vsub.f32 %v664, %v979
        %v981 = vand.u32 %v980, 4294901760
        %982 = vmatmul.f32.gmra.mxu0 %v981
        %v983 = vpop.f32.mrf.mxu0
        %v984 = vadd.f32 %v957, %v983
        %985 = vdwg.mxu0
        %986 = vmatpush.msra.mxu0 0.0
        %987 = vmatpush.msra.mxu0 0.0
        %988 = vmatpush.msra.mxu0 0.0
        %989 = vmatpush.msra.mxu0 0.0
        %990 = vmatpush.msra.mxu0 0.0
        %991 = vmatpush.msra.mxu0 0.0
        %992 = vmatpush.msra.mxu0 0.0
        %993 = vmatpush.msra.mxu0 0.0
        %994 = vmatpush.msra.mxu0 0.0
        %995 = vmatpush.msra.mxu0 0.0
        %996 = vmatpush.msra.mxu0 0.0
        %997 = vmatpush.msra.mxu0 0.0
        %v998 = vand.u32 %v854, 4294901760
        %v999 = vsub.f32 %v854, %v998
        %v1000 = vand.u32 %v999, 4294901760
        %1001 = vmatpush.msra.mxu0 %v1000
        %v1002 = vand.u32 %v853, 4294901760
        %v1003 = vsub.f32 %v853, %v1002
        %v1004 = vand.u32 %v1003, 4294901760
        %1005 = vmatpush.msra.mxu0 %v1004
        %v1006 = vand.u32 %v852, 4294901760
        %v1007 = vsub.f32 %v852, %v1006
        %v1008 = vand.u32 %v1007, 4294901760
        %1009 = vmatpush.msra.mxu0 %v1008
        %v1010 = vand.u32 %v851, 4294901760
        %v1011 = vsub.f32 %v851, %v1010
        %v1012 = vand.u32 %v1011, 4294901760
        %1013 = vmatpush.msra.mxu0 %v1012
        %v1014 = vand.u32 %v664, 4294901760
        %1015 = vmatmul.f32.gmra.mxu0 %v1014
        %v1016 = vpop.f32.mrf.mxu0
        %v1017 = vadd.f32 %v984, %v1016
        %1018 = vdwg.mxu0
        %1019 = vmatpush.msra.mxu0 0.0
        %1020 = vmatpush.msra.mxu0 0.0
        %1021 = vmatpush.msra.mxu0 0.0
        %1022 = vmatpush.msra.mxu0 0.0
        %1023 = vmatpush.msra.mxu0 0.0
        %1024 = vmatpush.msra.mxu0 0.0
        %1025 = vmatpush.msra.mxu0 0.0
        %1026 = vmatpush.msra.mxu0 0.0
        %1027 = vmatpush.msra.mxu0 0.0
        %1028 = vmatpush.msra.mxu0 0.0
        %1029 = vmatpush.msra.mxu0 0.0
        %1030 = vmatpush.msra.mxu0 0.0
        %v1031 = vand.u32 %v854, 4294901760
        %1032 = vmatpush.msra.mxu0 %v1031
        %v1033 = vand.u32 %v853, 4294901760
        %1034 = vmatpush.msra.mxu0 %v1033
        %v1035 = vand.u32 %v852, 4294901760
        %1036 = vmatpush.msra.mxu0 %v1035
        %v1037 = vand.u32 %v851, 4294901760
        %1038 = vmatpush.msra.mxu0 %v1037
        %v1039 = vand.u32 %v664, 4294901760
        %1040 = vmatmul.f32.gmra.mxu0 %v1039
        %v1041 = vpop.f32.mrf.mxu0
        %v1042 = vadd.f32 %v1017, %v1041
        %1043 = vdwg.mxu0
        %v1044 = vld [vmem:[%s5] sm:$0xff]
        %v1045 = vld [vmem:[%s5 + $0x8] sm:$0xff]
        %v1046 = vld [vmem:[%s5 + $0x10] sm:$0xff]
        %v1047 = vld [vmem:[%s5 + $0x18] sm:$0xff]
        %v1048 = vld [vmem:[%s8] sm:$0x1]
        %v1050 = vperm.slane %v1048, 0
        %1052 = vmatpush.msra.mxu0 0.0
        %1053 = vmatpush.msra.mxu0 0.0
        %1054 = vmatpush.msra.mxu0 0.0
        %1055 = vmatpush.msra.mxu0 0.0
        %1056 = vmatpush.msra.mxu0 0.0
        %1057 = vmatpush.msra.mxu0 0.0
        %1058 = vmatpush.msra.mxu0 0.0
        %1059 = vmatpush.msra.mxu0 0.0
        %1060 = vmatpush.msra.mxu0 0.0
        %1061 = vmatpush.msra.mxu0 0.0
        %1062 = vmatpush.msra.mxu0 0.0
        %1063 = vmatpush.msra.mxu0 0.0
        %v1064 = vand.u32 %v1047, 4294901760
        %1065 = vmatpush.msra.mxu0 %v1064
        %v1066 = vand.u32 %v1046, 4294901760
        %1067 = vmatpush.msra.mxu0 %v1066
        %v1068 = vand.u32 %v1045, 4294901760
        %1069 = vmatpush.msra.mxu0 %v1068
        %v1070 = vand.u32 %v1044, 4294901760
        %1071 = vmatpush.msra.mxu0 %v1070
        %v1072 = vand.u32 %v664, 4294901760
        %v1073 = vsub.f32 %v664, %v1072
        %v1074 = vand.u32 %v1073, 4294901760
        %v1075 = vsub.f32 %v1073, %v1074
        %v1076 = vand.u32 %v1075, 4294901760
        %1077 = vmatmul.f32.gmra.mxu0 %v1076
        %v1078 = vpop.f32.mrf.mxu0
        %v1079 = vadd.f32 %v1050, %v1078
        %1080 = vdwg.mxu0
        %1081 = vmatpush.msra.mxu0 0.0
        %1082 = vmatpush.msra.mxu0 0.0
        %1083 = vmatpush.msra.mxu0 0.0
        %1084 = vmatpush.msra.mxu0 0.0
        %1085 = vmatpush.msra.mxu0 0.0
        %1086 = vmatpush.msra.mxu0 0.0
        %1087 = vmatpush.msra.mxu0 0.0
        %1088 = vmatpush.msra.mxu0 0.0
        %1089 = vmatpush.msra.mxu0 0.0
        %1090 = vmatpush.msra.mxu0 0.0
        %1091 = vmatpush.msra.mxu0 0.0
        %1092 = vmatpush.msra.mxu0 0.0
        %v1093 = vand.u32 %v1047, 4294901760
        %v1094 = vsub.f32 %v1047, %v1093
        %v1095 = vand.u32 %v1094, 4294901760
        %v1096 = vsub.f32 %v1094, %v1095
        %v1097 = vand.u32 %v1096, 4294901760
        %1098 = vmatpush.msra.mxu0 %v1097
        %v1099 = vand.u32 %v1046, 4294901760
        %v1100 = vsub.f32 %v1046, %v1099
        %v1101 = vand.u32 %v1100, 4294901760
        %v1102 = vsub.f32 %v1100, %v1101
        %v1103 = vand.u32 %v1102, 4294901760
        %1104 = vmatpush.msra.mxu0 %v1103
        %v1105 = vand.u32 %v1045, 4294901760
        %v1106 = vsub.f32 %v1045, %v1105
        %v1107 = vand.u32 %v1106, 4294901760
        %v1108 = vsub.f32 %v1106, %v1107
        %v1109 = vand.u32 %v1108, 4294901760
        %1110 = vmatpush.msra.mxu0 %v1109
        %v1111 = vand.u32 %v1044, 4294901760
        %v1112 = vsub.f32 %v1044, %v1111
        %v1113 = vand.u32 %v1112, 4294901760
        %v1114 = vsub.f32 %v1112, %v1113
        %v1115 = vand.u32 %v1114, 4294901760
        %1116 = vmatpush.msra.mxu0 %v1115
        %v1117 = vand.u32 %v664, 4294901760
        %1118 = vmatmul.f32.gmra.mxu0 %v1117
        %v1119 = vpop.f32.mrf.mxu0
        %v1120 = vadd.f32 %v1079, %v1119
        %1121 = vdwg.mxu0
        %1122 = vmatpush.msra.mxu0 0.0
        %1123 = vmatpush.msra.mxu0 0.0
        %1124 = vmatpush.msra.mxu0 0.0
        %1125 = vmatpush.msra.mxu0 0.0
        %1126 = vmatpush.msra.mxu0 0.0
        %1127 = vmatpush.msra.mxu0 0.0
        %1128 = vmatpush.msra.mxu0 0.0
        %1129 = vmatpush.msra.mxu0 0.0
        %1130 = vmatpush.msra.mxu0 0.0
        %1131 = vmatpush.msra.mxu0 0.0
        %1132 = vmatpush.msra.mxu0 0.0
        %1133 = vmatpush.msra.mxu0 0.0
        %v1134 = vand.u32 %v1047, 4294901760
        %v1135 = vsub.f32 %v1047, %v1134
        %1136 = vmatpush.msra.mxu0 %v1135
        %v1137 = vand.u32 %v1046, 4294901760
        %v1138 = vsub.f32 %v1046, %v1137
        %1139 = vmatpush.msra.mxu0 %v1138
        %v1140 = vand.u32 %v1045, 4294901760
        %v1141 = vsub.f32 %v1045, %v1140
        %1142 = vmatpush.msra.mxu0 %v1141
        %v1143 = vand.u32 %v1044, 4294901760
        %v1144 = vsub.f32 %v1044, %v1143
        %1145 = vmatpush.msra.mxu0 %v1144
        %v1146 = vand.u32 %v664, 4294901760
        %v1147 = vsub.f32 %v664, %v1146
        %1148 = vmatmul.f32.gmra.mxu0 %v1147
        %v1149 = vpop.f32.mrf.mxu0
        %v1150 = vadd.f32 %v1120, %v1149
        %1151 = vdwg.mxu0
        %1152 = vmatpush.msra.mxu0 0.0
        %1153 = vmatpush.msra.mxu0 0.0
        %1154 = vmatpush.msra.mxu0 0.0
        %1155 = vmatpush.msra.mxu0 0.0
        %1156 = vmatpush.msra.mxu0 0.0
        %1157 = vmatpush.msra.mxu0 0.0
        %1158 = vmatpush.msra.mxu0 0.0
        %1159 = vmatpush.msra.mxu0 0.0
        %1160 = vmatpush.msra.mxu0 0.0
        %1161 = vmatpush.msra.mxu0 0.0
        %1162 = vmatpush.msra.mxu0 0.0
        %1163 = vmatpush.msra.mxu0 0.0
        %v1164 = vand.u32 %v1047, 4294901760
        %1165 = vmatpush.msra.mxu0 %v1164
        %v1166 = vand.u32 %v1046, 4294901760
        %1167 = vmatpush.msra.mxu0 %v1166
        %v1168 = vand.u32 %v1045, 4294901760
        %1169 = vmatpush.msra.mxu0 %v1168
        %v1170 = vand.u32 %v1044, 4294901760
        %1171 = vmatpush.msra.mxu0 %v1170
        %v1172 = vand.u32 %v664, 4294901760
        %v1173 = vsub.f32 %v664, %v1172
        %v1174 = vand.u32 %v1173, 4294901760
        %1175 = vmatmul.f32.gmra.mxu0 %v1174
        %v1176 = vpop.f32.mrf.mxu0
        %v1177 = vadd.f32 %v1150, %v1176
        %1178 = vdwg.mxu0
        %1179 = vmatpush.msra.mxu0 0.0
        %1180 = vmatpush.msra.mxu0 0.0
        %1181 = vmatpush.msra.mxu0 0.0
        %1182 = vmatpush.msra.mxu0 0.0
        %1183 = vmatpush.msra.mxu0 0.0
        %1184 = vmatpush.msra.mxu0 0.0
        %1185 = vmatpush.msra.mxu0 0.0
        %1186 = vmatpush.msra.mxu0 0.0
        %1187 = vmatpush.msra.mxu0 0.0
        %1188 = vmatpush.msra.mxu0 0.0
        %1189 = vmatpush.msra.mxu0 0.0
        %1190 = vmatpush.msra.mxu0 0.0
        %v1191 = vand.u32 %v1047, 4294901760
        %v1192 = vsub.f32 %v1047, %v1191
        %v1193 = vand.u32 %v1192, 4294901760
        %1194 = vmatpush.msra.mxu0 %v1193
        %v1195 = vand.u32 %v1046, 4294901760
        %v1196 = vsub.f32 %v1046, %v1195
        %v1197 = vand.u32 %v1196, 4294901760
        %1198 = vmatpush.msra.mxu0 %v1197
        %v1199 = vand.u32 %v1045, 4294901760
        %v1200 = vsub.f32 %v1045, %v1199
        %v1201 = vand.u32 %v1200, 4294901760
        %1202 = vmatpush.msra.mxu0 %v1201
        %v1203 = vand.u32 %v1044, 4294901760
        %v1204 = vsub.f32 %v1044, %v1203
        %v1205 = vand.u32 %v1204, 4294901760
        %1206 = vmatpush.msra.mxu0 %v1205
        %v1207 = vand.u32 %v664, 4294901760
        %1208 = vmatmul.f32.gmra.mxu0 %v1207
        %v1209 = vpop.f32.mrf.mxu0
        %v1210 = vadd.f32 %v1177, %v1209
        %1211 = vdwg.mxu0
        %1212 = vmatpush.msra.mxu0 0.0
        %1213 = vmatpush.msra.mxu0 0.0
        %1214 = vmatpush.msra.mxu0 0.0
        %1215 = vmatpush.msra.mxu0 0.0
        %1216 = vmatpush.msra.mxu0 0.0
        %1217 = vmatpush.msra.mxu0 0.0
        %1218 = vmatpush.msra.mxu0 0.0
        %1219 = vmatpush.msra.mxu0 0.0
        %1220 = vmatpush.msra.mxu0 0.0
        %1221 = vmatpush.msra.mxu0 0.0
        %1222 = vmatpush.msra.mxu0 0.0
        %1223 = vmatpush.msra.mxu0 0.0
        %v1224 = vand.u32 %v1047, 4294901760
        %1225 = vmatpush.msra.mxu0 %v1224
        %v1226 = vand.u32 %v1046, 4294901760
        %1227 = vmatpush.msra.mxu0 %v1226
        %v1228 = vand.u32 %v1045, 4294901760
        %1229 = vmatpush.msra.mxu0 %v1228
        %v1230 = vand.u32 %v1044, 4294901760
        %1231 = vmatpush.msra.mxu0 %v1230
        %v1232 = vand.u32 %v664, 4294901760
        %1233 = vmatmul.f32.gmra.mxu0 %v1232
        %v1234 = vpop.f32.mrf.mxu0
        %v1235 = vadd.f32 %v1210, %v1234
        %1236 = vdwg.mxu0
        %1238 = vrot.lane.b32.xlu0 %v849, 120
        %v1239 = vpop.permute.xlu0 %1238
        %1240 = vrot.lane.b32.xlu0 %v849, 112
        %v1241 = vpop.permute.xlu0 %1240
        %1242 = vrot.lane.b32.xlu0 %v849, 104
        %v1243 = vpop.permute.xlu0 %1242
        %1245 = vrot.lane.b32.xlu0 %v1042, 120
        %v1246 = vpop.permute.xlu0 %1245
        %1247 = vrot.lane.b32.xlu0 %v1042, 112
        %v1248 = vpop.permute.xlu0 %1247
        %1249 = vrot.lane.b32.xlu0 %v1042, 104
        %v1250 = vpop.permute.xlu0 %1249
        %1252 = vrot.lane.b32.xlu0 %v1235, 120
        %v1253 = vpop.permute.xlu0 %1252
        %1255 = vrot.lane.b32.xlu0 %v1235, 112
        %v1256 = vpop.permute.xlu0 %1255
        %1258 = vrot.lane.b32.xlu0 %v1235, 104
        %v1259 = vpop.permute.xlu0 %1258
        %vm1261 = vcmask 64512
        %v1262 = vsel %vm1261, %v849, 0
        %v1264 = vsel %vm1261, %v1042, 0
        %1266 = vmatpush.xpose.msra.mxu0 0.0
        %1267 = vmatpush.xpose.msra.mxu0 0.0
        %1268 = vmatpush.xpose.msra.mxu0 0.0
        %1269 = vmatpush.xpose.msra.mxu0 0.0
        %1270 = vmatpush.xpose.msra.mxu0 0.0
        %1271 = vmatpush.xpose.msra.mxu0 0.0
        %1272 = vmatpush.xpose.msra.mxu0 0.0
        %1273 = vmatpush.xpose.msra.mxu0 0.0
        %1274 = vmatpush.xpose.msra.mxu0 0.0
        %1275 = vmatpush.xpose.msra.mxu0 0.0
        %1276 = vmatpush.xpose.msra.mxu0 0.0
        %1277 = vmatpush.xpose.msra.mxu0 0.0
        %1278 = vmatpush.xpose.msra.mxu0 0.0
        %1279 = vmatpush.xpose.msra.mxu0 0.0
        %1280 = vmatpush.xpose.msra.mxu0 0.0
        %v1281 = vand.u32 %v1264, 4294901760
        %1282 = vmatpush.xpose.msra.mxu0 %v1281
        %v1283 = vand.u32 %v1262, 4294901760
        %v1284 = vsub.f32 %v1262, %v1283
        %v1285 = vand.u32 %v1284, 4294901760
        %v1286 = vsub.f32 %v1284, %v1285
        %v1287 = vand.u32 %v1286, 4294901760
        %1288 = vmatmul.f32.gmra.mxu0 %v1287
        %v1289 = vpop.f32.mrf.mxu0
        %v1290 = vadd.f32 0.0, %v1289
        %1291 = vdwg.mxu0
        %1292 = vmatpush.xpose.msra.mxu0 0.0
        %1293 = vmatpush.xpose.msra.mxu0 0.0
        %1294 = vmatpush.xpose.msra.mxu0 0.0
        %1295 = vmatpush.xpose.msra.mxu0 0.0
        %1296 = vmatpush.xpose.msra.mxu0 0.0
        %1297 = vmatpush.xpose.msra.mxu0 0.0
        %1298 = vmatpush.xpose.msra.mxu0 0.0
        %1299 = vmatpush.xpose.msra.mxu0 0.0
        %1300 = vmatpush.xpose.msra.mxu0 0.0
        %1301 = vmatpush.xpose.msra.mxu0 0.0
        %1302 = vmatpush.xpose.msra.mxu0 0.0
        %1303 = vmatpush.xpose.msra.mxu0 0.0
        %1304 = vmatpush.xpose.msra.mxu0 0.0
        %1305 = vmatpush.xpose.msra.mxu0 0.0
        %1306 = vmatpush.xpose.msra.mxu0 0.0
        %v1307 = vand.u32 %v1264, 4294901760
        %v1308 = vsub.f32 %v1264, %v1307
        %v1309 = vand.u32 %v1308, 4294901760
        %v1310 = vsub.f32 %v1308, %v1309
        %v1311 = vand.u32 %v1310, 4294901760
        %1312 = vmatpush.xpose.msra.mxu0 %v1311
        %v1313 = vand.u32 %v1262, 4294901760
        %1314 = vmatmul.f32.gmra.mxu0 %v1313
        %v1315 = vpop.f32.mrf.mxu0
        %v1316 = vadd.f32 %v1290, %v1315
        %1317 = vdwg.mxu0
        %1318 = vmatpush.xpose.msra.mxu0 0.0
        %1319 = vmatpush.xpose.msra.mxu0 0.0
        %1320 = vmatpush.xpose.msra.mxu0 0.0
        %1321 = vmatpush.xpose.msra.mxu0 0.0
        %1322 = vmatpush.xpose.msra.mxu0 0.0
        %1323 = vmatpush.xpose.msra.mxu0 0.0
        %1324 = vmatpush.xpose.msra.mxu0 0.0
        %1325 = vmatpush.xpose.msra.mxu0 0.0
        %1326 = vmatpush.xpose.msra.mxu0 0.0
        %1327 = vmatpush.xpose.msra.mxu0 0.0
        %1328 = vmatpush.xpose.msra.mxu0 0.0
        %1329 = vmatpush.xpose.msra.mxu0 0.0
        %1330 = vmatpush.xpose.msra.mxu0 0.0
        %1331 = vmatpush.xpose.msra.mxu0 0.0
        %1332 = vmatpush.xpose.msra.mxu0 0.0
        %v1333 = vand.u32 %v1264, 4294901760
        %v1334 = vsub.f32 %v1264, %v1333
        %1335 = vmatpush.xpose.msra.mxu0 %v1334
        %v1336 = vand.u32 %v1262, 4294901760
        %v1337 = vsub.f32 %v1262, %v1336
        %1338 = vmatmul.f32.gmra.mxu0 %v1337
        %v1339 = vpop.f32.mrf.mxu0
        %v1340 = vadd.f32 %v1316, %v1339
        %1341 = vdwg.mxu0
        %1342 = vmatpush.xpose.msra.mxu0 0.0
        %1343 = vmatpush.xpose.msra.mxu0 0.0
        %1344 = vmatpush.xpose.msra.mxu0 0.0
        %1345 = vmatpush.xpose.msra.mxu0 0.0
        %1346 = vmatpush.xpose.msra.mxu0 0.0
        %1347 = vmatpush.xpose.msra.mxu0 0.0
        %1348 = vmatpush.xpose.msra.mxu0 0.0
        %1349 = vmatpush.xpose.msra.mxu0 0.0
        %1350 = vmatpush.xpose.msra.mxu0 0.0
        %1351 = vmatpush.xpose.msra.mxu0 0.0
        %1352 = vmatpush.xpose.msra.mxu0 0.0
        %1353 = vmatpush.xpose.msra.mxu0 0.0
        %1354 = vmatpush.xpose.msra.mxu0 0.0
        %1355 = vmatpush.xpose.msra.mxu0 0.0
        %1356 = vmatpush.xpose.msra.mxu0 0.0
        %v1357 = vand.u32 %v1264, 4294901760
        %1358 = vmatpush.xpose.msra.mxu0 %v1357
        %v1359 = vand.u32 %v1262, 4294901760
        %v1360 = vsub.f32 %v1262, %v1359
        %v1361 = vand.u32 %v1360, 4294901760
        %1362 = vmatmul.f32.gmra.mxu0 %v1361
        %v1363 = vpop.f32.mrf.mxu0
        %v1364 = vadd.f32 %v1340, %v1363
        %1365 = vdwg.mxu0
        %1366 = vmatpush.xpose.msra.mxu0 0.0
        %1367 = vmatpush.xpose.msra.mxu0 0.0
        %1368 = vmatpush.xpose.msra.mxu0 0.0
        %1369 = vmatpush.xpose.msra.mxu0 0.0
        %1370 = vmatpush.xpose.msra.mxu0 0.0
        %1371 = vmatpush.xpose.msra.mxu0 0.0
        %1372 = vmatpush.xpose.msra.mxu0 0.0
        %1373 = vmatpush.xpose.msra.mxu0 0.0
        %1374 = vmatpush.xpose.msra.mxu0 0.0
        %1375 = vmatpush.xpose.msra.mxu0 0.0
        %1376 = vmatpush.xpose.msra.mxu0 0.0
        %1377 = vmatpush.xpose.msra.mxu0 0.0
        %1378 = vmatpush.xpose.msra.mxu0 0.0
        %1379 = vmatpush.xpose.msra.mxu0 0.0
        %1380 = vmatpush.xpose.msra.mxu0 0.0
        %v1381 = vand.u32 %v1264, 4294901760
        %v1382 = vsub.f32 %v1264, %v1381
        %v1383 = vand.u32 %v1382, 4294901760
        %1384 = vmatpush.xpose.msra.mxu0 %v1383
        %v1385 = vand.u32 %v1262, 4294901760
        %1386 = vmatmul.f32.gmra.mxu0 %v1385
        %v1387 = vpop.f32.mrf.mxu0
        %v1388 = vadd.f32 %v1364, %v1387
        %1389 = vdwg.mxu0
        %1390 = vmatpush.xpose.msra.mxu0 0.0
        %1391 = vmatpush.xpose.msra.mxu0 0.0
        %1392 = vmatpush.xpose.msra.mxu0 0.0
        %1393 = vmatpush.xpose.msra.mxu0 0.0
        %1394 = vmatpush.xpose.msra.mxu0 0.0
        %1395 = vmatpush.xpose.msra.mxu0 0.0
        %1396 = vmatpush.xpose.msra.mxu0 0.0
        %1397 = vmatpush.xpose.msra.mxu0 0.0
        %1398 = vmatpush.xpose.msra.mxu0 0.0
        %1399 = vmatpush.xpose.msra.mxu0 0.0
        %1400 = vmatpush.xpose.msra.mxu0 0.0
        %1401 = vmatpush.xpose.msra.mxu0 0.0
        %1402 = vmatpush.xpose.msra.mxu0 0.0
        %1403 = vmatpush.xpose.msra.mxu0 0.0
        %1404 = vmatpush.xpose.msra.mxu0 0.0
        %v1405 = vand.u32 %v1264, 4294901760
        %1406 = vmatpush.xpose.msra.mxu0 %v1405
        %v1407 = vand.u32 %v1262, 4294901760
        %1408 = vmatmul.f32.gmra.mxu0 %v1407
        %v1409 = vpop.f32.mrf.mxu0
        %v1410 = vadd.f32 %v1388, %v1409
        %1411 = vdwg.mxu0
        %v1412 = vsel %vm1261, %v1239, 0
        %v1414 = vsel %vm1261, %v1246, 0
        %1416 = vmatpush.xpose.msra.mxu0 0.0
        %1417 = vmatpush.xpose.msra.mxu0 0.0
        %1418 = vmatpush.xpose.msra.mxu0 0.0
        %1419 = vmatpush.xpose.msra.mxu0 0.0
        %1420 = vmatpush.xpose.msra.mxu0 0.0
        %1421 = vmatpush.xpose.msra.mxu0 0.0
        %1422 = vmatpush.xpose.msra.mxu0 0.0
        %1423 = vmatpush.xpose.msra.mxu0 0.0
        %1424 = vmatpush.xpose.msra.mxu0 0.0
        %1425 = vmatpush.xpose.msra.mxu0 0.0
        %1426 = vmatpush.xpose.msra.mxu0 0.0
        %1427 = vmatpush.xpose.msra.mxu0 0.0
        %1428 = vmatpush.xpose.msra.mxu0 0.0
        %1429 = vmatpush.xpose.msra.mxu0 0.0
        %1430 = vmatpush.xpose.msra.mxu0 0.0
        %v1431 = vand.u32 %v1414, 4294901760
        %1432 = vmatpush.xpose.msra.mxu0 %v1431
        %v1433 = vand.u32 %v1412, 4294901760
        %v1434 = vsub.f32 %v1412, %v1433
        %v1435 = vand.u32 %v1434, 4294901760
        %v1436 = vsub.f32 %v1434, %v1435
        %v1437 = vand.u32 %v1436, 4294901760
        %1438 = vmatmul.f32.gmra.mxu0 %v1437
        %v1439 = vpop.f32.mrf.mxu0
        %v1440 = vadd.f32 0.0, %v1439
        %1441 = vdwg.mxu0
        %1442 = vmatpush.xpose.msra.mxu0 0.0
        %1443 = vmatpush.xpose.msra.mxu0 0.0
        %1444 = vmatpush.xpose.msra.mxu0 0.0
        %1445 = vmatpush.xpose.msra.mxu0 0.0
        %1446 = vmatpush.xpose.msra.mxu0 0.0
        %1447 = vmatpush.xpose.msra.mxu0 0.0
        %1448 = vmatpush.xpose.msra.mxu0 0.0
        %1449 = vmatpush.xpose.msra.mxu0 0.0
        %1450 = vmatpush.xpose.msra.mxu0 0.0
        %1451 = vmatpush.xpose.msra.mxu0 0.0
        %1452 = vmatpush.xpose.msra.mxu0 0.0
        %1453 = vmatpush.xpose.msra.mxu0 0.0
        %1454 = vmatpush.xpose.msra.mxu0 0.0
        %1455 = vmatpush.xpose.msra.mxu0 0.0
        %1456 = vmatpush.xpose.msra.mxu0 0.0
        %v1457 = vand.u32 %v1414, 4294901760
        %v1458 = vsub.f32 %v1414, %v1457
        %v1459 = vand.u32 %v1458, 4294901760
        %v1460 = vsub.f32 %v1458, %v1459
        %v1461 = vand.u32 %v1460, 4294901760
        %1462 = vmatpush.xpose.msra.mxu0 %v1461
        %v1463 = vand.u32 %v1412, 4294901760
        %1464 = vmatmul.f32.gmra.mxu0 %v1463
        %v1465 = vpop.f32.mrf.mxu0
        %v1466 = vadd.f32 %v1440, %v1465
        %1467 = vdwg.mxu0
        %1468 = vmatpush.xpose.msra.mxu0 0.0
        %1469 = vmatpush.xpose.msra.mxu0 0.0
        %1470 = vmatpush.xpose.msra.mxu0 0.0
        %1471 = vmatpush.xpose.msra.mxu0 0.0
        %1472 = vmatpush.xpose.msra.mxu0 0.0
        %1473 = vmatpush.xpose.msra.mxu0 0.0
        %1474 = vmatpush.xpose.msra.mxu0 0.0
        %1475 = vmatpush.xpose.msra.mxu0 0.0
        %1476 = vmatpush.xpose.msra.mxu0 0.0
        %1477 = vmatpush.xpose.msra.mxu0 0.0
        %1478 = vmatpush.xpose.msra.mxu0 0.0
        %1479 = vmatpush.xpose.msra.mxu0 0.0
        %1480 = vmatpush.xpose.msra.mxu0 0.0
        %1481 = vmatpush.xpose.msra.mxu0 0.0
        %1482 = vmatpush.xpose.msra.mxu0 0.0
        %v1483 = vand.u32 %v1414, 4294901760
        %v1484 = vsub.f32 %v1414, %v1483
        %1485 = vmatpush.xpose.msra.mxu0 %v1484
        %v1486 = vand.u32 %v1412, 4294901760
        %v1487 = vsub.f32 %v1412, %v1486
        %1488 = vmatmul.f32.gmra.mxu0 %v1487
        %v1489 = vpop.f32.mrf.mxu0
        %v1490 = vadd.f32 %v1466, %v1489
        %1491 = vdwg.mxu0
        %1492 = vmatpush.xpose.msra.mxu0 0.0
        %1493 = vmatpush.xpose.msra.mxu0 0.0
        %1494 = vmatpush.xpose.msra.mxu0 0.0
        %1495 = vmatpush.xpose.msra.mxu0 0.0
        %1496 = vmatpush.xpose.msra.mxu0 0.0
        %1497 = vmatpush.xpose.msra.mxu0 0.0
        %1498 = vmatpush.xpose.msra.mxu0 0.0
        %1499 = vmatpush.xpose.msra.mxu0 0.0
        %1500 = vmatpush.xpose.msra.mxu0 0.0
        %1501 = vmatpush.xpose.msra.mxu0 0.0
        %1502 = vmatpush.xpose.msra.mxu0 0.0
        %1503 = vmatpush.xpose.msra.mxu0 0.0
        %1504 = vmatpush.xpose.msra.mxu0 0.0
        %1505 = vmatpush.xpose.msra.mxu0 0.0
        %1506 = vmatpush.xpose.msra.mxu0 0.0
        %v1507 = vand.u32 %v1414, 4294901760
        %1508 = vmatpush.xpose.msra.mxu0 %v1507
        %v1509 = vand.u32 %v1412, 4294901760
        %v1510 = vsub.f32 %v1412, %v1509
        %v1511 = vand.u32 %v1510, 4294901760
        %1512 = vmatmul.f32.gmra.mxu0 %v1511
        %v1513 = vpop.f32.mrf.mxu0
        %v1514 = vadd.f32 %v1490, %v1513
        %1515 = vdwg.mxu0
        %1516 = vmatpush.xpose.msra.mxu0 0.0
        %1517 = vmatpush.xpose.msra.mxu0 0.0
        %1518 = vmatpush.xpose.msra.mxu0 0.0
        %1519 = vmatpush.xpose.msra.mxu0 0.0
        %1520 = vmatpush.xpose.msra.mxu0 0.0
        %1521 = vmatpush.xpose.msra.mxu0 0.0
        %1522 = vmatpush.xpose.msra.mxu0 0.0
        %1523 = vmatpush.xpose.msra.mxu0 0.0
        %1524 = vmatpush.xpose.msra.mxu0 0.0
        %1525 = vmatpush.xpose.msra.mxu0 0.0
        %1526 = vmatpush.xpose.msra.mxu0 0.0
        %1527 = vmatpush.xpose.msra.mxu0 0.0
        %1528 = vmatpush.xpose.msra.mxu0 0.0
        %1529 = vmatpush.xpose.msra.mxu0 0.0
        %1530 = vmatpush.xpose.msra.mxu0 0.0
        %v1531 = vand.u32 %v1414, 4294901760
        %v1532 = vsub.f32 %v1414, %v1531
        %v1533 = vand.u32 %v1532, 4294901760
        %1534 = vmatpush.xpose.msra.mxu0 %v1533
        %v1535 = vand.u32 %v1412, 4294901760
        %1536 = vmatmul.f32.gmra.mxu0 %v1535
        %v1537 = vpop.f32.mrf.mxu0
        %v1538 = vadd.f32 %v1514, %v1537
        %1539 = vdwg.mxu0
        %1540 = vmatpush.xpose.msra.mxu0 0.0
        %1541 = vmatpush.xpose.msra.mxu0 0.0
        %1542 = vmatpush.xpose.msra.mxu0 0.0
        %1543 = vmatpush.xpose.msra.mxu0 0.0
        %1544 = vmatpush.xpose.msra.mxu0 0.0
        %1545 = vmatpush.xpose.msra.mxu0 0.0
        %1546 = vmatpush.xpose.msra.mxu0 0.0
        %1547 = vmatpush.xpose.msra.mxu0 0.0
        %1548 = vmatpush.xpose.msra.mxu0 0.0
        %1549 = vmatpush.xpose.msra.mxu0 0.0
        %1550 = vmatpush.xpose.msra.mxu0 0.0
        %1551 = vmatpush.xpose.msra.mxu0 0.0
        %1552 = vmatpush.xpose.msra.mxu0 0.0
        %1553 = vmatpush.xpose.msra.mxu0 0.0
        %1554 = vmatpush.xpose.msra.mxu0 0.0
        %v1555 = vand.u32 %v1414, 4294901760
        %1556 = vmatpush.xpose.msra.mxu0 %v1555
        %v1557 = vand.u32 %v1412, 4294901760
        %1558 = vmatmul.f32.gmra.mxu0 %v1557
        %v1559 = vpop.f32.mrf.mxu0
        %v1560 = vadd.f32 %v1538, %v1559
        %1561 = vdwg.mxu0
        %v1562 = vsel %vm1261, %v1241, 0
        %v1564 = vsel %vm1261, %v1248, 0
        %1566 = vmatpush.xpose.msra.mxu0 0.0
        %1567 = vmatpush.xpose.msra.mxu0 0.0
        %1568 = vmatpush.xpose.msra.mxu0 0.0
        %1569 = vmatpush.xpose.msra.mxu0 0.0
        %1570 = vmatpush.xpose.msra.mxu0 0.0
        %1571 = vmatpush.xpose.msra.mxu0 0.0
        %1572 = vmatpush.xpose.msra.mxu0 0.0
        %1573 = vmatpush.xpose.msra.mxu0 0.0
        %1574 = vmatpush.xpose.msra.mxu0 0.0
        %1575 = vmatpush.xpose.msra.mxu0 0.0
        %1576 = vmatpush.xpose.msra.mxu0 0.0
        %1577 = vmatpush.xpose.msra.mxu0 0.0
        %1578 = vmatpush.xpose.msra.mxu0 0.0
        %1579 = vmatpush.xpose.msra.mxu0 0.0
        %1580 = vmatpush.xpose.msra.mxu0 0.0
        %v1581 = vand.u32 %v1564, 4294901760
        %1582 = vmatpush.xpose.msra.mxu0 %v1581
        %v1583 = vand.u32 %v1562, 4294901760
        %v1584 = vsub.f32 %v1562, %v1583
        %v1585 = vand.u32 %v1584, 4294901760
        %v1586 = vsub.f32 %v1584, %v1585
        %v1587 = vand.u32 %v1586, 4294901760
        %1588 = vmatmul.f32.gmra.mxu0 %v1587
        %v1589 = vpop.f32.mrf.mxu0
        %v1590 = vadd.f32 0.0, %v1589
        %1591 = vdwg.mxu0
        %1592 = vmatpush.xpose.msra.mxu0 0.0
        %1593 = vmatpush.xpose.msra.mxu0 0.0
        %1594 = vmatpush.xpose.msra.mxu0 0.0
        %1595 = vmatpush.xpose.msra.mxu0 0.0
        %1596 = vmatpush.xpose.msra.mxu0 0.0
        %1597 = vmatpush.xpose.msra.mxu0 0.0
        %1598 = vmatpush.xpose.msra.mxu0 0.0
        %1599 = vmatpush.xpose.msra.mxu0 0.0
        %1600 = vmatpush.xpose.msra.mxu0 0.0
        %1601 = vmatpush.xpose.msra.mxu0 0.0
        %1602 = vmatpush.xpose.msra.mxu0 0.0
        %1603 = vmatpush.xpose.msra.mxu0 0.0
        %1604 = vmatpush.xpose.msra.mxu0 0.0
        %1605 = vmatpush.xpose.msra.mxu0 0.0
        %1606 = vmatpush.xpose.msra.mxu0 0.0
        %v1607 = vand.u32 %v1564, 4294901760
        %v1608 = vsub.f32 %v1564, %v1607
        %v1609 = vand.u32 %v1608, 4294901760
        %v1610 = vsub.f32 %v1608, %v1609
        %v1611 = vand.u32 %v1610, 4294901760
        %1612 = vmatpush.xpose.msra.mxu0 %v1611
        %v1613 = vand.u32 %v1562, 4294901760
        %1614 = vmatmul.f32.gmra.mxu0 %v1613
        %v1615 = vpop.f32.mrf.mxu0
        %v1616 = vadd.f32 %v1590, %v1615
        %1617 = vdwg.mxu0
        %1618 = vmatpush.xpose.msra.mxu0 0.0
        %1619 = vmatpush.xpose.msra.mxu0 0.0
        %1620 = vmatpush.xpose.msra.mxu0 0.0
        %1621 = vmatpush.xpose.msra.mxu0 0.0
        %1622 = vmatpush.xpose.msra.mxu0 0.0
        %1623 = vmatpush.xpose.msra.mxu0 0.0
        %1624 = vmatpush.xpose.msra.mxu0 0.0
        %1625 = vmatpush.xpose.msra.mxu0 0.0
        %1626 = vmatpush.xpose.msra.mxu0 0.0
        %1627 = vmatpush.xpose.msra.mxu0 0.0
        %1628 = vmatpush.xpose.msra.mxu0 0.0
        %1629 = vmatpush.xpose.msra.mxu0 0.0
        %1630 = vmatpush.xpose.msra.mxu0 0.0
        %1631 = vmatpush.xpose.msra.mxu0 0.0
        %1632 = vmatpush.xpose.msra.mxu0 0.0
        %v1633 = vand.u32 %v1564, 4294901760
        %v1634 = vsub.f32 %v1564, %v1633
        %1635 = vmatpush.xpose.msra.mxu0 %v1634
        %v1636 = vand.u32 %v1562, 4294901760
        %v1637 = vsub.f32 %v1562, %v1636
        %1638 = vmatmul.f32.gmra.mxu0 %v1637
        %v1639 = vpop.f32.mrf.mxu0
        %v1640 = vadd.f32 %v1616, %v1639
        %1641 = vdwg.mxu0
        %1642 = vmatpush.xpose.msra.mxu0 0.0
        %1643 = vmatpush.xpose.msra.mxu0 0.0
        %1644 = vmatpush.xpose.msra.mxu0 0.0
        %1645 = vmatpush.xpose.msra.mxu0 0.0
        %1646 = vmatpush.xpose.msra.mxu0 0.0
        %1647 = vmatpush.xpose.msra.mxu0 0.0
        %1648 = vmatpush.xpose.msra.mxu0 0.0
        %1649 = vmatpush.xpose.msra.mxu0 0.0
        %1650 = vmatpush.xpose.msra.mxu0 0.0
        %1651 = vmatpush.xpose.msra.mxu0 0.0
        %1652 = vmatpush.xpose.msra.mxu0 0.0
        %1653 = vmatpush.xpose.msra.mxu0 0.0
        %1654 = vmatpush.xpose.msra.mxu0 0.0
        %1655 = vmatpush.xpose.msra.mxu0 0.0
        %1656 = vmatpush.xpose.msra.mxu0 0.0
        %v1657 = vand.u32 %v1564, 4294901760
        %1658 = vmatpush.xpose.msra.mxu0 %v1657
        %v1659 = vand.u32 %v1562, 4294901760
        %v1660 = vsub.f32 %v1562, %v1659
        %v1661 = vand.u32 %v1660, 4294901760
        %1662 = vmatmul.f32.gmra.mxu0 %v1661
        %v1663 = vpop.f32.mrf.mxu0
        %v1664 = vadd.f32 %v1640, %v1663
        %1665 = vdwg.mxu0
        %1666 = vmatpush.xpose.msra.mxu0 0.0
        %1667 = vmatpush.xpose.msra.mxu0 0.0
        %1668 = vmatpush.xpose.msra.mxu0 0.0
        %1669 = vmatpush.xpose.msra.mxu0 0.0
        %1670 = vmatpush.xpose.msra.mxu0 0.0
        %1671 = vmatpush.xpose.msra.mxu0 0.0
        %1672 = vmatpush.xpose.msra.mxu0 0.0
        %1673 = vmatpush.xpose.msra.mxu0 0.0
        %1674 = vmatpush.xpose.msra.mxu0 0.0
        %1675 = vmatpush.xpose.msra.mxu0 0.0
        %1676 = vmatpush.xpose.msra.mxu0 0.0
        %1677 = vmatpush.xpose.msra.mxu0 0.0
        %1678 = vmatpush.xpose.msra.mxu0 0.0
        %1679 = vmatpush.xpose.msra.mxu0 0.0
        %1680 = vmatpush.xpose.msra.mxu0 0.0
        %v1681 = vand.u32 %v1564, 4294901760
        %v1682 = vsub.f32 %v1564, %v1681
        %v1683 = vand.u32 %v1682, 4294901760
        %1684 = vmatpush.xpose.msra.mxu0 %v1683
        %v1685 = vand.u32 %v1562, 4294901760
        %1686 = vmatmul.f32.gmra.mxu0 %v1685
        %v1687 = vpop.f32.mrf.mxu0
        %v1688 = vadd.f32 %v1664, %v1687
        %1689 = vdwg.mxu0
        %1690 = vmatpush.xpose.msra.mxu0 0.0
        %1691 = vmatpush.xpose.msra.mxu0 0.0
        %1692 = vmatpush.xpose.msra.mxu0 0.0
        %1693 = vmatpush.xpose.msra.mxu0 0.0
        %1694 = vmatpush.xpose.msra.mxu0 0.0
        %1695 = vmatpush.xpose.msra.mxu0 0.0
        %1696 = vmatpush.xpose.msra.mxu0 0.0
        %1697 = vmatpush.xpose.msra.mxu0 0.0
        %1698 = vmatpush.xpose.msra.mxu0 0.0
        %1699 = vmatpush.xpose.msra.mxu0 0.0
        %1700 = vmatpush.xpose.msra.mxu0 0.0
        %1701 = vmatpush.xpose.msra.mxu0 0.0
        %1702 = vmatpush.xpose.msra.mxu0 0.0
        %1703 = vmatpush.xpose.msra.mxu0 0.0
        %1704 = vmatpush.xpose.msra.mxu0 0.0
        %v1705 = vand.u32 %v1564, 4294901760
        %1706 = vmatpush.xpose.msra.mxu0 %v1705
        %v1707 = vand.u32 %v1562, 4294901760
        %1708 = vmatmul.f32.gmra.mxu0 %v1707
        %v1709 = vpop.f32.mrf.mxu0
        %v1710 = vadd.f32 %v1688, %v1709
        %1711 = vdwg.mxu0
        %v1712 = vsel %vm1261, %v1243, 0
        %v1714 = vsel %vm1261, %v1250, 0
        %1716 = vmatpush.xpose.msra.mxu0 0.0
        %1717 = vmatpush.xpose.msra.mxu0 0.0
        %1718 = vmatpush.xpose.msra.mxu0 0.0
        %1719 = vmatpush.xpose.msra.mxu0 0.0
        %1720 = vmatpush.xpose.msra.mxu0 0.0
        %1721 = vmatpush.xpose.msra.mxu0 0.0
        %1722 = vmatpush.xpose.msra.mxu0 0.0
        %1723 = vmatpush.xpose.msra.mxu0 0.0
        %1724 = vmatpush.xpose.msra.mxu0 0.0
        %1725 = vmatpush.xpose.msra.mxu0 0.0
        %1726 = vmatpush.xpose.msra.mxu0 0.0
        %1727 = vmatpush.xpose.msra.mxu0 0.0
        %1728 = vmatpush.xpose.msra.mxu0 0.0
        %1729 = vmatpush.xpose.msra.mxu0 0.0
        %1730 = vmatpush.xpose.msra.mxu0 0.0
        %v1731 = vand.u32 %v1714, 4294901760
        %1732 = vmatpush.xpose.msra.mxu0 %v1731
        %v1733 = vand.u32 %v1712, 4294901760
        %v1734 = vsub.f32 %v1712, %v1733
        %v1735 = vand.u32 %v1734, 4294901760
        %v1736 = vsub.f32 %v1734, %v1735
        %v1737 = vand.u32 %v1736, 4294901760
        %1738 = vmatmul.f32.gmra.mxu0 %v1737
        %v1739 = vpop.f32.mrf.mxu0
        %v1740 = vadd.f32 0.0, %v1739
        %1741 = vdwg.mxu0
        %1742 = vmatpush.xpose.msra.mxu0 0.0
        %1743 = vmatpush.xpose.msra.mxu0 0.0
        %1744 = vmatpush.xpose.msra.mxu0 0.0
        %1745 = vmatpush.xpose.msra.mxu0 0.0
        %1746 = vmatpush.xpose.msra.mxu0 0.0
        %1747 = vmatpush.xpose.msra.mxu0 0.0
        %1748 = vmatpush.xpose.msra.mxu0 0.0
        %1749 = vmatpush.xpose.msra.mxu0 0.0
        %1750 = vmatpush.xpose.msra.mxu0 0.0
        %1751 = vmatpush.xpose.msra.mxu0 0.0
        %1752 = vmatpush.xpose.msra.mxu0 0.0
        %1753 = vmatpush.xpose.msra.mxu0 0.0
        %1754 = vmatpush.xpose.msra.mxu0 0.0
        %1755 = vmatpush.xpose.msra.mxu0 0.0
        %1756 = vmatpush.xpose.msra.mxu0 0.0
        %v1757 = vand.u32 %v1714, 4294901760
        %v1758 = vsub.f32 %v1714, %v1757
        %v1759 = vand.u32 %v1758, 4294901760
        %v1760 = vsub.f32 %v1758, %v1759
        %v1761 = vand.u32 %v1760, 4294901760
        %1762 = vmatpush.xpose.msra.mxu0 %v1761
        %v1763 = vand.u32 %v1712, 4294901760
        %1764 = vmatmul.f32.gmra.mxu0 %v1763
        %v1765 = vpop.f32.mrf.mxu0
        %v1766 = vadd.f32 %v1740, %v1765
        %1767 = vdwg.mxu0
        %1768 = vmatpush.xpose.msra.mxu0 0.0
        %1769 = vmatpush.xpose.msra.mxu0 0.0
        %1770 = vmatpush.xpose.msra.mxu0 0.0
        %1771 = vmatpush.xpose.msra.mxu0 0.0
        %1772 = vmatpush.xpose.msra.mxu0 0.0
        %1773 = vmatpush.xpose.msra.mxu0 0.0
        %1774 = vmatpush.xpose.msra.mxu0 0.0
        %1775 = vmatpush.xpose.msra.mxu0 0.0
        %1776 = vmatpush.xpose.msra.mxu0 0.0
        %1777 = vmatpush.xpose.msra.mxu0 0.0
        %1778 = vmatpush.xpose.msra.mxu0 0.0
        %1779 = vmatpush.xpose.msra.mxu0 0.0
        %1780 = vmatpush.xpose.msra.mxu0 0.0
        %1781 = vmatpush.xpose.msra.mxu0 0.0
        %1782 = vmatpush.xpose.msra.mxu0 0.0
        %v1783 = vand.u32 %v1714, 4294901760
        %v1784 = vsub.f32 %v1714, %v1783
        %1785 = vmatpush.xpose.msra.mxu0 %v1784
        %v1786 = vand.u32 %v1712, 4294901760
        %v1787 = vsub.f32 %v1712, %v1786
        %1788 = vmatmul.f32.gmra.mxu0 %v1787
        %v1789 = vpop.f32.mrf.mxu0
        %v1790 = vadd.f32 %v1766, %v1789
        %1791 = vdwg.mxu0
        %1792 = vmatpush.xpose.msra.mxu0 0.0
        %1793 = vmatpush.xpose.msra.mxu0 0.0
        %1794 = vmatpush.xpose.msra.mxu0 0.0
        %1795 = vmatpush.xpose.msra.mxu0 0.0
        %1796 = vmatpush.xpose.msra.mxu0 0.0
        %1797 = vmatpush.xpose.msra.mxu0 0.0
        %1798 = vmatpush.xpose.msra.mxu0 0.0
        %1799 = vmatpush.xpose.msra.mxu0 0.0
        %1800 = vmatpush.xpose.msra.mxu0 0.0
        %1801 = vmatpush.xpose.msra.mxu0 0.0
        %1802 = vmatpush.xpose.msra.mxu0 0.0
        %1803 = vmatpush.xpose.msra.mxu0 0.0
        %1804 = vmatpush.xpose.msra.mxu0 0.0
        %1805 = vmatpush.xpose.msra.mxu0 0.0
        %1806 = vmatpush.xpose.msra.mxu0 0.0
        %v1807 = vand.u32 %v1714, 4294901760
        %1808 = vmatpush.xpose.msra.mxu0 %v1807
        %v1809 = vand.u32 %v1712, 4294901760
        %v1810 = vsub.f32 %v1712, %v1809
        %v1811 = vand.u32 %v1810, 4294901760
        %1812 = vmatmul.f32.gmra.mxu0 %v1811
        %v1813 = vpop.f32.mrf.mxu0
        %v1814 = vadd.f32 %v1790, %v1813
        %1815 = vdwg.mxu0
        %1816 = vmatpush.xpose.msra.mxu0 0.0
        %1817 = vmatpush.xpose.msra.mxu0 0.0
        %1818 = vmatpush.xpose.msra.mxu0 0.0
        %1819 = vmatpush.xpose.msra.mxu0 0.0
        %1820 = vmatpush.xpose.msra.mxu0 0.0
        %1821 = vmatpush.xpose.msra.mxu0 0.0
        %1822 = vmatpush.xpose.msra.mxu0 0.0
        %1823 = vmatpush.xpose.msra.mxu0 0.0
        %1824 = vmatpush.xpose.msra.mxu0 0.0
        %1825 = vmatpush.xpose.msra.mxu0 0.0
        %1826 = vmatpush.xpose.msra.mxu0 0.0
        %1827 = vmatpush.xpose.msra.mxu0 0.0
        %1828 = vmatpush.xpose.msra.mxu0 0.0
        %1829 = vmatpush.xpose.msra.mxu0 0.0
        %1830 = vmatpush.xpose.msra.mxu0 0.0
        %v1831 = vand.u32 %v1714, 4294901760
        %v1832 = vsub.f32 %v1714, %v1831
        %v1833 = vand.u32 %v1832, 4294901760
        %1834 = vmatpush.xpose.msra.mxu0 %v1833
        %v1835 = vand.u32 %v1712, 4294901760
        %1836 = vmatmul.f32.gmra.mxu0 %v1835
        %v1837 = vpop.f32.mrf.mxu0
        %v1838 = vadd.f32 %v1814, %v1837
        %1839 = vdwg.mxu0
        %1840 = vmatpush.xpose.msra.mxu0 0.0
        %1841 = vmatpush.xpose.msra.mxu0 0.0
        %1842 = vmatpush.xpose.msra.mxu0 0.0
        %1843 = vmatpush.xpose.msra.mxu0 0.0
        %1844 = vmatpush.xpose.msra.mxu0 0.0
        %1845 = vmatpush.xpose.msra.mxu0 0.0
        %1846 = vmatpush.xpose.msra.mxu0 0.0
        %1847 = vmatpush.xpose.msra.mxu0 0.0
        %1848 = vmatpush.xpose.msra.mxu0 0.0
        %1849 = vmatpush.xpose.msra.mxu0 0.0
        %1850 = vmatpush.xpose.msra.mxu0 0.0
        %1851 = vmatpush.xpose.msra.mxu0 0.0
        %1852 = vmatpush.xpose.msra.mxu0 0.0
        %1853 = vmatpush.xpose.msra.mxu0 0.0
        %1854 = vmatpush.xpose.msra.mxu0 0.0
        %v1855 = vand.u32 %v1714, 4294901760
        %1856 = vmatpush.xpose.msra.mxu0 %v1855
        %v1857 = vand.u32 %v1712, 4294901760
        %1858 = vmatmul.f32.gmra.mxu0 %v1857
        %v1859 = vpop.f32.mrf.mxu0
        %v1860 = vadd.f32 %v1838, %v1859
        %1861 = vdwg.mxu0
        %v1862 = vsel %vm1261, %v1410, -inf
        %1863 = vmax.xlane.f32.xlu0 %v1862
        %v1864 = vpop.xlane.xlu0 %1863
        %v1865 = vsel %vm1261, %v1560, -inf
        %1866 = vmax.xlane.f32.xlu0 %v1865
        %v1867 = vpop.xlane.xlu0 %1866
        %v1868 = vsel %vm1261, %v1710, -inf
        %1869 = vmax.xlane.f32.xlu0 %v1868
        %v1870 = vpop.xlane.xlu0 %1869
        %v1871 = vsel %vm1261, %v1860, -inf
        %1872 = vmax.xlane.f32.xlu0 %v1871
        %v1873 = vpop.xlane.xlu0 %1872
        %v1874 = vsub.f32 %v1410, %v1864
        %v1875 = vsub.f32 %v1560, %v1867
        %v1876 = vsub.f32 %v1710, %v1870
        %v1877 = vsub.f32 %v1860, %v1873
        %v1878 = vmul.f32 %v1874, 1.442695
        %v1879 = vpow.pop %v1878
        %v1880 = vmul.f32 %v1875, 1.442695
        %v1881 = vpow.pop %v1880
        %v1882 = vmul.f32 %v1876, 1.442695
        %v1883 = vpow.pop %v1882
        %v1884 = vmul.f32 %v1877, 1.442695
        %v1885 = vpow.pop %v1884
        %v1886 = vsel %vm1261, %v1879, 0.0
        %1887 = vadd.xlane.f32.xlu0 %v1886
        %v1888 = vpop.xlane.xlu0 %1887
        %v1889 = vsel %vm1261, %v1881, 0.0
        %1890 = vadd.xlane.f32.xlu0 %v1889
        %v1891 = vpop.xlane.xlu0 %1890
        %v1892 = vsel %vm1261, %v1883, 0.0
        %1893 = vadd.xlane.f32.xlu0 %v1892
        %v1894 = vpop.xlane.xlu0 %1893
        %v1895 = vsel %vm1261, %v1885, 0.0
        %1896 = vadd.xlane.f32.xlu0 %v1895
        %v1897 = vpop.xlane.xlu0 %1896
        %v1899 = vsel %vm1261, %v1879, 0
        %1901 = vmatpush.msra.mxu0 0.0
        %1902 = vmatpush.msra.mxu0 0.0
        %1903 = vmatpush.msra.mxu0 0.0
        %1904 = vmatpush.msra.mxu0 0.0
        %1905 = vmatpush.msra.mxu0 0.0
        %1906 = vmatpush.msra.mxu0 0.0
        %1907 = vmatpush.msra.mxu0 0.0
        %1908 = vmatpush.msra.mxu0 0.0
        %1909 = vmatpush.msra.mxu0 0.0
        %1910 = vmatpush.msra.mxu0 0.0
        %1911 = vmatpush.msra.mxu0 0.0
        %1912 = vmatpush.msra.mxu0 0.0
        %1913 = vmatpush.msra.mxu0 0.0
        %1914 = vmatpush.msra.mxu0 0.0
        %1915 = vmatpush.msra.mxu0 0.0
        %v1916 = vand.u32 %v1235, 4294901760
        %1917 = vmatpush.msra.mxu0 %v1916
        %v1918 = vand.u32 %v1899, 4294901760
        %v1919 = vsub.f32 %v1899, %v1918
        %v1920 = vand.u32 %v1919, 4294901760
        %v1921 = vsub.f32 %v1919, %v1920
        %v1922 = vand.u32 %v1921, 4294901760
        %1923 = vmatmul.f32.gmra.mxu0 %v1922
        %v1924 = vpop.f32.mrf.mxu0
        %v1925 = vadd.f32 0.0, %v1924
        %1926 = vdwg.mxu0
        %1927 = vmatpush.msra.mxu0 0.0
        %1928 = vmatpush.msra.mxu0 0.0
        %1929 = vmatpush.msra.mxu0 0.0
        %1930 = vmatpush.msra.mxu0 0.0
        %1931 = vmatpush.msra.mxu0 0.0
        %1932 = vmatpush.msra.mxu0 0.0
        %1933 = vmatpush.msra.mxu0 0.0
        %1934 = vmatpush.msra.mxu0 0.0
        %1935 = vmatpush.msra.mxu0 0.0
        %1936 = vmatpush.msra.mxu0 0.0
        %1937 = vmatpush.msra.mxu0 0.0
        %1938 = vmatpush.msra.mxu0 0.0
        %1939 = vmatpush.msra.mxu0 0.0
        %1940 = vmatpush.msra.mxu0 0.0
        %1941 = vmatpush.msra.mxu0 0.0
        %v1942 = vand.u32 %v1235, 4294901760
        %v1943 = vsub.f32 %v1235, %v1942
        %v1944 = vand.u32 %v1943, 4294901760
        %v1945 = vsub.f32 %v1943, %v1944
        %v1946 = vand.u32 %v1945, 4294901760
        %1947 = vmatpush.msra.mxu0 %v1946
        %v1948 = vand.u32 %v1899, 4294901760
        %1949 = vmatmul.f32.gmra.mxu0 %v1948
        %v1950 = vpop.f32.mrf.mxu0
        %v1951 = vadd.f32 %v1925, %v1950
        %1952 = vdwg.mxu0
        %1953 = vmatpush.msra.mxu0 0.0
        %1954 = vmatpush.msra.mxu0 0.0
        %1955 = vmatpush.msra.mxu0 0.0
        %1956 = vmatpush.msra.mxu0 0.0
        %1957 = vmatpush.msra.mxu0 0.0
        %1958 = vmatpush.msra.mxu0 0.0
        %1959 = vmatpush.msra.mxu0 0.0
        %1960 = vmatpush.msra.mxu0 0.0
        %1961 = vmatpush.msra.mxu0 0.0
        %1962 = vmatpush.msra.mxu0 0.0
        %1963 = vmatpush.msra.mxu0 0.0
        %1964 = vmatpush.msra.mxu0 0.0
        %1965 = vmatpush.msra.mxu0 0.0
        %1966 = vmatpush.msra.mxu0 0.0
        %1967 = vmatpush.msra.mxu0 0.0
        %v1968 = vand.u32 %v1235, 4294901760
        %v1969 = vsub.f32 %v1235, %v1968
        %1970 = vmatpush.msra.mxu0 %v1969
        %v1971 = vand.u32 %v1899, 4294901760
        %v1972 = vsub.f32 %v1899, %v1971
        %1973 = vmatmul.f32.gmra.mxu0 %v1972
        %v1974 = vpop.f32.mrf.mxu0
        %v1975 = vadd.f32 %v1951, %v1974
        %1976 = vdwg.mxu0
        %1977 = vmatpush.msra.mxu0 0.0
        %1978 = vmatpush.msra.mxu0 0.0
        %1979 = vmatpush.msra.mxu0 0.0
        %1980 = vmatpush.msra.mxu0 0.0
        %1981 = vmatpush.msra.mxu0 0.0
        %1982 = vmatpush.msra.mxu0 0.0
        %1983 = vmatpush.msra.mxu0 0.0
        %1984 = vmatpush.msra.mxu0 0.0
        %1985 = vmatpush.msra.mxu0 0.0
        %1986 = vmatpush.msra.mxu0 0.0
        %1987 = vmatpush.msra.mxu0 0.0
        %1988 = vmatpush.msra.mxu0 0.0
        %1989 = vmatpush.msra.mxu0 0.0
        %1990 = vmatpush.msra.mxu0 0.0
        %1991 = vmatpush.msra.mxu0 0.0
        %v1992 = vand.u32 %v1235, 4294901760
        %1993 = vmatpush.msra.mxu0 %v1992
        %v1994 = vand.u32 %v1899, 4294901760
        %v1995 = vsub.f32 %v1899, %v1994
        %v1996 = vand.u32 %v1995, 4294901760
        %1997 = vmatmul.f32.gmra.mxu0 %v1996
        %v1998 = vpop.f32.mrf.mxu0
        %v1999 = vadd.f32 %v1975, %v1998
        %2000 = vdwg.mxu0
        %2001 = vmatpush.msra.mxu0 0.0
        %2002 = vmatpush.msra.mxu0 0.0
        %2003 = vmatpush.msra.mxu0 0.0
        %2004 = vmatpush.msra.mxu0 0.0
        %2005 = vmatpush.msra.mxu0 0.0
        %2006 = vmatpush.msra.mxu0 0.0
        %2007 = vmatpush.msra.mxu0 0.0
        %2008 = vmatpush.msra.mxu0 0.0
        %2009 = vmatpush.msra.mxu0 0.0
        %2010 = vmatpush.msra.mxu0 0.0
        %2011 = vmatpush.msra.mxu0 0.0
        %2012 = vmatpush.msra.mxu0 0.0
        %2013 = vmatpush.msra.mxu0 0.0
        %2014 = vmatpush.msra.mxu0 0.0
        %2015 = vmatpush.msra.mxu0 0.0
        %v2016 = vand.u32 %v1235, 4294901760
        %v2017 = vsub.f32 %v1235, %v2016
        %v2018 = vand.u32 %v2017, 4294901760
        %2019 = vmatpush.msra.mxu0 %v2018
        %v2020 = vand.u32 %v1899, 4294901760
        %2021 = vmatmul.f32.gmra.mxu0 %v2020
        %v2022 = vpop.f32.mrf.mxu0
        %v2023 = vadd.f32 %v1999, %v2022
        %2024 = vdwg.mxu0
        %2025 = vmatpush.msra.mxu0 0.0
        %2026 = vmatpush.msra.mxu0 0.0
        %2027 = vmatpush.msra.mxu0 0.0
        %2028 = vmatpush.msra.mxu0 0.0
        %2029 = vmatpush.msra.mxu0 0.0
        %2030 = vmatpush.msra.mxu0 0.0
        %2031 = vmatpush.msra.mxu0 0.0
        %2032 = vmatpush.msra.mxu0 0.0
        %2033 = vmatpush.msra.mxu0 0.0
        %2034 = vmatpush.msra.mxu0 0.0
        %2035 = vmatpush.msra.mxu0 0.0
        %2036 = vmatpush.msra.mxu0 0.0
        %2037 = vmatpush.msra.mxu0 0.0
        %2038 = vmatpush.msra.mxu0 0.0
        %2039 = vmatpush.msra.mxu0 0.0
        %v2040 = vand.u32 %v1235, 4294901760
        %2041 = vmatpush.msra.mxu0 %v2040
        %v2042 = vand.u32 %v1899, 4294901760
        %2043 = vmatmul.f32.gmra.mxu0 %v2042
        %v2044 = vpop.f32.mrf.mxu0
        %v2045 = vadd.f32 %v2023, %v2044
        %2046 = vdwg.mxu0
        %v2048 = vsel %vm1261, %v1881, 0
        %2050 = vmatpush.msra.mxu0 0.0
        %2051 = vmatpush.msra.mxu0 0.0
        %2052 = vmatpush.msra.mxu0 0.0
        %2053 = vmatpush.msra.mxu0 0.0
        %2054 = vmatpush.msra.mxu0 0.0
        %2055 = vmatpush.msra.mxu0 0.0
        %2056 = vmatpush.msra.mxu0 0.0
        %2057 = vmatpush.msra.mxu0 0.0
        %2058 = vmatpush.msra.mxu0 0.0
        %2059 = vmatpush.msra.mxu0 0.0
        %2060 = vmatpush.msra.mxu0 0.0
        %2061 = vmatpush.msra.mxu0 0.0
        %2062 = vmatpush.msra.mxu0 0.0
        %2063 = vmatpush.msra.mxu0 0.0
        %2064 = vmatpush.msra.mxu0 0.0
        %v2065 = vand.u32 %v1253, 4294901760
        %2066 = vmatpush.msra.mxu0 %v2065
        %v2067 = vand.u32 %v2048, 4294901760
        %v2068 = vsub.f32 %v2048, %v2067
        %v2069 = vand.u32 %v2068, 4294901760
        %v2070 = vsub.f32 %v2068, %v2069
        %v2071 = vand.u32 %v2070, 4294901760
        %2072 = vmatmul.f32.gmra.mxu0 %v2071
        %v2073 = vpop.f32.mrf.mxu0
        %v2074 = vadd.f32 0.0, %v2073
        %2075 = vdwg.mxu0
        %2076 = vmatpush.msra.mxu0 0.0
        %2077 = vmatpush.msra.mxu0 0.0
        %2078 = vmatpush.msra.mxu0 0.0
        %2079 = vmatpush.msra.mxu0 0.0
        %2080 = vmatpush.msra.mxu0 0.0
        %2081 = vmatpush.msra.mxu0 0.0
        %2082 = vmatpush.msra.mxu0 0.0
        %2083 = vmatpush.msra.mxu0 0.0
        %2084 = vmatpush.msra.mxu0 0.0
        %2085 = vmatpush.msra.mxu0 0.0
        %2086 = vmatpush.msra.mxu0 0.0
        %2087 = vmatpush.msra.mxu0 0.0
        %2088 = vmatpush.msra.mxu0 0.0
        %2089 = vmatpush.msra.mxu0 0.0
        %2090 = vmatpush.msra.mxu0 0.0
        %v2091 = vand.u32 %v1253, 4294901760
        %v2092 = vsub.f32 %v1253, %v2091
        %v2093 = vand.u32 %v2092, 4294901760
        %v2094 = vsub.f32 %v2092, %v2093
        %v2095 = vand.u32 %v2094, 4294901760
        %2096 = vmatpush.msra.mxu0 %v2095
        %v2097 = vand.u32 %v2048, 4294901760
        %2098 = vmatmul.f32.gmra.mxu0 %v2097
        %v2099 = vpop.f32.mrf.mxu0
        %v2100 = vadd.f32 %v2074, %v2099
        %2101 = vdwg.mxu0
        %2102 = vmatpush.msra.mxu0 0.0
        %2103 = vmatpush.msra.mxu0 0.0
        %2104 = vmatpush.msra.mxu0 0.0
        %2105 = vmatpush.msra.mxu0 0.0
        %2106 = vmatpush.msra.mxu0 0.0
        %2107 = vmatpush.msra.mxu0 0.0
        %2108 = vmatpush.msra.mxu0 0.0
        %2109 = vmatpush.msra.mxu0 0.0
        %2110 = vmatpush.msra.mxu0 0.0
        %2111 = vmatpush.msra.mxu0 0.0
        %2112 = vmatpush.msra.mxu0 0.0
        %2113 = vmatpush.msra.mxu0 0.0
        %2114 = vmatpush.msra.mxu0 0.0
        %2115 = vmatpush.msra.mxu0 0.0
        %2116 = vmatpush.msra.mxu0 0.0
        %v2117 = vand.u32 %v1253, 4294901760
        %v2118 = vsub.f32 %v1253, %v2117
        %2119 = vmatpush.msra.mxu0 %v2118
        %v2120 = vand.u32 %v2048, 4294901760
        %v2121 = vsub.f32 %v2048, %v2120
        %2122 = vmatmul.f32.gmra.mxu0 %v2121
        %v2123 = vpop.f32.mrf.mxu0
        %v2124 = vadd.f32 %v2100, %v2123
        %2125 = vdwg.mxu0
        %2126 = vmatpush.msra.mxu0 0.0
        %2127 = vmatpush.msra.mxu0 0.0
        %2128 = vmatpush.msra.mxu0 0.0
        %2129 = vmatpush.msra.mxu0 0.0
        %2130 = vmatpush.msra.mxu0 0.0
        %2131 = vmatpush.msra.mxu0 0.0
        %2132 = vmatpush.msra.mxu0 0.0
        %2133 = vmatpush.msra.mxu0 0.0
        %2134 = vmatpush.msra.mxu0 0.0
        %2135 = vmatpush.msra.mxu0 0.0
        %2136 = vmatpush.msra.mxu0 0.0
        %2137 = vmatpush.msra.mxu0 0.0
        %2138 = vmatpush.msra.mxu0 0.0
        %2139 = vmatpush.msra.mxu0 0.0
        %2140 = vmatpush.msra.mxu0 0.0
        %v2141 = vand.u32 %v1253, 4294901760
        %2142 = vmatpush.msra.mxu0 %v2141
        %v2143 = vand.u32 %v2048, 4294901760
        %v2144 = vsub.f32 %v2048, %v2143
        %v2145 = vand.u32 %v2144, 4294901760
        %2146 = vmatmul.f32.gmra.mxu0 %v2145
        %v2147 = vpop.f32.mrf.mxu0
        %v2148 = vadd.f32 %v2124, %v2147
        %2149 = vdwg.mxu0
        %2150 = vmatpush.msra.mxu0 0.0
        %2151 = vmatpush.msra.mxu0 0.0
        %2152 = vmatpush.msra.mxu0 0.0
        %2153 = vmatpush.msra.mxu0 0.0
        %2154 = vmatpush.msra.mxu0 0.0
        %2155 = vmatpush.msra.mxu0 0.0
        %2156 = vmatpush.msra.mxu0 0.0
        %2157 = vmatpush.msra.mxu0 0.0
        %2158 = vmatpush.msra.mxu0 0.0
        %2159 = vmatpush.msra.mxu0 0.0
        %2160 = vmatpush.msra.mxu0 0.0
        %2161 = vmatpush.msra.mxu0 0.0
        %2162 = vmatpush.msra.mxu0 0.0
        %2163 = vmatpush.msra.mxu0 0.0
        %2164 = vmatpush.msra.mxu0 0.0
        %v2165 = vand.u32 %v1253, 4294901760
        %v2166 = vsub.f32 %v1253, %v2165
        %v2167 = vand.u32 %v2166, 4294901760
        %2168 = vmatpush.msra.mxu0 %v2167
        %v2169 = vand.u32 %v2048, 4294901760
        %2170 = vmatmul.f32.gmra.mxu0 %v2169
        %v2171 = vpop.f32.mrf.mxu0
        %v2172 = vadd.f32 %v2148, %v2171
        %2173 = vdwg.mxu0
        %2174 = vmatpush.msra.mxu0 0.0
        %2175 = vmatpush.msra.mxu0 0.0
        %2176 = vmatpush.msra.mxu0 0.0
        %2177 = vmatpush.msra.mxu0 0.0
        %2178 = vmatpush.msra.mxu0 0.0
        %2179 = vmatpush.msra.mxu0 0.0
        %2180 = vmatpush.msra.mxu0 0.0
        %2181 = vmatpush.msra.mxu0 0.0
        %2182 = vmatpush.msra.mxu0 0.0
        %2183 = vmatpush.msra.mxu0 0.0
        %2184 = vmatpush.msra.mxu0 0.0
        %2185 = vmatpush.msra.mxu0 0.0
        %2186 = vmatpush.msra.mxu0 0.0
        %2187 = vmatpush.msra.mxu0 0.0
        %2188 = vmatpush.msra.mxu0 0.0
        %v2189 = vand.u32 %v1253, 4294901760
        %2190 = vmatpush.msra.mxu0 %v2189
        %v2191 = vand.u32 %v2048, 4294901760
        %2192 = vmatmul.f32.gmra.mxu0 %v2191
        %v2193 = vpop.f32.mrf.mxu0
        %v2194 = vadd.f32 %v2172, %v2193
        %2195 = vdwg.mxu0
        %v2197 = vsel %vm1261, %v1883, 0
        %2199 = vmatpush.msra.mxu0 0.0
        %2200 = vmatpush.msra.mxu0 0.0
        %2201 = vmatpush.msra.mxu0 0.0
        %2202 = vmatpush.msra.mxu0 0.0
        %2203 = vmatpush.msra.mxu0 0.0
        %2204 = vmatpush.msra.mxu0 0.0
        %2205 = vmatpush.msra.mxu0 0.0
        %2206 = vmatpush.msra.mxu0 0.0
        %2207 = vmatpush.msra.mxu0 0.0
        %2208 = vmatpush.msra.mxu0 0.0
        %2209 = vmatpush.msra.mxu0 0.0
        %2210 = vmatpush.msra.mxu0 0.0
        %2211 = vmatpush.msra.mxu0 0.0
        %2212 = vmatpush.msra.mxu0 0.0
        %2213 = vmatpush.msra.mxu0 0.0
        %v2214 = vand.u32 %v1256, 4294901760
        %2215 = vmatpush.msra.mxu0 %v2214
        %v2216 = vand.u32 %v2197, 4294901760
        %v2217 = vsub.f32 %v2197, %v2216
        %v2218 = vand.u32 %v2217, 4294901760
        %v2219 = vsub.f32 %v2217, %v2218
        %v2220 = vand.u32 %v2219, 4294901760
        %2221 = vmatmul.f32.gmra.mxu0 %v2220
        %v2222 = vpop.f32.mrf.mxu0
        %v2223 = vadd.f32 0.0, %v2222
        %2224 = vdwg.mxu0
        %2225 = vmatpush.msra.mxu0 0.0
        %2226 = vmatpush.msra.mxu0 0.0
        %2227 = vmatpush.msra.mxu0 0.0
        %2228 = vmatpush.msra.mxu0 0.0
        %2229 = vmatpush.msra.mxu0 0.0
        %2230 = vmatpush.msra.mxu0 0.0
        %2231 = vmatpush.msra.mxu0 0.0
        %2232 = vmatpush.msra.mxu0 0.0
        %2233 = vmatpush.msra.mxu0 0.0
        %2234 = vmatpush.msra.mxu0 0.0
        %2235 = vmatpush.msra.mxu0 0.0
        %2236 = vmatpush.msra.mxu0 0.0
        %2237 = vmatpush.msra.mxu0 0.0
        %2238 = vmatpush.msra.mxu0 0.0
        %2239 = vmatpush.msra.mxu0 0.0
        %v2240 = vand.u32 %v1256, 4294901760
        %v2241 = vsub.f32 %v1256, %v2240
        %v2242 = vand.u32 %v2241, 4294901760
        %v2243 = vsub.f32 %v2241, %v2242
        %v2244 = vand.u32 %v2243, 4294901760
        %2245 = vmatpush.msra.mxu0 %v2244
        %v2246 = vand.u32 %v2197, 4294901760
        %2247 = vmatmul.f32.gmra.mxu0 %v2246
        %v2248 = vpop.f32.mrf.mxu0
        %v2249 = vadd.f32 %v2223, %v2248
        %2250 = vdwg.mxu0
        %2251 = vmatpush.msra.mxu0 0.0
        %2252 = vmatpush.msra.mxu0 0.0
        %2253 = vmatpush.msra.mxu0 0.0
        %2254 = vmatpush.msra.mxu0 0.0
        %2255 = vmatpush.msra.mxu0 0.0
        %2256 = vmatpush.msra.mxu0 0.0
        %2257 = vmatpush.msra.mxu0 0.0
        %2258 = vmatpush.msra.mxu0 0.0
        %2259 = vmatpush.msra.mxu0 0.0
        %2260 = vmatpush.msra.mxu0 0.0
        %2261 = vmatpush.msra.mxu0 0.0
        %2262 = vmatpush.msra.mxu0 0.0
        %2263 = vmatpush.msra.mxu0 0.0
        %2264 = vmatpush.msra.mxu0 0.0
        %2265 = vmatpush.msra.mxu0 0.0
        %v2266 = vand.u32 %v1256, 4294901760
        %v2267 = vsub.f32 %v1256, %v2266
        %2268 = vmatpush.msra.mxu0 %v2267
        %v2269 = vand.u32 %v2197, 4294901760
        %v2270 = vsub.f32 %v2197, %v2269
        %2271 = vmatmul.f32.gmra.mxu0 %v2270
        %v2272 = vpop.f32.mrf.mxu0
        %v2273 = vadd.f32 %v2249, %v2272
        %2274 = vdwg.mxu0
        %2275 = vmatpush.msra.mxu0 0.0
        %2276 = vmatpush.msra.mxu0 0.0
        %2277 = vmatpush.msra.mxu0 0.0
        %2278 = vmatpush.msra.mxu0 0.0
        %2279 = vmatpush.msra.mxu0 0.0
        %2280 = vmatpush.msra.mxu0 0.0
        %2281 = vmatpush.msra.mxu0 0.0
        %2282 = vmatpush.msra.mxu0 0.0
        %2283 = vmatpush.msra.mxu0 0.0
        %2284 = vmatpush.msra.mxu0 0.0
        %2285 = vmatpush.msra.mxu0 0.0
        %2286 = vmatpush.msra.mxu0 0.0
        %2287 = vmatpush.msra.mxu0 0.0
        %2288 = vmatpush.msra.mxu0 0.0
        %2289 = vmatpush.msra.mxu0 0.0
        %v2290 = vand.u32 %v1256, 4294901760
        %2291 = vmatpush.msra.mxu0 %v2290
        %v2292 = vand.u32 %v2197, 4294901760
        %v2293 = vsub.f32 %v2197, %v2292
        %v2294 = vand.u32 %v2293, 4294901760
        %2295 = vmatmul.f32.gmra.mxu0 %v2294
        %v2296 = vpop.f32.mrf.mxu0
        %v2297 = vadd.f32 %v2273, %v2296
        %2298 = vdwg.mxu0
        %2299 = vmatpush.msra.mxu0 0.0
        %2300 = vmatpush.msra.mxu0 0.0
        %2301 = vmatpush.msra.mxu0 0.0
        %2302 = vmatpush.msra.mxu0 0.0
        %2303 = vmatpush.msra.mxu0 0.0
        %2304 = vmatpush.msra.mxu0 0.0
        %2305 = vmatpush.msra.mxu0 0.0
        %2306 = vmatpush.msra.mxu0 0.0
        %2307 = vmatpush.msra.mxu0 0.0
        %2308 = vmatpush.msra.mxu0 0.0
        %2309 = vmatpush.msra.mxu0 0.0
        %2310 = vmatpush.msra.mxu0 0.0
        %2311 = vmatpush.msra.mxu0 0.0
        %2312 = vmatpush.msra.mxu0 0.0
        %2313 = vmatpush.msra.mxu0 0.0
        %v2314 = vand.u32 %v1256, 4294901760
        %v2315 = vsub.f32 %v1256, %v2314
        %v2316 = vand.u32 %v2315, 4294901760
        %2317 = vmatpush.msra.mxu0 %v2316
        %v2318 = vand.u32 %v2197, 4294901760
        %2319 = vmatmul.f32.gmra.mxu0 %v2318
        %v2320 = vpop.f32.mrf.mxu0
        %v2321 = vadd.f32 %v2297, %v2320
        %2322 = vdwg.mxu0
        %2323 = vmatpush.msra.mxu0 0.0
        %2324 = vmatpush.msra.mxu0 0.0
        %2325 = vmatpush.msra.mxu0 0.0
        %2326 = vmatpush.msra.mxu0 0.0
        %2327 = vmatpush.msra.mxu0 0.0
        %2328 = vmatpush.msra.mxu0 0.0
        %2329 = vmatpush.msra.mxu0 0.0
        %2330 = vmatpush.msra.mxu0 0.0
        %2331 = vmatpush.msra.mxu0 0.0
        %2332 = vmatpush.msra.mxu0 0.0
        %2333 = vmatpush.msra.mxu0 0.0
        %2334 = vmatpush.msra.mxu0 0.0
        %2335 = vmatpush.msra.mxu0 0.0
        %2336 = vmatpush.msra.mxu0 0.0
        %2337 = vmatpush.msra.mxu0 0.0
        %v2338 = vand.u32 %v1256, 4294901760
        %2339 = vmatpush.msra.mxu0 %v2338
        %v2340 = vand.u32 %v2197, 4294901760
        %2341 = vmatmul.f32.gmra.mxu0 %v2340
        %v2342 = vpop.f32.mrf.mxu0
        %v2343 = vadd.f32 %v2321, %v2342
        %2344 = vdwg.mxu0
        %v2346 = vsel %vm1261, %v1885, 0
        %2348 = vmatpush.msra.mxu0 0.0
        %2349 = vmatpush.msra.mxu0 0.0
        %2350 = vmatpush.msra.mxu0 0.0
        %2351 = vmatpush.msra.mxu0 0.0
        %2352 = vmatpush.msra.mxu0 0.0
        %2353 = vmatpush.msra.mxu0 0.0
        %2354 = vmatpush.msra.mxu0 0.0
        %2355 = vmatpush.msra.mxu0 0.0
        %2356 = vmatpush.msra.mxu0 0.0
        %2357 = vmatpush.msra.mxu0 0.0
        %2358 = vmatpush.msra.mxu0 0.0
        %2359 = vmatpush.msra.mxu0 0.0
        %2360 = vmatpush.msra.mxu0 0.0
        %2361 = vmatpush.msra.mxu0 0.0
        %2362 = vmatpush.msra.mxu0 0.0
        %v2363 = vand.u32 %v1259, 4294901760
        %2364 = vmatpush.msra.mxu0 %v2363
        %v2365 = vand.u32 %v2346, 4294901760
        %v2366 = vsub.f32 %v2346, %v2365
        %v2367 = vand.u32 %v2366, 4294901760
        %v2368 = vsub.f32 %v2366, %v2367
        %v2369 = vand.u32 %v2368, 4294901760
        %2370 = vmatmul.f32.gmra.mxu0 %v2369
        %v2371 = vpop.f32.mrf.mxu0
        %v2372 = vadd.f32 0.0, %v2371
        %2373 = vdwg.mxu0
        %2374 = vmatpush.msra.mxu0 0.0
        %2375 = vmatpush.msra.mxu0 0.0
        %2376 = vmatpush.msra.mxu0 0.0
        %2377 = vmatpush.msra.mxu0 0.0
        %2378 = vmatpush.msra.mxu0 0.0
        %2379 = vmatpush.msra.mxu0 0.0
        %2380 = vmatpush.msra.mxu0 0.0
        %2381 = vmatpush.msra.mxu0 0.0
        %2382 = vmatpush.msra.mxu0 0.0
        %2383 = vmatpush.msra.mxu0 0.0
        %2384 = vmatpush.msra.mxu0 0.0
        %2385 = vmatpush.msra.mxu0 0.0
        %2386 = vmatpush.msra.mxu0 0.0
        %2387 = vmatpush.msra.mxu0 0.0
        %2388 = vmatpush.msra.mxu0 0.0
        %v2389 = vand.u32 %v1259, 4294901760
        %v2390 = vsub.f32 %v1259, %v2389
        %v2391 = vand.u32 %v2390, 4294901760
        %v2392 = vsub.f32 %v2390, %v2391
        %v2393 = vand.u32 %v2392, 4294901760
        %2394 = vmatpush.msra.mxu0 %v2393
        %v2395 = vand.u32 %v2346, 4294901760
        %2396 = vmatmul.f32.gmra.mxu0 %v2395
        %v2397 = vpop.f32.mrf.mxu0
        %v2398 = vadd.f32 %v2372, %v2397
        %2399 = vdwg.mxu0
        %2400 = vmatpush.msra.mxu0 0.0
        %2401 = vmatpush.msra.mxu0 0.0
        %2402 = vmatpush.msra.mxu0 0.0
        %2403 = vmatpush.msra.mxu0 0.0
        %2404 = vmatpush.msra.mxu0 0.0
        %2405 = vmatpush.msra.mxu0 0.0
        %2406 = vmatpush.msra.mxu0 0.0
        %2407 = vmatpush.msra.mxu0 0.0
        %2408 = vmatpush.msra.mxu0 0.0
        %2409 = vmatpush.msra.mxu0 0.0
        %2410 = vmatpush.msra.mxu0 0.0
        %2411 = vmatpush.msra.mxu0 0.0
        %2412 = vmatpush.msra.mxu0 0.0
        %2413 = vmatpush.msra.mxu0 0.0
        %2414 = vmatpush.msra.mxu0 0.0
        %v2415 = vand.u32 %v1259, 4294901760
        %v2416 = vsub.f32 %v1259, %v2415
        %2417 = vmatpush.msra.mxu0 %v2416
        %v2418 = vand.u32 %v2346, 4294901760
        %v2419 = vsub.f32 %v2346, %v2418
        %2420 = vmatmul.f32.gmra.mxu0 %v2419
        %v2421 = vpop.f32.mrf.mxu0
        %v2422 = vadd.f32 %v2398, %v2421
        %2423 = vdwg.mxu0
        %2424 = vmatpush.msra.mxu0 0.0
        %2425 = vmatpush.msra.mxu0 0.0
        %2426 = vmatpush.msra.mxu0 0.0
        %2427 = vmatpush.msra.mxu0 0.0
        %2428 = vmatpush.msra.mxu0 0.0
        %2429 = vmatpush.msra.mxu0 0.0
        %2430 = vmatpush.msra.mxu0 0.0
        %2431 = vmatpush.msra.mxu0 0.0
        %2432 = vmatpush.msra.mxu0 0.0
        %2433 = vmatpush.msra.mxu0 0.0
        %2434 = vmatpush.msra.mxu0 0.0
        %2435 = vmatpush.msra.mxu0 0.0
        %2436 = vmatpush.msra.mxu0 0.0
        %2437 = vmatpush.msra.mxu0 0.0
        %2438 = vmatpush.msra.mxu0 0.0
        %v2439 = vand.u32 %v1259, 4294901760
        %2440 = vmatpush.msra.mxu0 %v2439
        %v2441 = vand.u32 %v2346, 4294901760
        %v2442 = vsub.f32 %v2346, %v2441
        %v2443 = vand.u32 %v2442, 4294901760
        %2444 = vmatmul.f32.gmra.mxu0 %v2443
        %v2445 = vpop.f32.mrf.mxu0
        %v2446 = vadd.f32 %v2422, %v2445
        %2447 = vdwg.mxu0
        %2448 = vmatpush.msra.mxu0 0.0
        %2449 = vmatpush.msra.mxu0 0.0
        %2450 = vmatpush.msra.mxu0 0.0
        %2451 = vmatpush.msra.mxu0 0.0
        %2452 = vmatpush.msra.mxu0 0.0
        %2453 = vmatpush.msra.mxu0 0.0
        %2454 = vmatpush.msra.mxu0 0.0
        %2455 = vmatpush.msra.mxu0 0.0
        %2456 = vmatpush.msra.mxu0 0.0
        %2457 = vmatpush.msra.mxu0 0.0
        %2458 = vmatpush.msra.mxu0 0.0
        %2459 = vmatpush.msra.mxu0 0.0
        %2460 = vmatpush.msra.mxu0 0.0
        %2461 = vmatpush.msra.mxu0 0.0
        %2462 = vmatpush.msra.mxu0 0.0
        %v2463 = vand.u32 %v1259, 4294901760
        %v2464 = vsub.f32 %v1259, %v2463
        %v2465 = vand.u32 %v2464, 4294901760
        %2466 = vmatpush.msra.mxu0 %v2465
        %v2467 = vand.u32 %v2346, 4294901760
        %2468 = vmatmul.f32.gmra.mxu0 %v2467
        %v2469 = vpop.f32.mrf.mxu0
        %v2470 = vadd.f32 %v2446, %v2469
        %2471 = vdwg.mxu0
        %2472 = vmatpush.msra.mxu0 0.0
        %2473 = vmatpush.msra.mxu0 0.0
        %2474 = vmatpush.msra.mxu0 0.0
        %2475 = vmatpush.msra.mxu0 0.0
        %2476 = vmatpush.msra.mxu0 0.0
        %2477 = vmatpush.msra.mxu0 0.0
        %2478 = vmatpush.msra.mxu0 0.0
        %2479 = vmatpush.msra.mxu0 0.0
        %2480 = vmatpush.msra.mxu0 0.0
        %2481 = vmatpush.msra.mxu0 0.0
        %2482 = vmatpush.msra.mxu0 0.0
        %2483 = vmatpush.msra.mxu0 0.0
        %2484 = vmatpush.msra.mxu0 0.0
        %2485 = vmatpush.msra.mxu0 0.0
        %2486 = vmatpush.msra.mxu0 0.0
        %v2487 = vand.u32 %v1259, 4294901760
        %2488 = vmatpush.msra.mxu0 %v2487
        %v2489 = vand.u32 %v2346, 4294901760
        %2490 = vmatmul.f32.gmra.mxu0 %v2489
        %v2491 = vpop.f32.mrf.mxu0
        %v2492 = vadd.f32 %v2470, %v2491
        %2493 = vdwg.mxu0
        %v2494 = vrcp.pop %v1888
        %v2495 = vmul.f32 %v1888, %v2494
        %v2496 = vsub.f32 1.0, %v2495
        %v2497 = vmul.f32 %v2494, %v2496
        %v2498 = vadd.f32 %v2494, %v2497
        %vm2499 = vweird.f32 %v1888
        %vm2500 = vweird.f32 %v2494
        %vm2501 = vmor %vm2499, %vm2500
        %v2502 = vsel %vm2501, %v2494, %v2498
        %v2503 = vand.u32 2147483647, %v1888
        %vm2504 = vcmp.eq.f32.partialorder %v2503, 8.507059e+37
        %v2505 = vand.u32 %v1888, 2147483648
        %v2506 = vor.u32 1.1754944e-38, %v2505
        %v2507 = vsel %vm2504, %v2506, %v2502
        %v2508 = vrcp.pop %v1891
        %v2509 = vmul.f32 %v1891, %v2508
        %v2510 = vsub.f32 1.0, %v2509
        %v2511 = vmul.f32 %v2508, %v2510
        %v2512 = vadd.f32 %v2508, %v2511
        %vm2513 = vweird.f32 %v1891
        %vm2514 = vweird.f32 %v2508
        %vm2515 = vmor %vm2513, %vm2514
        %v2516 = vsel %vm2515, %v2508, %v2512
        %v2517 = vand.u32 2147483647, %v1891
        %vm2518 = vcmp.eq.f32.partialorder %v2517, 8.507059e+37
        %v2519 = vand.u32 %v1891, 2147483648
        %v2520 = vor.u32 1.1754944e-38, %v2519
        %v2521 = vsel %vm2518, %v2520, %v2516
        %v2522 = vrcp.pop %v1894
        %v2523 = vmul.f32 %v1894, %v2522
        %v2524 = vsub.f32 1.0, %v2523
        %v2525 = vmul.f32 %v2522, %v2524
        %v2526 = vadd.f32 %v2522, %v2525
        %vm2527 = vweird.f32 %v1894
        %vm2528 = vweird.f32 %v2522
        %vm2529 = vmor %vm2527, %vm2528
        %v2530 = vsel %vm2529, %v2522, %v2526
        %v2531 = vand.u32 2147483647, %v1894
        %vm2532 = vcmp.eq.f32.partialorder %v2531, 8.507059e+37
        %v2533 = vand.u32 %v1894, 2147483648
        %v2534 = vor.u32 1.1754944e-38, %v2533
        %v2535 = vsel %vm2532, %v2534, %v2530
        %v2536 = vrcp.pop %v1897
        %v2537 = vmul.f32 %v1897, %v2536
        %v2538 = vsub.f32 1.0, %v2537
        %v2539 = vmul.f32 %v2536, %v2538
        %v2540 = vadd.f32 %v2536, %v2539
        %vm2541 = vweird.f32 %v1897
        %vm2542 = vweird.f32 %v2536
        %vm2543 = vmor %vm2541, %vm2542
        %v2544 = vsel %vm2543, %v2536, %v2540
        %v2545 = vand.u32 2147483647, %v1897
        %vm2546 = vcmp.eq.f32.partialorder %v2545, 8.507059e+37
        %v2547 = vand.u32 %v1897, 2147483648
        %v2548 = vor.u32 1.1754944e-38, %v2547
        %v2549 = vsel %vm2546, %v2548, %v2544
        %v2550 = vmul.f32 %v2045, %v2507
        %v2551 = vmul.f32 %v2194, %v2521
        %v2552 = vmul.f32 %v2343, %v2535
        %v2553 = vmul.f32 %v2492, %v2549
        %2555 = vrot.lane.b32.xlu0 %v2551, 8
        %v2556 = vpop.permute.xlu0 %2555
        %2559 = vrot.lane.b32.xlu0 %v2552, 16
        %v2560 = vpop.permute.xlu0 %2559
        %2563 = vrot.lane.b32.xlu0 %v2553, 24
        %v2564 = vpop.permute.xlu0 %2563
        %v2566 = vsel %vm1261, %v2550, %v2556
        %vm2567 = vcmask 130048
        %v2568 = vsel %vm2567, %v2566, %v2560
        %vm2569 = vcmask 195584
        %v2570 = vsel %vm2569, %v2568, %v2564
        %v2571 = vld [vmem:[#allocation7] sm:$0xff]
        %v2572 = vld [vmem:[#allocation7 + $0x8] sm:$0xff]
        %v2573 = vld [vmem:[#allocation7 + $0x10] sm:$0xff]
        %v2574 = vld [vmem:[#allocation7 + $0x18] sm:$0xff]
        %v2575 = vld [vmem:[%s10] sm:$0x1]
        %v2577 = vperm.slane %v2575, 0
        %v2580 = vsel %vm617, %v2570, 0
        %2582 = vmatpush.msra.mxu0 0.0
        %2583 = vmatpush.msra.mxu0 0.0
        %2584 = vmatpush.msra.mxu0 0.0
        %2585 = vmatpush.msra.mxu0 0.0
        %2586 = vmatpush.msra.mxu0 0.0
        %2587 = vmatpush.msra.mxu0 0.0
        %2588 = vmatpush.msra.mxu0 0.0
        %2589 = vmatpush.msra.mxu0 0.0
        %2590 = vmatpush.msra.mxu0 0.0
        %2591 = vmatpush.msra.mxu0 0.0
        %2592 = vmatpush.msra.mxu0 0.0
        %2593 = vmatpush.msra.mxu0 0.0
        %v2594 = vand.u32 %v2574, 4294901760
        %2595 = vmatpush.msra.mxu0 %v2594
        %v2596 = vand.u32 %v2573, 4294901760
        %2597 = vmatpush.msra.mxu0 %v2596
        %v2598 = vand.u32 %v2572, 4294901760
        %2599 = vmatpush.msra.mxu0 %v2598
        %v2600 = vand.u32 %v2571, 4294901760
        %2601 = vmatpush.msra.mxu0 %v2600
        %v2602 = vand.u32 %v2580, 4294901760
        %v2603 = vsub.f32 %v2580, %v2602
        %v2604 = vand.u32 %v2603, 4294901760
        %v2605 = vsub.f32 %v2603, %v2604
        %v2606 = vand.u32 %v2605, 4294901760
        %2607 = vmatmul.f32.gmra.mxu0 %v2606
        %v2608 = vpop.f32.mrf.mxu0
        %v2609 = vadd.f32 %v2577, %v2608
        %2610 = vdwg.mxu0
        %2611 = vmatpush.msra.mxu0 0.0
        %2612 = vmatpush.msra.mxu0 0.0
        %2613 = vmatpush.msra.mxu0 0.0
        %2614 = vmatpush.msra.mxu0 0.0
        %2615 = vmatpush.msra.mxu0 0.0
        %2616 = vmatpush.msra.mxu0 0.0
        %2617 = vmatpush.msra.mxu0 0.0
        %2618 = vmatpush.msra.mxu0 0.0
        %2619 = vmatpush.msra.mxu0 0.0
        %2620 = vmatpush.msra.mxu0 0.0
        %2621 = vmatpush.msra.mxu0 0.0
        %2622 = vmatpush.msra.mxu0 0.0
        %v2623 = vand.u32 %v2574, 4294901760
        %v2624 = vsub.f32 %v2574, %v2623
        %v2625 = vand.u32 %v2624, 4294901760
        %v2626 = vsub.f32 %v2624, %v2625
        %v2627 = vand.u32 %v2626, 4294901760
        %2628 = vmatpush.msra.mxu0 %v2627
        %v2629 = vand.u32 %v2573, 4294901760
        %v2630 = vsub.f32 %v2573, %v2629
        %v2631 = vand.u32 %v2630, 4294901760
        %v2632 = vsub.f32 %v2630, %v2631
        %v2633 = vand.u32 %v2632, 4294901760
        %2634 = vmatpush.msra.mxu0 %v2633
        %v2635 = vand.u32 %v2572, 4294901760
        %v2636 = vsub.f32 %v2572, %v2635
        %v2637 = vand.u32 %v2636, 4294901760
        %v2638 = vsub.f32 %v2636, %v2637
        %v2639 = vand.u32 %v2638, 4294901760
        %2640 = vmatpush.msra.mxu0 %v2639
        %v2641 = vand.u32 %v2571, 4294901760
        %v2642 = vsub.f32 %v2571, %v2641
        %v2643 = vand.u32 %v2642, 4294901760
        %v2644 = vsub.f32 %v2642, %v2643
        %v2645 = vand.u32 %v2644, 4294901760
        %2646 = vmatpush.msra.mxu0 %v2645
        %v2647 = vand.u32 %v2580, 4294901760
        %2648 = vmatmul.f32.gmra.mxu0 %v2647
        %v2649 = vpop.f32.mrf.mxu0
        %v2650 = vadd.f32 %v2609, %v2649
        %2651 = vdwg.mxu0
        %2652 = vmatpush.msra.mxu0 0.0
        %2653 = vmatpush.msra.mxu0 0.0
        %2654 = vmatpush.msra.mxu0 0.0
        %2655 = vmatpush.msra.mxu0 0.0
        %2656 = vmatpush.msra.mxu0 0.0
        %2657 = vmatpush.msra.mxu0 0.0
        %2658 = vmatpush.msra.mxu0 0.0
        %2659 = vmatpush.msra.mxu0 0.0
        %2660 = vmatpush.msra.mxu0 0.0
        %2661 = vmatpush.msra.mxu0 0.0
        %2662 = vmatpush.msra.mxu0 0.0
        %2663 = vmatpush.msra.mxu0 0.0
        %v2664 = vand.u32 %v2574, 4294901760
        %v2665 = vsub.f32 %v2574, %v2664
        %2666 = vmatpush.msra.mxu0 %v2665
        %v2667 = vand.u32 %v2573, 4294901760
        %v2668 = vsub.f32 %v2573, %v2667
        %2669 = vmatpush.msra.mxu0 %v2668
        %v2670 = vand.u32 %v2572, 4294901760
        %v2671 = vsub.f32 %v2572, %v2670
        %2672 = vmatpush.msra.mxu0 %v2671
        %v2673 = vand.u32 %v2571, 4294901760
        %v2674 = vsub.f32 %v2571, %v2673
        %2675 = vmatpush.msra.mxu0 %v2674
        %v2676 = vand.u32 %v2580, 4294901760
        %v2677 = vsub.f32 %v2580, %v2676
        %2678 = vmatmul.f32.gmra.mxu0 %v2677
        %v2679 = vpop.f32.mrf.mxu0
        %v2680 = vadd.f32 %v2650, %v2679
        %2681 = vdwg.mxu0
        %2682 = vmatpush.msra.mxu0 0.0
        %2683 = vmatpush.msra.mxu0 0.0
        %2684 = vmatpush.msra.mxu0 0.0
        %2685 = vmatpush.msra.mxu0 0.0
        %2686 = vmatpush.msra.mxu0 0.0
        %2687 = vmatpush.msra.mxu0 0.0
        %2688 = vmatpush.msra.mxu0 0.0
        %2689 = vmatpush.msra.mxu0 0.0
        %2690 = vmatpush.msra.mxu0 0.0
        %2691 = vmatpush.msra.mxu0 0.0
        %2692 = vmatpush.msra.mxu0 0.0
        %2693 = vmatpush.msra.mxu0 0.0
        %v2694 = vand.u32 %v2574, 4294901760
        %2695 = vmatpush.msra.mxu0 %v2694
        %v2696 = vand.u32 %v2573, 4294901760
        %2697 = vmatpush.msra.mxu0 %v2696
        %v2698 = vand.u32 %v2572, 4294901760
        %2699 = vmatpush.msra.mxu0 %v2698
        %v2700 = vand.u32 %v2571, 4294901760
        %2701 = vmatpush.msra.mxu0 %v2700
        %v2702 = vand.u32 %v2580, 4294901760
        %v2703 = vsub.f32 %v2580, %v2702
        %v2704 = vand.u32 %v2703, 4294901760
        %2705 = vmatmul.f32.gmra.mxu0 %v2704
        %v2706 = vpop.f32.mrf.mxu0
        %v2707 = vadd.f32 %v2680, %v2706
        %2708 = vdwg.mxu0
        %2709 = vmatpush.msra.mxu0 0.0
        %2710 = vmatpush.msra.mxu0 0.0
        %2711 = vmatpush.msra.mxu0 0.0
        %2712 = vmatpush.msra.mxu0 0.0
        %2713 = vmatpush.msra.mxu0 0.0
        %2714 = vmatpush.msra.mxu0 0.0
        %2715 = vmatpush.msra.mxu0 0.0
        %2716 = vmatpush.msra.mxu0 0.0
        %2717 = vmatpush.msra.mxu0 0.0
        %2718 = vmatpush.msra.mxu0 0.0
        %2719 = vmatpush.msra.mxu0 0.0
        %2720 = vmatpush.msra.mxu0 0.0
        %v2721 = vand.u32 %v2574, 4294901760
        %v2722 = vsub.f32 %v2574, %v2721
        %v2723 = vand.u32 %v2722, 4294901760
        %2724 = vmatpush.msra.mxu0 %v2723
        %v2725 = vand.u32 %v2573, 4294901760
        %v2726 = vsub.f32 %v2573, %v2725
        %v2727 = vand.u32 %v2726, 4294901760
        %2728 = vmatpush.msra.mxu0 %v2727
        %v2729 = vand.u32 %v2572, 4294901760
        %v2730 = vsub.f32 %v2572, %v2729
        %v2731 = vand.u32 %v2730, 4294901760
        %2732 = vmatpush.msra.mxu0 %v2731
        %v2733 = vand.u32 %v2571, 4294901760
        %v2734 = vsub.f32 %v2571, %v2733
        %v2735 = vand.u32 %v2734, 4294901760
        %2736 = vmatpush.msra.mxu0 %v2735
        %v2737 = vand.u32 %v2580, 4294901760
        %2738 = vmatmul.f32.gmra.mxu0 %v2737
        %v2739 = vpop.f32.mrf.mxu0
        %v2740 = vadd.f32 %v2707, %v2739
        %2741 = vdwg.mxu0
        %2742 = vmatpush.msra.mxu0 0.0
        %2743 = vmatpush.msra.mxu0 0.0
        %2744 = vmatpush.msra.mxu0 0.0
        %2745 = vmatpush.msra.mxu0 0.0
        %2746 = vmatpush.msra.mxu0 0.0
        %2747 = vmatpush.msra.mxu0 0.0
        %2748 = vmatpush.msra.mxu0 0.0
        %2749 = vmatpush.msra.mxu0 0.0
        %2750 = vmatpush.msra.mxu0 0.0
        %2751 = vmatpush.msra.mxu0 0.0
        %2752 = vmatpush.msra.mxu0 0.0
        %2753 = vmatpush.msra.mxu0 0.0
        %v2754 = vand.u32 %v2574, 4294901760
        %2755 = vmatpush.msra.mxu0 %v2754
        %v2756 = vand.u32 %v2573, 4294901760
        %2757 = vmatpush.msra.mxu0 %v2756
        %v2758 = vand.u32 %v2572, 4294901760
        %2759 = vmatpush.msra.mxu0 %v2758
        %v2760 = vand.u32 %v2571, 4294901760
        %2761 = vmatpush.msra.mxu0 %v2760
        %v2762 = vand.u32 %v2580, 4294901760
        %2763 = vmatmul.f32.gmra.mxu0 %v2762
        %v2764 = vpop.f32.mrf.mxu0
        %v2765 = vadd.f32 %v2740, %v2764
        %2766 = vdwg.mxu0
        %v2767 = vadd.f32 %v614, %v2765
        %v2768 = vld [vmem:[%s11] sm:$0x1]
        %v2769 = vld [vmem:[%s12] sm:$0x1]
        %v2770 = vsel %vm617, %v2767, 0.0
        %2771 = vadd.xlane.f32.xlu0 %v2770
        %v2772 = vpop.xlane.xlu0 %2771
        %v2773 = vmul.f32 %v2772, %v627
        %v2774 = vsub.f32 %v2767, %v2773
        %v2775 = vmul.f32 %v2774, %v2774
        %v2776 = vsel %vm617, %v2775, 0.0
        %2777 = vadd.xlane.f32.xlu0 %v2776
        %v2778 = vpop.xlane.xlu0 %2777
        %v2779 = vmul.f32 %v2778, %v627
        %v2780 = vadd.f32 %v2779, 1e-05
        %v2781 = vrsqrt.pop %v2780
        %v2782 = vmul.f32 %v2781, %v2780
        %v2783 = vmul.f32 %v2782, %v2781
        %v2784 = vmul.f32 0.5, %v2783
        %v2785 = vsub.f32 1.5, %v2784
        %v2786 = vmul.f32 %v2781, %v2785
        %vm2787 = vweird.f32 %v2780
        %vm2788 = vweird.f32 %v2781
        %vm2789 = vmor %vm2787, %vm2788
        %v2790 = vsel %vm2789, %v2781, %v2786
        %v2791 = vmul.f32 %v2774, %v2790
        %v2793 = vperm.slane %v2768, 0
        %v2795 = vmul.f32 %v2791, %v2793
        %v2797 = vperm.slane %v2769, 0
        %v2799 = vadd.f32 %v2795, %v2797
        %v2800 = vld [vmem:[#allocation8] sm:$0xff]
        %v2801 = vld [vmem:[#allocation8 + $0x8] sm:$0xff]
        %v2802 = vld [vmem:[#allocation8 + $0x10] sm:$0xff]
        %v2803 = vld [vmem:[#allocation8 + $0x18] sm:$0xff]
        %v2804 = vld [vmem:[%s14] sm:$0x1]
        %v2806 = vperm.slane %v2804, 0
        %v2809 = vsel %vm617, %v2799, 0
        %2811 = vmatpush.msra.mxu0 0.0
        %2812 = vmatpush.msra.mxu0 0.0
        %2813 = vmatpush.msra.mxu0 0.0
        %2814 = vmatpush.msra.mxu0 0.0
        %2815 = vmatpush.msra.mxu0 0.0
        %2816 = vmatpush.msra.mxu0 0.0
        %2817 = vmatpush.msra.mxu0 0.0
        %2818 = vmatpush.msra.mxu0 0.0
        %2819 = vmatpush.msra.mxu0 0.0
        %2820 = vmatpush.msra.mxu0 0.0
        %2821 = vmatpush.msra.mxu0 0.0
        %2822 = vmatpush.msra.mxu0 0.0
        %v2823 = vand.u32 %v2803, 4294901760
        %2824 = vmatpush.msra.mxu0 %v2823
        %v2825 = vand.u32 %v2802, 4294901760
        %2826 = vmatpush.msra.mxu0 %v2825
        %v2827 = vand.u32 %v2801, 4294901760
        %2828 = vmatpush.msra.mxu0 %v2827
        %v2829 = vand.u32 %v2800, 4294901760
        %2830 = vmatpush.msra.mxu0 %v2829
        %v2831 = vand.u32 %v2809, 4294901760
        %v2832 = vsub.f32 %v2809, %v2831
        %v2833 = vand.u32 %v2832, 4294901760
        %v2834 = vsub.f32 %v2832, %v2833
        %v2835 = vand.u32 %v2834, 4294901760
        %2836 = vmatmul.f32.gmra.mxu0 %v2835
        %v2837 = vpop.f32.mrf.mxu0
        %v2838 = vadd.f32 %v2806, %v2837
        %2839 = vdwg.mxu0
        %2840 = vmatpush.msra.mxu0 0.0
        %2841 = vmatpush.msra.mxu0 0.0
        %2842 = vmatpush.msra.mxu0 0.0
        %2843 = vmatpush.msra.mxu0 0.0
        %2844 = vmatpush.msra.mxu0 0.0
        %2845 = vmatpush.msra.mxu0 0.0
        %2846 = vmatpush.msra.mxu0 0.0
        %2847 = vmatpush.msra.mxu0 0.0
        %2848 = vmatpush.msra.mxu0 0.0
        %2849 = vmatpush.msra.mxu0 0.0
        %2850 = vmatpush.msra.mxu0 0.0
        %2851 = vmatpush.msra.mxu0 0.0
        %v2852 = vand.u32 %v2803, 4294901760
        %v2853 = vsub.f32 %v2803, %v2852
        %v2854 = vand.u32 %v2853, 4294901760
        %v2855 = vsub.f32 %v2853, %v2854
        %v2856 = vand.u32 %v2855, 4294901760
        %2857 = vmatpush.msra.mxu0 %v2856
        %v2858 = vand.u32 %v2802, 4294901760
        %v2859 = vsub.f32 %v2802, %v2858
        %v2860 = vand.u32 %v2859, 4294901760
        %v2861 = vsub.f32 %v2859, %v2860
        %v2862 = vand.u32 %v2861, 4294901760
        %2863 = vmatpush.msra.mxu0 %v2862
        %v2864 = vand.u32 %v2801, 4294901760
        %v2865 = vsub.f32 %v2801, %v2864
        %v2866 = vand.u32 %v2865, 4294901760
        %v2867 = vsub.f32 %v2865, %v2866
        %v2868 = vand.u32 %v2867, 4294901760
        %2869 = vmatpush.msra.mxu0 %v2868
        %v2870 = vand.u32 %v2800, 4294901760
        %v2871 = vsub.f32 %v2800, %v2870
        %v2872 = vand.u32 %v2871, 4294901760
        %v2873 = vsub.f32 %v2871, %v2872
        %v2874 = vand.u32 %v2873, 4294901760
        %2875 = vmatpush.msra.mxu0 %v2874
        %v2876 = vand.u32 %v2809, 4294901760
        %2877 = vmatmul.f32.gmra.mxu0 %v2876
        %v2878 = vpop.f32.mrf.mxu0
        %v2879 = vadd.f32 %v2838, %v2878
        %2880 = vdwg.mxu0
        %2881 = vmatpush.msra.mxu0 0.0
        %2882 = vmatpush.msra.mxu0 0.0
        %2883 = vmatpush.msra.mxu0 0.0
        %2884 = vmatpush.msra.mxu0 0.0
        %2885 = vmatpush.msra.mxu0 0.0
        %2886 = vmatpush.msra.mxu0 0.0
        %2887 = vmatpush.msra.mxu0 0.0
        %2888 = vmatpush.msra.mxu0 0.0
        %2889 = vmatpush.msra.mxu0 0.0
        %2890 = vmatpush.msra.mxu0 0.0
        %2891 = vmatpush.msra.mxu0 0.0
        %2892 = vmatpush.msra.mxu0 0.0
        %v2893 = vand.u32 %v2803, 4294901760
        %v2894 = vsub.f32 %v2803, %v2893
        %2895 = vmatpush.msra.mxu0 %v2894
        %v2896 = vand.u32 %v2802, 4294901760
        %v2897 = vsub.f32 %v2802, %v2896
        %2898 = vmatpush.msra.mxu0 %v2897
        %v2899 = vand.u32 %v2801, 4294901760
        %v2900 = vsub.f32 %v2801, %v2899
        %2901 = vmatpush.msra.mxu0 %v2900
        %v2902 = vand.u32 %v2800, 4294901760
        %v2903 = vsub.f32 %v2800, %v2902
        %2904 = vmatpush.msra.mxu0 %v2903
        %v2905 = vand.u32 %v2809, 4294901760
        %v2906 = vsub.f32 %v2809, %v2905
        %2907 = vmatmul.f32.gmra.mxu0 %v2906
        %v2908 = vpop.f32.mrf.mxu0
        %v2909 = vadd.f32 %v2879, %v2908
        %2910 = vdwg.mxu0
        %2911 = vmatpush.msra.mxu0 0.0
        %2912 = vmatpush.msra.mxu0 0.0
        %2913 = vmatpush.msra.mxu0 0.0
        %2914 = vmatpush.msra.mxu0 0.0
        %2915 = vmatpush.msra.mxu0 0.0
        %2916 = vmatpush.msra.mxu0 0.0
        %2917 = vmatpush.msra.mxu0 0.0
        %2918 = vmatpush.msra.mxu0 0.0
        %2919 = vmatpush.msra.mxu0 0.0
        %2920 = vmatpush.msra.mxu0 0.0
        %2921 = vmatpush.msra.mxu0 0.0
        %2922 = vmatpush.msra.mxu0 0.0
        %v2923 = vand.u32 %v2803, 4294901760
        %2924 = vmatpush.msra.mxu0 %v2923
        %v2925 = vand.u32 %v2802, 4294901760
        %2926 = vmatpush.msra.mxu0 %v2925
        %v2927 = vand.u32 %v2801, 4294901760
        %2928 = vmatpush.msra.mxu0 %v2927
        %v2929 = vand.u32 %v2800, 4294901760
        %2930 = vmatpush.msra.mxu0 %v2929
        %v2931 = vand.u32 %v2809, 4294901760
        %v2932 = vsub.f32 %v2809, %v2931
        %v2933 = vand.u32 %v2932, 4294901760
        %2934 = vmatmul.f32.gmra.mxu0 %v2933
        %v2935 = vpop.f32.mrf.mxu0
        %v2936 = vadd.f32 %v2909, %v2935
        %2937 = vdwg.mxu0
        %2938 = vmatpush.msra.mxu0 0.0
        %2939 = vmatpush.msra.mxu0 0.0
        %2940 = vmatpush.msra.mxu0 0.0
        %2941 = vmatpush.msra.mxu0 0.0
        %2942 = vmatpush.msra.mxu0 0.0
        %2943 = vmatpush.msra.mxu0 0.0
        %2944 = vmatpush.msra.mxu0 0.0
        %2945 = vmatpush.msra.mxu0 0.0
        %2946 = vmatpush.msra.mxu0 0.0
        %2947 = vmatpush.msra.mxu0 0.0
        %2948 = vmatpush.msra.mxu0 0.0
        %2949 = vmatpush.msra.mxu0 0.0
        %v2950 = vand.u32 %v2803, 4294901760
        %v2951 = vsub.f32 %v2803, %v2950
        %v2952 = vand.u32 %v2951, 4294901760
        %2953 = vmatpush.msra.mxu0 %v2952
        %v2954 = vand.u32 %v2802, 4294901760
        %v2955 = vsub.f32 %v2802, %v2954
        %v2956 = vand.u32 %v2955, 4294901760
        %2957 = vmatpush.msra.mxu0 %v2956
        %v2958 = vand.u32 %v2801, 4294901760
        %v2959 = vsub.f32 %v2801, %v2958
        %v2960 = vand.u32 %v2959, 4294901760
        %2961 = vmatpush.msra.mxu0 %v2960
        %v2962 = vand.u32 %v2800, 4294901760
        %v2963 = vsub.f32 %v2800, %v2962
        %v2964 = vand.u32 %v2963, 4294901760
        %2965 = vmatpush.msra.mxu0 %v2964
        %v2966 = vand.u32 %v2809, 4294901760
        %2967 = vmatmul.f32.gmra.mxu0 %v2966
        %v2968 = vpop.f32.mrf.mxu0
        %v2969 = vadd.f32 %v2936, %v2968
        %2970 = vdwg.mxu0
        %2971 = vmatpush.msra.mxu0 0.0
        %2972 = vmatpush.msra.mxu0 0.0
        %2973 = vmatpush.msra.mxu0 0.0
        %2974 = vmatpush.msra.mxu0 0.0
        %2975 = vmatpush.msra.mxu0 0.0
        %2976 = vmatpush.msra.mxu0 0.0
        %2977 = vmatpush.msra.mxu0 0.0
        %2978 = vmatpush.msra.mxu0 0.0
        %2979 = vmatpush.msra.mxu0 0.0
        %2980 = vmatpush.msra.mxu0 0.0
        %2981 = vmatpush.msra.mxu0 0.0
        %2982 = vmatpush.msra.mxu0 0.0
        %v2983 = vand.u32 %v2803, 4294901760
        %2984 = vmatpush.msra.mxu0 %v2983
        %v2985 = vand.u32 %v2802, 4294901760
        %2986 = vmatpush.msra.mxu0 %v2985
        %v2987 = vand.u32 %v2801, 4294901760
        %2988 = vmatpush.msra.mxu0 %v2987
        %v2989 = vand.u32 %v2800, 4294901760
        %2990 = vmatpush.msra.mxu0 %v2989
        %v2991 = vand.u32 %v2809, 4294901760
        %2992 = vmatmul.f32.gmra.mxu0 %v2991
        %v2993 = vpop.f32.mrf.mxu0
        %v2994 = vadd.f32 %v2969, %v2993
        %2995 = vdwg.mxu0
        %v2996 = vmul.f32 %v2994, 0.5
        %v2997 = vmul.f32 %v2994, 0.70710677
        %v2998 = vand.u32 2147483647, %v2997
        %v2999 = vmul.f32 %v2998, 0.3275911
        %v3000 = vadd.f32 %v2999, 1.0
        %v3001 = vrcp.pop %v3000
        %v3002 = vmul.f32 %v3000, %v3001
        %v3003 = vsub.f32 1.0, %v3002
        %v3004 = vmul.f32 %v3001, %v3003
        %v3005 = vadd.f32 %v3001, %v3004
        %vm3006 = vweird.f32 %v3000
        %vm3007 = vweird.f32 %v3001
        %vm3008 = vmor %vm3006, %vm3007
        %v3009 = vsel %vm3008, %v3001, %v3005
        %v3010 = vand.u32 2147483647, %v3000
        %vm3011 = vcmp.eq.f32.partialorder %v3010, 8.507059e+37
        %v3012 = vand.u32 %v3000, 2147483648
        %v3013 = vor.u32 1.1754944e-38, %v3012
        %v3014 = vsel %vm3011, %v3013, %v3009
        %v3015 = vmul.f32 1.0, %v3014
        %v3016 = vmul.f32 %v3015, 1.0614054
        %v3017 = vadd.f32 %v3016, -1.4531521
        %v3018 = vmul.f32 %v3017, %v3015
        %v3019 = vadd.f32 %v3018, 1.4214138
        %v3020 = vmul.f32 %v3019, %v3015
        %v3021 = vadd.f32 %v3020, -0.28449672
        %v3022 = vmul.f32 %v3021, %v3015
        %v3023 = vadd.f32 %v3022, 0.2548296
        %v3024 = vmul.f32 %v3023, %v3015
        %v3025 = vmul.f32 %v2998, %v2998
        %v3026 = vsub.f32 0.0, %v3025
        %v3027 = vmul.f32 %v3026, 1.442695
        %v3028 = vpow.pop %v3027
        %v3029 = vmul.f32 %v3024, %v3028
        %v3030 = vsub.f32 1.0, %v3029
        %vm3031 = vcmp.lt.f32.partialorder %v2997, 0.0
        %v3032 = vsub.f32 0.0, %v3030
        %v3033 = vsel %vm3031, %v3032, %v3030
        %v3034 = vadd.f32 %v3033, 1.0
        %v3035 = vmul.f32 %v2996, %v3034
        %v3036 = vld [vmem:[%s15] sm:$0xff]
        %v3037 = vld [vmem:[%s15 + $0x8] sm:$0xff]
        %v3038 = vld [vmem:[%s15 + $0x10] sm:$0xff]
        %v3039 = vld [vmem:[%s15 + $0x18] sm:$0xff]
        %v3040 = vld [vmem:[%s15 + $0x20] sm:$0xff]
        %v3041 = vld [vmem:[%s15 + $0x28] sm:$0xff]
        %v3042 = vld [vmem:[%s15 + $0x30] sm:$0xff]
        %v3043 = vld [vmem:[%s15 + $0x38] sm:$0xff]
        %v3044 = vld [vmem:[%s16] sm:$0x1]
        %v3046 = vperm.slane %v3044, 0
        %vm3048 = vcmask 523264
        %v3050 = vsel %vm3048, %v3035, 0
        %3052 = vmatpush.msra.mxu0 0.0
        %3053 = vmatpush.msra.mxu0 0.0
        %3054 = vmatpush.msra.mxu0 0.0
        %3055 = vmatpush.msra.mxu0 0.0
        %3056 = vmatpush.msra.mxu0 0.0
        %3057 = vmatpush.msra.mxu0 0.0
        %3058 = vmatpush.msra.mxu0 0.0
        %3059 = vmatpush.msra.mxu0 0.0
        %v3060 = vand.u32 %v3043, 4294901760
        %3061 = vmatpush.msra.mxu0 %v3060
        %v3062 = vand.u32 %v3042, 4294901760
        %3063 = vmatpush.msra.mxu0 %v3062
        %v3064 = vand.u32 %v3041, 4294901760
        %3065 = vmatpush.msra.mxu0 %v3064
        %v3066 = vand.u32 %v3040, 4294901760
        %3067 = vmatpush.msra.mxu0 %v3066
        %v3068 = vand.u32 %v3039, 4294901760
        %3069 = vmatpush.msra.mxu0 %v3068
        %v3070 = vand.u32 %v3038, 4294901760
        %3071 = vmatpush.msra.mxu0 %v3070
        %v3072 = vand.u32 %v3037, 4294901760
        %3073 = vmatpush.msra.mxu0 %v3072
        %v3074 = vand.u32 %v3036, 4294901760
        %3075 = vmatpush.msra.mxu0 %v3074
        %v3076 = vand.u32 %v3050, 4294901760
        %v3077 = vsub.f32 %v3050, %v3076
        %v3078 = vand.u32 %v3077, 4294901760
        %v3079 = vsub.f32 %v3077, %v3078
        %v3080 = vand.u32 %v3079, 4294901760
        %3081 = vmatmul.f32.gmra.mxu0 %v3080
        %v3082 = vpop.f32.mrf.mxu0
        %v3083 = vadd.f32 %v3046, %v3082
        %3084 = vdwg.mxu0
        %3085 = vmatpush.msra.mxu0 0.0
        %3086 = vmatpush.msra.mxu0 0.0
        %3087 = vmatpush.msra.mxu0 0.0
        %3088 = vmatpush.msra.mxu0 0.0
        %3089 = vmatpush.msra.mxu0 0.0
        %3090 = vmatpush.msra.mxu0 0.0
        %3091 = vmatpush.msra.mxu0 0.0
        %3092 = vmatpush.msra.mxu0 0.0
        %v3093 = vand.u32 %v3043, 4294901760
        %v3094 = vsub.f32 %v3043, %v3093
        %v3095 = vand.u32 %v3094, 4294901760
        %v3096 = vsub.f32 %v3094, %v3095
        %v3097 = vand.u32 %v3096, 4294901760
        %3098 = vmatpush.msra.mxu0 %v3097
        %v3099 = vand.u32 %v3042, 4294901760
        %v3100 = vsub.f32 %v3042, %v3099
        %v3101 = vand.u32 %v3100, 4294901760
        %v3102 = vsub.f32 %v3100, %v3101
        %v3103 = vand.u32 %v3102, 4294901760
        %3104 = vmatpush.msra.mxu0 %v3103
        %v3105 = vand.u32 %v3041, 4294901760
        %v3106 = vsub.f32 %v3041, %v3105
        %v3107 = vand.u32 %v3106, 4294901760
        %v3108 = vsub.f32 %v3106, %v3107
        %v3109 = vand.u32 %v3108, 4294901760
        %3110 = vmatpush.msra.mxu0 %v3109
        %v3111 = vand.u32 %v3040, 4294901760
        %v3112 = vsub.f32 %v3040, %v3111
        %v3113 = vand.u32 %v3112, 4294901760
        %v3114 = vsub.f32 %v3112, %v3113
        %v3115 = vand.u32 %v3114, 4294901760
        %3116 = vmatpush.msra.mxu0 %v3115
        %v3117 = vand.u32 %v3039, 4294901760
        %v3118 = vsub.f32 %v3039, %v3117
        %v3119 = vand.u32 %v3118, 4294901760
        %v3120 = vsub.f32 %v3118, %v3119
        %v3121 = vand.u32 %v3120, 4294901760
        %3122 = vmatpush.msra.mxu0 %v3121
        %v3123 = vand.u32 %v3038, 4294901760
        %v3124 = vsub.f32 %v3038, %v3123
        %v3125 = vand.u32 %v3124, 4294901760
        %v3126 = vsub.f32 %v3124, %v3125
        %v3127 = vand.u32 %v3126, 4294901760
        %3128 = vmatpush.msra.mxu0 %v3127
        %v3129 = vand.u32 %v3037, 4294901760
        %v3130 = vsub.f32 %v3037, %v3129
        %v3131 = vand.u32 %v3130, 4294901760
        %v3132 = vsub.f32 %v3130, %v3131
        %v3133 = vand.u32 %v3132, 4294901760
        %3134 = vmatpush.msra.mxu0 %v3133
        %v3135 = vand.u32 %v3036, 4294901760
        %v3136 = vsub.f32 %v3036, %v3135
        %v3137 = vand.u32 %v3136, 4294901760
        %v3138 = vsub.f32 %v3136, %v3137
        %v3139 = vand.u32 %v3138, 4294901760
        %3140 = vmatpush.msra.mxu0 %v3139
        %v3141 = vand.u32 %v3050, 4294901760
        %3142 = vmatmul.f32.gmra.mxu0 %v3141
        %v3143 = vpop.f32.mrf.mxu0
        %v3144 = vadd.f32 %v3083, %v3143
        %3145 = vdwg.mxu0
        %3146 = vmatpush.msra.mxu0 0.0
        %3147 = vmatpush.msra.mxu0 0.0
        %3148 = vmatpush.msra.mxu0 0.0
        %3149 = vmatpush.msra.mxu0 0.0
        %3150 = vmatpush.msra.mxu0 0.0
        %3151 = vmatpush.msra.mxu0 0.0
        %3152 = vmatpush.msra.mxu0 0.0
        %3153 = vmatpush.msra.mxu0 0.0
        %v3154 = vand.u32 %v3043, 4294901760
        %v3155 = vsub.f32 %v3043, %v3154
        %3156 = vmatpush.msra.mxu0 %v3155
        %v3157 = vand.u32 %v3042, 4294901760
        %v3158 = vsub.f32 %v3042, %v3157
        %3159 = vmatpush.msra.mxu0 %v3158
        %v3160 = vand.u32 %v3041, 4294901760
        %v3161 = vsub.f32 %v3041, %v3160
        %3162 = vmatpush.msra.mxu0 %v3161
        %v3163 = vand.u32 %v3040, 4294901760
        %v3164 = vsub.f32 %v3040, %v3163
        %3165 = vmatpush.msra.mxu0 %v3164
        %v3166 = vand.u32 %v3039, 4294901760
        %v3167 = vsub.f32 %v3039, %v3166
        %3168 = vmatpush.msra.mxu0 %v3167
        %v3169 = vand.u32 %v3038, 4294901760
        %v3170 = vsub.f32 %v3038, %v3169
        %3171 = vmatpush.msra.mxu0 %v3170
        %v3172 = vand.u32 %v3037, 4294901760
        %v3173 = vsub.f32 %v3037, %v3172
        %3174 = vmatpush.msra.mxu0 %v3173
        %v3175 = vand.u32 %v3036, 4294901760
        %v3176 = vsub.f32 %v3036, %v3175
        %3177 = vmatpush.msra.mxu0 %v3176
        %v3178 = vand.u32 %v3050, 4294901760
        %v3179 = vsub.f32 %v3050, %v3178
        %3180 = vmatmul.f32.gmra.mxu0 %v3179
        %v3181 = vpop.f32.mrf.mxu0
        %v3182 = vadd.f32 %v3144, %v3181
        %3183 = vdwg.mxu0
        %3184 = vmatpush.msra.mxu0 0.0
        %3185 = vmatpush.msra.mxu0 0.0
        %3186 = vmatpush.msra.mxu0 0.0
        %3187 = vmatpush.msra.mxu0 0.0
        %3188 = vmatpush.msra.mxu0 0.0
        %3189 = vmatpush.msra.mxu0 0.0
        %3190 = vmatpush.msra.mxu0 0.0
        %3191 = vmatpush.msra.mxu0 0.0
        %v3192 = vand.u32 %v3043, 4294901760
        %3193 = vmatpush.msra.mxu0 %v3192
        %v3194 = vand.u32 %v3042, 4294901760
        %3195 = vmatpush.msra.mxu0 %v3194
        %v3196 = vand.u32 %v3041, 4294901760
        %3197 = vmatpush.msra.mxu0 %v3196
        %v3198 = vand.u32 %v3040, 4294901760
        %3199 = vmatpush.msra.mxu0 %v3198
        %v3200 = vand.u32 %v3039, 4294901760
        %3201 = vmatpush.msra.mxu0 %v3200
        %v3202 = vand.u32 %v3038, 4294901760
        %3203 = vmatpush.msra.mxu0 %v3202
        %v3204 = vand.u32 %v3037, 4294901760
        %3205 = vmatpush.msra.mxu0 %v3204
        %v3206 = vand.u32 %v3036, 4294901760
        %3207 = vmatpush.msra.mxu0 %v3206
        %v3208 = vand.u32 %v3050, 4294901760
        %v3209 = vsub.f32 %v3050, %v3208
        %v3210 = vand.u32 %v3209, 4294901760
        %3211 = vmatmul.f32.gmra.mxu0 %v3210
        %v3212 = vpop.f32.mrf.mxu0
        %v3213 = vadd.f32 %v3182, %v3212
        %3214 = vdwg.mxu0
        %3215 = vmatpush.msra.mxu0 0.0
        %3216 = vmatpush.msra.mxu0 0.0
        %3217 = vmatpush.msra.mxu0 0.0
        %3218 = vmatpush.msra.mxu0 0.0
        %3219 = vmatpush.msra.mxu0 0.0
        %3220 = vmatpush.msra.mxu0 0.0
        %3221 = vmatpush.msra.mxu0 0.0
        %3222 = vmatpush.msra.mxu0 0.0
        %v3223 = vand.u32 %v3043, 4294901760
        %v3224 = vsub.f32 %v3043, %v3223
        %v3225 = vand.u32 %v3224, 4294901760
        %3226 = vmatpush.msra.mxu0 %v3225
        %v3227 = vand.u32 %v3042, 4294901760
        %v3228 = vsub.f32 %v3042, %v3227
        %v3229 = vand.u32 %v3228, 4294901760
        %3230 = vmatpush.msra.mxu0 %v3229
        %v3231 = vand.u32 %v3041, 4294901760
        %v3232 = vsub.f32 %v3041, %v3231
        %v3233 = vand.u32 %v3232, 4294901760
        %3234 = vmatpush.msra.mxu0 %v3233
        %v3235 = vand.u32 %v3040, 4294901760
        %v3236 = vsub.f32 %v3040, %v3235
        %v3237 = vand.u32 %v3236, 4294901760
        %3238 = vmatpush.msra.mxu0 %v3237
        %v3239 = vand.u32 %v3039, 4294901760
        %v3240 = vsub.f32 %v3039, %v3239
        %v3241 = vand.u32 %v3240, 4294901760
        %3242 = vmatpush.msra.mxu0 %v3241
        %v3243 = vand.u32 %v3038, 4294901760
        %v3244 = vsub.f32 %v3038, %v3243
        %v3245 = vand.u32 %v3244, 4294901760
        %3246 = vmatpush.msra.mxu0 %v3245
        %v3247 = vand.u32 %v3037, 4294901760
        %v3248 = vsub.f32 %v3037, %v3247
        %v3249 = vand.u32 %v3248, 4294901760
        %3250 = vmatpush.msra.mxu0 %v3249
        %v3251 = vand.u32 %v3036, 4294901760
        %v3252 = vsub.f32 %v3036, %v3251
        %v3253 = vand.u32 %v3252, 4294901760
        %3254 = vmatpush.msra.mxu0 %v3253
        %v3255 = vand.u32 %v3050, 4294901760
        %3256 = vmatmul.f32.gmra.mxu0 %v3255
        %v3257 = vpop.f32.mrf.mxu0
        %v3258 = vadd.f32 %v3213, %v3257
        %3259 = vdwg.mxu0
        %3260 = vmatpush.msra.mxu0 0.0
        %3261 = vmatpush.msra.mxu0 0.0
        %3262 = vmatpush.msra.mxu0 0.0
        %3263 = vmatpush.msra.mxu0 0.0
        %3264 = vmatpush.msra.mxu0 0.0
        %3265 = vmatpush.msra.mxu0 0.0
        %3266 = vmatpush.msra.mxu0 0.0
        %3267 = vmatpush.msra.mxu0 0.0
        %v3268 = vand.u32 %v3043, 4294901760
        %3269 = vmatpush.msra.mxu0 %v3268
        %v3270 = vand.u32 %v3042, 4294901760
        %3271 = vmatpush.msra.mxu0 %v3270
        %v3272 = vand.u32 %v3041, 4294901760
        %3273 = vmatpush.msra.mxu0 %v3272
        %v3274 = vand.u32 %v3040, 4294901760
        %3275 = vmatpush.msra.mxu0 %v3274
        %v3276 = vand.u32 %v3039, 4294901760
        %3277 = vmatpush.msra.mxu0 %v3276
        %v3278 = vand.u32 %v3038, 4294901760
        %3279 = vmatpush.msra.mxu0 %v3278
        %v3280 = vand.u32 %v3037, 4294901760
        %3281 = vmatpush.msra.mxu0 %v3280
        %v3282 = vand.u32 %v3036, 4294901760
        %3283 = vmatpush.msra.mxu0 %v3282
        %v3284 = vand.u32 %v3050, 4294901760
        %3285 = vmatmul.f32.gmra.mxu0 %v3284
        %v3286 = vpop.f32.mrf.mxu0
        %v3287 = vadd.f32 %v3258, %v3286
        %3288 = vdwg.mxu0
        %v3289 = vadd.f32 %v2767, %v3287
        %3290 = vst.msk [vmem:[%s613] sm:$0xff] %vm617, %v3289
        %s3291 = sand.u32 %s406, 1
        %s3292 = scalar_lea.sflag [#allocation4], %s3291
        %s3293 = sand.u32 %s406, 1
        %s3294 = smul.addr %s3293, 8
        %s3295 = scalar_lea.vmem [#allocation10], %s3294
        // Predicated region
        $region105: #{tpu_custom_call.1} parent=87 // pred_check
          %p3296 = pneg %p416
        $region106: #{tpu_custom_call.1} parent=87 // pred_check_branch
          %3298 = sbr.rel (%p3296) target = $region108
        $region107: #{tpu_custom_call.1} parent=87 // pred_region
          %3300 = vsyncadd %s3292, 0
          %s3301 = smul.addr %s36, 8
          %s3302 = scalar_lea.hbm %s17, %s3301
          %s3304 = sshll.u32 %s3295, 4
          %s3305 = int_to_ptr.vmem [resolvable:$true] %s3304
          %s3306 = sshll.u32 %s3302, 4
          %s3307 = int_to_ptr.hbm [resolvable:$true] %s3306
          %3309 = dma.vmem_to_hbm [thread:$0]  %s3305, 128, %s3307, %s3292
        $region108: #{tpu_custom_call.1} parent=87 // pred_fallthru
          _
      $region88: #{tpu_custom_call.1} parent=5 // pred_fallthru
        _
      %p3310 = scmp.le.s32.totalorder 2, %s31
      // Predicated region
      $region109: #{tpu_custom_call.1} parent=5 // pred_check
        %p3311 = pneg %p3310
      $region110: #{tpu_custom_call.1} parent=5 // pred_check_branch
        %3313 = sbr.rel (%p3311) target = $region112
      $region111: #{tpu_custom_call.1} parent=5 // pred_region
        %s3314 = ssub.s32 %s31, 2
        // Predicated region
        $region113: #{tpu_custom_call.1} parent=111 // pred_check
          %p3315 = pneg %p422
        $region114: #{tpu_custom_call.1} parent=111 // pred_check_branch
          %3317 = sbr.rel (%p3315) target = $region116
        $region115: #{tpu_custom_call.1} parent=111 // pred_region
          %s3318 = sand.u32 %s407, 1
          %s3319 = scalar_lea.sflag [#allocation4], %s3318
          %s3320 = sand.u32 %s407, 1
          %s3321 = smul.addr %s3320, 8
          %s3322 = scalar_lea.vmem [#allocation10], %s3321
          %3324 = dma.done %s3319, 128
        $region116: #{tpu_custom_call.1} parent=111 // pred_fallthru
          _
      $region112: #{tpu_custom_call.1} parent=5 // pred_fallthru
        _
    $region6: #{tpu_custom_call.1} parent=1 // loop_footer
      %s35 = sadd.s32 1, %s31
    $region7: #{tpu_custom_call.1} parent=1 // loop_footer_branch
      %30 = sbr.rel target = $region3
    $region8: #{tpu_custom_call.1} parent=1 // loop_exit
      _
    %3325 = vsyncpa [#allocation3], 1
    %s3326 = scalar_lea.sflag [#allocation3], 1
    %3327 = vsyncpa %s3326, 1
    %3328 = vsyncpa [#allocation6], 1
    %3329 = vsyncpa [#allocation9], 1
    %3330 = vsyncpa [#allocation4], 1
    %s3331 = scalar_lea.sflag [#allocation4], 1
    %3332 = vsyncpa %s3331, 1

</llo_original>
